<compile_context>
chip_gen: v6e
topology: v6e:2x2x1
jax: 0.10.0
libtpu: 0.0.40
codegen_flags: <defaults>
</compile_context>

<pallas_src>
import functools
import jax
import jax.numpy as jnp
from jax.experimental import pallas as pl


# ----------------------------------------------------------------------------
# Fused AsyncInfer kernel
# ----------------------------------------------------------------------------
def _make_async_infer_kernel(S, B, Hd, num_layers):
    N = S * B          # rows per sequence (row r = s*B + b)
    R = 2 * B          # recurrence rows: [p.b0..b(B-1), q.b0..b(B-1)]
    G4 = 4 * Hd
    G8 = 8 * Hd

    def inferential(ha, hb, wt, pt, wcat, bwb, gamma, beta):
        """InferentialModule on (N, H) values; returns LayerNorm(ReLU(..))."""
        th = jnp.tanh(jnp.dot(ha * hb, wt,
                              preferred_element_type=jnp.float32))       # (N,K)
        # P projection as a lane reduction (avoid an N=1 MXU matmul).
        sc = jnp.sum(th * pt, axis=-1, keepdims=True)                     # (N,1)

        # softmax over the sequence axis per batch column (implicit dim=0);
        # columns are identified by row % B, so no reshape is needed.
        col = jax.lax.broadcasted_iota(jnp.int32, (N, 1), 0) % B
        mx = jnp.zeros_like(sc)
        for b in range(B):
            sel = col == b
            mb = jnp.max(jnp.where(sel, sc, -jnp.inf), axis=0, keepdims=True)
            mx = jnp.where(sel, mb, mx)
        ex = jnp.exp(sc - mx)
        den = jnp.ones_like(sc)
        for b in range(B):
            sel = col == b
            sb = jnp.sum(jnp.where(sel, ex, 0.0), axis=0, keepdims=True)
            den = jnp.where(sel, sb, den)
        e = ex / den                                                      # (N,1)

        hb_d = ha * e
        # Folded Wb: [hb,hb_d,hb-hb_d,hb*hb_d]@Wb^T
        #          == [hb | hb_d | hb*hb_d] @ [W1+W3; W2-W3; W4]  (one dot)
        feat = jnp.concatenate([hb, hb_d, hb * hb_d], axis=-1)            # (N,3H)
        z = jnp.dot(feat, wcat, preferred_element_type=jnp.float32) + bwb
        r = jnp.maximum(z, 0.0)
        # LayerNorm over the hidden dim (biased variance, eps=1e-5).
        mean = jnp.mean(r, axis=-1, keepdims=True)
        var = jnp.mean((r - mean) ** 2, axis=-1, keepdims=True)
        return (r - mean) * jax.lax.rsqrt(var + 1e-5) * gamma + beta

    def kernel(vp_ref, vq_ref,
               wt1_ref, pt1_ref, wc1_ref, bb1_ref, ga1_ref, be1_ref,
               wt2_ref, pt2_ref, wc2_ref, bb2_ref, ga2_ref, be2_ref,
               *rest):
        lstm_refs = rest[:4 * num_layers]
        out_p_ref, out_q_ref = rest[4 * num_layers:]

        vp = vp_ref[...]                                   # (N, H)
        vq = vq_ref[...]                                   # (N, H)

        # inf2 consumes inf1's output, so the two modules are inherently
        # sequential; both are batched over all S*B rows.
        vq_hat = inferential(vp, vq, wt1_ref[...], pt1_ref[...], wc1_ref[...],
                             bb1_ref[...], ga1_ref[...], be1_ref[...])
        vp_hat = inferential(vq_hat, vp, wt2_ref[...], pt2_ref[...], wc2_ref[...],
                             bb2_ref[...], ga2_ref[...], be2_ref[...])

        # LSTM layer-0 inputs: vp_d = [Vp | vp_hat], vq_d = [Vq | vq_hat].
        x_p = jnp.concatenate([vp, vp_hat], axis=-1)       # (N, 2H)
        x_q = jnp.concatenate([vq, vq_hat], axis=-1)       # (N, 2H)

        slabs = None
        for layer in range(num_layers):
            wih = lstm_refs[4 * layer + 0][...]            # (In_l, 8*Hd)
            bih = lstm_refs[4 * layer + 1][...]            # (1, 8*Hd)
            whh_f = lstm_refs[4 * layer + 2][...]          # (Hd, 4*Hd)
            whh_b = lstm_refs[4 * layer + 3][...]          # (Hd, 4*Hd)

            # (a) Input projection hoisted out of the recurrence: all time
            #     steps, both directions, one MXU pass per sequence.
            gx_p = jnp.dot(x_p, wih, preferred_element_type=jnp.float32) + bih
            gx_q = jnp.dot(x_q, wih, preferred_element_type=jnp.float32) + bih

            # (b) Fused bidirectional recurrence with both sequences merged
            #     into the matmul rows: only the two small h@Whh dots per
            #     timestep sit on the serial dependence chain.
            h_f = jnp.zeros((R, Hd), jnp.float32)
            h_b = jnp.zeros((R, Hd), jnp.float32)
            c_f = jnp.zeros((R, Hd), jnp.float32)
            c_b = jnp.zeros((R, Hd), jnp.float32)
            hs_f = [None] * S
            hs_b = [None] * S

            for t in range(S):                              # fully unrolled
                tb = S - 1 - t
                gf = jnp.dot(h_f, whh_f, preferred_element_type=jnp.float32)
                gb = jnp.dot(h_b, whh_b, preferred_element_type=jnp.float32)
                # gx gathers depend only on gx_* (off the serial chain).
                g_f = gf + jnp.concatenate(
                    [gx_p[t * B:(t + 1) * B, 0:G4],
                     gx_q[t * B:(t + 1) * B, 0:G4]], axis=0)
                g_b = gb + jnp.concatenate(
                    [gx_p[tb * B:(tb + 1) * B, G4:G8],
                     gx_q[tb * B:(tb + 1) * B, G4:G8]], axis=0)

                i_f = jax.nn.sigmoid(g_f[:, 0:Hd])
                f_f = jax.nn.sigmoid(g_f[:, Hd:2 * Hd])
                ci_f = jnp.tanh(g_f[:, 2 * Hd:3 * Hd])
                o_f = jax.nn.sigmoid(g_f[:, 3 * Hd:4 * Hd])
                i_b = jax.nn.sigmoid(g_b[:, 0:Hd])
                f_b = jax.nn.sigmoid(g_b[:, Hd:2 * Hd])
                ci_b = jnp.tanh(g_b[:, 2 * Hd:3 * Hd])
                o_b = jax.nn.sigmoid(g_b[:, 3 * Hd:4 * Hd])

                c_f = f_f * c_f + i_f * ci_f
                c_b = f_b * c_b + i_b * ci_b
                h_f = o_f * jnp.tanh(c_f)
                h_b = o_b * jnp.tanh(c_b)

                hs_f[t] = h_f
                hs_b[tb] = h_b

            # Per-timestep [h_fwd | h_bwd] slabs; rows 0:B -> p, rows B:R -> q.
            slabs = [jnp.concatenate([hs_f[s], hs_b[s]], axis=-1)
                     for s in range(S)]
            if layer + 1 < num_layers:
                x_p = jnp.concatenate([sl[0:B] for sl in slabs], axis=0)
                x_q = jnp.concatenate([sl[B:R] for sl in slabs], axis=0)

        # One bulk store per output, after (and off) the recurrence chain.
        out_p_ref[...] = jnp.concatenate([sl[0:B] for sl in slabs], axis=0)
        out_q_ref[...] = jnp.concatenate([sl[B:R] for sl in slabs], axis=0)

    return kernel


# ----------------------------------------------------------------------------
# Parameter preparation (host-side, once): fold Wb, pack LSTM weights.
# ----------------------------------------------------------------------------
def prepare_params(params):
    inf1, inf2, lstm1, lstm2 = params
    del lstm2  # faithful: lstm_layer2 is constructed but never used

    def prep_inf(p):
        wt, pt, wbt, bwb, gamma, beta = p
        H = wbt.shape[1]
        w1 = wbt[0 * H:1 * H] + wbt[2 * H:3 * H]
        w2 = wbt[1 * H:2 * H] - wbt[2 * H:3 * H]
        w4 = wbt[3 * H:4 * H]
        wcat = jnp.concatenate([w1, w2, w4], axis=0)          # (3H, H)
        return (wt, pt, wcat, bwb, gamma, beta)

    lstm_flat = []
    for (wih_f, whh_f, b_f, wih_b, whh_b, b_b) in lstm1:
        lstm_flat.append(jnp.concatenate([wih_f, wih_b], axis=1))   # (In, 8Hd)
        lstm_flat.append(jnp.concatenate([b_f, b_b], axis=1))       # (1, 8Hd)
        lstm_flat.append(whh_f)                                     # (Hd, 4Hd)
        lstm_flat.append(whh_b)                                     # (Hd, 4Hd)
    return (prep_inf(inf1), prep_inf(inf2), tuple(lstm_flat))


# ----------------------------------------------------------------------------
# AsyncInfer forward: single fused pallas_call
# ----------------------------------------------------------------------------
def async_infer_forward(prepared, Vp, Vq):
    inf1, inf2, lstm_flat = prepared
    S, B, H = Vp.shape
    num_layers = len(lstm_flat) // 4
    Hd = lstm_flat[2].shape[0]

    kernel = _make_async_infer_kernel(S, B, Hd, num_layers)
    out_p, out_q = pl.pallas_call(
        kernel,
        out_shape=(jax.ShapeDtypeStruct((S * B, H), jnp.float32),
                   jax.ShapeDtypeStruct((S * B, H), jnp.float32)),
    )(Vp.reshape(S * B, H), Vq.reshape(S * B, H), *inf1, *inf2, *lstm_flat)
    # Contiguous reshapes only: metadata ops, no HBM relayout.
    return out_p.reshape(S, B, H), out_q.reshape(S, B, H)


# ----------------------------------------------------------------------------
# Parameter construction (deterministic, synthetic, PyTorch-equivalent layout)
# ----------------------------------------------------------------------------
def make_inferential_params(key, hidden, k):
    k0, k1, k2, k3 = jax.random.split(key, 4)
    wt = 0.1 * jax.random.normal(k0, (hidden, k), jnp.float32)            # W.weight^T
    pt = 0.1 * jax.random.normal(k1, (1, k), jnp.float32)                 # P.weight row
    wbt = 0.1 * jax.random.normal(k2, (4 * hidden, hidden), jnp.float32)  # Wb.weight^T
    bwb = 0.1 * jax.random.normal(k3, (1, hidden), jnp.float32)
    gamma = jnp.ones((1, hidden), jnp.float32)
    beta = jnp.zeros((1, hidden), jnp.float32)
    return (wt, pt, wbt, bwb, gamma, beta)


def make_lstm_params(key, input_size, hidden_half, num_layers):
    layers = []
    for layer in range(num_layers):
        in_l = input_size if layer == 0 else 2 * hidden_half
        keys = jax.random.split(jax.random.fold_in(key, layer), 8)
        direction_params = []
        for d in range(2):  # forward, backward
            wih = 0.1 * jax.random.normal(keys[4 * d + 0],
                                          (in_l, 4 * hidden_half), jnp.float32)
            whh = 0.1 * jax.random.normal(keys[4 * d + 1],
                                          (hidden_half, 4 * hidden_half),
                                          jnp.float32)
            bih = 0.1 * jax.random.normal(keys[4 * d + 2],
                                          (1, 4 * hidden_half), jnp.float32)
            bhh = 0.1 * jax.random.normal(keys[4 * d + 3],
                                          (1, 4 * hidden_half), jnp.float32)
            direction_params.extend([wih, whh, bih + bhh])
        layers.append(tuple(direction_params))
    return layers


# ----------------------------------------------------------------------------
# Pure-JAX (non-Pallas) reference for correctness checking.
# ----------------------------------------------------------------------------
_HI = jax.lax.Precision.HIGHEST


def _reference_forward(params, Vp, Vq):
    inf1, inf2, lstm1, _ = params

    def inferential(p, ha, hb):
        wt, pt, wbt, bwb, gamma, beta = p
        t = jnp.tanh(jnp.einsum("sbh,hk->sbk", ha * hb, wt, precision=_HI))
        s = jnp.einsum("sbk,ik->sbi", t, pt, precision=_HI)      # (S, B, 1)
        e = jax.nn.softmax(s, axis=0)                            # implicit dim=0
        hb_d = ha * e
        hb_dd = jnp.concatenate([hb, hb_d, hb - hb_d, hb * hb_d], axis=-1)
        z = jnp.einsum("sbf,fh->sbh", hb_dd, wbt, precision=_HI) + bwb
        r = jnp.maximum(z, 0.0)
        mean = jnp.mean(r, axis=-1, keepdims=True)
        var = jnp.mean((r - mean) ** 2, axis=-1, keepdims=True)
        return (r - mean) * jax.lax.rsqrt(var + 1e-5) * gamma + beta

    def lstm_dir(x, wih, whh, b, reverse):
        Hd = whh.shape[0]
        Bsz = x.shape[1]
        xs = x[::-1] if reverse else x

        def step(carry, xt):
            h, c = carry
            g = (jnp.dot(xt, wih, precision=_HI)
                 + jnp.dot(h, whh, precision=_HI) + b)
            i = jax.nn.sigmoid(g[:, 0:Hd])
            f = jax.nn.sigmoid(g[:, Hd:2 * Hd])
            gg = jnp.tanh(g[:, 2 * Hd:3 * Hd])
            o = jax.nn.sigmoid(g[:, 3 * Hd:4 * Hd])
            c = f * c + i * gg
            h = o * jnp.tanh(c)
            return (h, c), h

        init = (jnp.zeros((Bsz, Hd), jnp.float32),
                jnp.zeros((Bsz, Hd), jnp.float32))
        _, hs = jax.lax.scan(step, init, xs)
        return hs[::-1] if reverse else hs

    def bilstm_ref(layers, x):
        h = x
        for (wih_f, whh_f, b_f, wih_b, whh_b, b_b) in layers:
            out_f = lstm_dir(h, wih_f, whh_f, b_f, False)
            out_b = lstm_dir(h, wih_b, whh_b, b_b, True)
            h = jnp.concatenate([out_f, out_b], axis=-1)
        return h

    vq_hat = inferential(inf1, Vp, Vq)
    vp_hat = inferential(inf2, vq_hat, Vp)
    vq_d = jnp.concatenate([Vq, vq_hat], axis=2)
    vp_d = jnp.concatenate([Vp, vp_hat], axis=2)
    return bilstm_ref(lstm1, vp_d), bilstm_ref(lstm1, vq_d)


if __name__ == "__main__":
    # conf: hidden_size=32, k=16, num_layers=1 ; data: seq=8, batch=2
    SEQ, BATCH, HIDDEN, K, NUM_LAYERS = 8, 2, 32, 16, 1

    root = jax.random.PRNGKey(0)
    k_inf1, k_inf2, k_lstm1, k_lstm2, k_vp, k_vq = jax.random.split(root, 6)

    inf1_params = make_inferential_params(k_inf1, HIDDEN, K)
    inf2_params = make_inferential_params(k_inf2, HIDDEN, K)
    lstm1_params = make_lstm_params(k_lstm1, 2 * HIDDEN, HIDDEN // 2, NUM_LAYERS)
    lstm2_params = make_lstm_params(k_lstm2, 2 * HIDDEN, HIDDEN // 2, NUM_LAYERS)
    params = (inf1_params, inf2_params, lstm1_params, lstm2_params)

    Vp = jax.random.normal(k_vp, (SEQ, BATCH, HIDDEN), jnp.float32)
    Vq = jax.random.normal(k_vq, (SEQ, BATCH, HIDDEN), jnp.float32)

    prepared = prepare_params(params)
    fwd = jax.jit(functools.partial(async_infer_forward, prepared))
    Vp_new, Vq_new = fwd(Vp, Vq)
    jax.block_until_ready((Vp_new, Vq_new))

    assert Vp_new.shape == (SEQ, BATCH, HIDDEN)
    assert Vq_new.shape == (SEQ, BATCH, HIDDEN)
    assert bool(jnp.all(jnp.isfinite(Vp_new))) and bool(jnp.all(jnp.isfinite(Vq_new)))

    # Numerical check against a pure-JAX reference of the same math.
    Vp_ref, Vq_ref = _reference_forward(params, Vp, Vq)
    assert bool(jnp.allclose(Vp_new, Vp_ref, rtol=2e-4, atol=2e-4)), \
        float(jnp.max(jnp.abs(Vp_new - Vp_ref)))
    assert bool(jnp.allclose(Vq_new, Vq_ref, rtol=2e-4, atol=2e-4)), \
        float(jnp.max(jnp.abs(Vq_new - Vq_ref)))

    print("KERNEL_OK")
</pallas_src>

<mosaic_0001>
module attributes {stable_mosaic.version = 11 : i64} {
  func.func @kernel(%arg0: memref<16x32xf32, #tpu.memory_space<vmem>>, %arg1: memref<16x32xf32, #tpu.memory_space<vmem>>, %arg2: memref<32x16xf32, #tpu.memory_space<vmem>>, %arg3: memref<1x16xf32, #tpu.memory_space<vmem>>, %arg4: memref<96x32xf32, #tpu.memory_space<vmem>>, %arg5: memref<1x32xf32, #tpu.memory_space<vmem>>, %arg6: memref<1x32xf32, #tpu.memory_space<vmem>>, %arg7: memref<1x32xf32, #tpu.memory_space<vmem>>, %arg8: memref<32x16xf32, #tpu.memory_space<vmem>>, %arg9: memref<1x16xf32, #tpu.memory_space<vmem>>, %arg10: memref<96x32xf32, #tpu.memory_space<vmem>>, %arg11: memref<1x32xf32, #tpu.memory_space<vmem>>, %arg12: memref<1x32xf32, #tpu.memory_space<vmem>>, %arg13: memref<1x32xf32, #tpu.memory_space<vmem>>, %arg14: memref<64x128xf32, #tpu.memory_space<vmem>>, %arg15: memref<1x128xf32, #tpu.memory_space<vmem>>, %arg16: memref<16x64xf32, #tpu.memory_space<vmem>>, %arg17: memref<16x64xf32, #tpu.memory_space<vmem>>, %arg18: memref<16x32xf32, #tpu.memory_space<vmem>>, %arg19: memref<16x32xf32, #tpu.memory_space<vmem>>) attributes {dimension_semantics = [], scalar_prefetch = 0 : i64, scratch_operands = 0 : i64, tpu.core_type = #tpu.core_type<tc>} {
    %c0 = arith.constant 0 : index
    %c0_0 = arith.constant 0 : index
    %0 = vector.load %arg0[%c0, %c0_0] : memref<16x32xf32, #tpu.memory_space<vmem>>, vector<16x32xf32>
    %c0_1 = arith.constant 0 : index
    %c0_2 = arith.constant 0 : index
    %1 = vector.load %arg1[%c0_1, %c0_2] : memref<16x32xf32, #tpu.memory_space<vmem>>, vector<16x32xf32>
    %c0_3 = arith.constant 0 : index
    %c0_4 = arith.constant 0 : index
    %2 = vector.load %arg2[%c0_3, %c0_4] : memref<32x16xf32, #tpu.memory_space<vmem>>, vector<32x16xf32>
    %c0_5 = arith.constant 0 : index
    %c0_6 = arith.constant 0 : index
    %3 = vector.load %arg3[%c0_5, %c0_6] : memref<1x16xf32, #tpu.memory_space<vmem>>, vector<1x16xf32>
    %c0_7 = arith.constant 0 : index
    %c0_8 = arith.constant 0 : index
    %4 = vector.load %arg4[%c0_7, %c0_8] : memref<96x32xf32, #tpu.memory_space<vmem>>, vector<96x32xf32>
    %c0_9 = arith.constant 0 : index
    %c0_10 = arith.constant 0 : index
    %5 = vector.load %arg5[%c0_9, %c0_10] : memref<1x32xf32, #tpu.memory_space<vmem>>, vector<1x32xf32>
    %c0_11 = arith.constant 0 : index
    %c0_12 = arith.constant 0 : index
    %6 = vector.load %arg6[%c0_11, %c0_12] : memref<1x32xf32, #tpu.memory_space<vmem>>, vector<1x32xf32>
    %c0_13 = arith.constant 0 : index
    %c0_14 = arith.constant 0 : index
    %7 = vector.load %arg7[%c0_13, %c0_14] : memref<1x32xf32, #tpu.memory_space<vmem>>, vector<1x32xf32>
    %8 = arith.mulf %0, %1 : vector<16x32xf32>
    %cst = arith.constant dense<0.000000e+00> : vector<16x16xf32>
    %9 = tpu.matmul %8, %2, %cst {dimension_numbers = #tpu.dot_dimension_numbers<[1], [0], [0], [1], [0, 0, 1, 1], [], []>} : vector<16x32xf32>, vector<32x16xf32>, vector<16x16xf32> -> vector<16x16xf32>
    %10 = math.tanh %9 : vector<16x16xf32>
    %11 = vector.broadcast %3 : vector<1x16xf32> to vector<16x16xf32>
    %12 = arith.mulf %10, %11 : vector<16x16xf32>
    %cst_15 = arith.constant dense<0.000000e+00> : vector<16xf32>
    %13 = vector.multi_reduction <add>, %12, %cst_15 [1] : vector<16x16xf32> to vector<16xf32>
    %14 = vector.shape_cast %13 : vector<16xf32> to vector<16x1xf32>
    %15 = tpu.iota {dimensions = array<i32: 0>} : vector<16x1xi32>
    %c2_i32 = arith.constant 2 : i32
    %c0_i32 = arith.constant 0 : i32
    %16 = arith.cmpi eq, %c2_i32, %c0_i32 : i32
    %c1_i32 = arith.constant 1 : i32
    %17 = arith.select %16, %c1_i32, %c2_i32 : i32
    %18 = vector.broadcast %17 : i32 to vector<16x1xi32>
    %19 = arith.remsi %15, %18 : vector<16x1xi32>
    %c0_i32_16 = arith.constant 0 : i32
    %20 = vector.broadcast %c0_i32_16 : i32 to vector<16x1xi32>
    %21 = arith.cmpi ne, %19, %20 : vector<16x1xi32>
    %c0_i32_17 = arith.constant 0 : i32
    %22 = vector.broadcast %c0_i32_17 : i32 to vector<16x1xi32>
    %23 = arith.cmpi slt, %19, %22 : vector<16x1xi32>
    %c0_i32_18 = arith.constant 0 : i32
    %24 = arith.cmpi slt, %17, %c0_i32_18 : i32
    %25 = vector.broadcast %24 : i1 to vector<16x1xi1>
    %26 = vector.broadcast %25 : vector<16x1xi1> to vector<16x1xi1>
    %27 = arith.xori %23, %26 : vector<16x1xi1>
    %28 = arith.andi %27, %21 : vector<16x1xi1>
    %29 = vector.broadcast %17 : i32 to vector<16x1xi32>
    %30 = arith.addi %19, %29 : vector<16x1xi32>
    %31 = arith.select %28, %30, %19 : vector<16x1xi1>, vector<16x1xi32>
    %cst_19 = arith.constant 0.000000e+00 : f32
    %32 = vector.broadcast %cst_19 : f32 to vector<16x1xf32>
    %c0_i32_20 = arith.constant 0 : i32
    %33 = vector.broadcast %c0_i32_20 : i32 to vector<16x1xi32>
    %34 = arith.cmpi eq, %31, %33 : vector<16x1xi32>
    %cst_21 = arith.constant 0xFF800000 : f32
    %35 = vector.broadcast %cst_21 : f32 to vector<16x1xf32>
    %36 = arith.select %34, %14, %35 : vector<16x1xi1>, vector<16x1xf32>
    %cst_22 = arith.constant dense<0xFF800000> : vector<1xf32>
    %37 = vector.multi_reduction <maximumf>, %36, %cst_22 [0] : vector<16x1xf32> to vector<1xf32>
    %38 = vector.shape_cast %37 : vector<1xf32> to vector<1x1xf32>
    %39 = vector.shape_cast %38 : vector<1x1xf32> to vector<1x1xf32>
    %40 = vector.broadcast %39 : vector<1x1xf32> to vector<16x1xf32>
    %41 = arith.select %34, %40, %32 : vector<16x1xi1>, vector<16x1xf32>
    %c1_i32_23 = arith.constant 1 : i32
    %42 = vector.broadcast %c1_i32_23 : i32 to vector<16x1xi32>
    %43 = arith.cmpi eq, %31, %42 : vector<16x1xi32>
    %cst_24 = arith.constant 0xFF800000 : f32
    %44 = vector.broadcast %cst_24 : f32 to vector<16x1xf32>
    %45 = arith.select %43, %14, %44 : vector<16x1xi1>, vector<16x1xf32>
    %cst_25 = arith.constant dense<0xFF800000> : vector<1xf32>
    %46 = vector.multi_reduction <maximumf>, %45, %cst_25 [0] : vector<16x1xf32> to vector<1xf32>
    %47 = vector.shape_cast %46 : vector<1xf32> to vector<1x1xf32>
    %48 = vector.shape_cast %47 : vector<1x1xf32> to vector<1x1xf32>
    %49 = vector.broadcast %48 : vector<1x1xf32> to vector<16x1xf32>
    %50 = arith.select %43, %49, %41 : vector<16x1xi1>, vector<16x1xf32>
    %51 = arith.subf %14, %50 : vector<16x1xf32>
    %52 = math.exp %51 : vector<16x1xf32>
    %cst_26 = arith.constant 1.000000e+00 : f32
    %53 = vector.broadcast %cst_26 : f32 to vector<16x1xf32>
    %c0_i32_27 = arith.constant 0 : i32
    %54 = vector.broadcast %c0_i32_27 : i32 to vector<16x1xi32>
    %55 = arith.cmpi eq, %31, %54 : vector<16x1xi32>
    %cst_28 = arith.constant 0.000000e+00 : f32
    %56 = vector.broadcast %cst_28 : f32 to vector<16x1xf32>
    %57 = arith.select %55, %52, %56 : vector<16x1xi1>, vector<16x1xf32>
    %cst_29 = arith.constant dense<0.000000e+00> : vector<1xf32>
    %58 = vector.multi_reduction <add>, %57, %cst_29 [0] : vector<16x1xf32> to vector<1xf32>
    %59 = vector.shape_cast %58 : vector<1xf32> to vector<1x1xf32>
    %60 = vector.shape_cast %59 : vector<1x1xf32> to vector<1x1xf32>
    %61 = vector.broadcast %60 : vector<1x1xf32> to vector<16x1xf32>
    %62 = arith.select %55, %61, %53 : vector<16x1xi1>, vector<16x1xf32>
    %c1_i32_30 = arith.constant 1 : i32
    %63 = vector.broadcast %c1_i32_30 : i32 to vector<16x1xi32>
    %64 = arith.cmpi eq, %31, %63 : vector<16x1xi32>
    %cst_31 = arith.constant 0.000000e+00 : f32
    %65 = vector.broadcast %cst_31 : f32 to vector<16x1xf32>
    %66 = arith.select %64, %52, %65 : vector<16x1xi1>, vector<16x1xf32>
    %cst_32 = arith.constant dense<0.000000e+00> : vector<1xf32>
    %67 = vector.multi_reduction <add>, %66, %cst_32 [0] : vector<16x1xf32> to vector<1xf32>
    %68 = vector.shape_cast %67 : vector<1xf32> to vector<1x1xf32>
    %69 = vector.shape_cast %68 : vector<1x1xf32> to vector<1x1xf32>
    %70 = vector.broadcast %69 : vector<1x1xf32> to vector<16x1xf32>
    %71 = arith.select %64, %70, %62 : vector<16x1xi1>, vector<16x1xf32>
    %72 = arith.divf %52, %71 : vector<16x1xf32>
    %73 = vector.broadcast %72 : vector<16x1xf32> to vector<16x32xf32>
    %74 = arith.mulf %0, %73 : vector<16x32xf32>
    %75 = arith.mulf %1, %74 : vector<16x32xf32>
    %76 = tpu.concatenate %1, %74, %75 in 1 : vector<16x32xf32>, vector<16x32xf32>, vector<16x32xf32> -> vector<16x96xf32>
    %cst_33 = arith.constant dense<0.000000e+00> : vector<16x32xf32>
    %77 = tpu.matmul %76, %4, %cst_33 {dimension_numbers = #tpu.dot_dimension_numbers<[1], [0], [0], [1], [0, 0, 1, 1], [], []>} : vector<16x96xf32>, vector<96x32xf32>, vector<16x32xf32> -> vector<16x32xf32>
    %78 = vector.broadcast %5 : vector<1x32xf32> to vector<16x32xf32>
    %79 = arith.addf %77, %78 : vector<16x32xf32>
    %cst_34 = arith.constant 0.000000e+00 : f32
    %80 = vector.broadcast %cst_34 : f32 to vector<16x32xf32>
    %81 = arith.maximumf %79, %80 : vector<16x32xf32>
    %cst_35 = arith.constant dense<0.000000e+00> : vector<16xf32>
    %82 = vector.multi_reduction <add>, %81, %cst_35 [1] : vector<16x32xf32> to vector<16xf32>
    %83 = vector.shape_cast %82 : vector<16xf32> to vector<16x1xf32>
    %cst_36 = arith.constant 3.200000e+01 : f32
    %84 = vector.broadcast %cst_36 : f32 to vector<16x1xf32>
    %85 = arith.divf %83, %84 : vector<16x1xf32>
    %86 = vector.broadcast %85 : vector<16x1xf32> to vector<16x32xf32>
    %87 = arith.subf %81, %86 : vector<16x32xf32>
    %88 = arith.mulf %87, %87 : vector<16x32xf32>
    %cst_37 = arith.constant dense<0.000000e+00> : vector<16xf32>
    %89 = vector.multi_reduction <add>, %88, %cst_37 [1] : vector<16x32xf32> to vector<16xf32>
    %90 = vector.shape_cast %89 : vector<16xf32> to vector<16x1xf32>
    %cst_38 = arith.constant 3.200000e+01 : f32
    %91 = vector.broadcast %cst_38 : f32 to vector<16x1xf32>
    %92 = arith.divf %90, %91 : vector<16x1xf32>
    %93 = vector.broadcast %85 : vector<16x1xf32> to vector<16x32xf32>
    %94 = arith.subf %81, %93 : vector<16x32xf32>
    %cst_39 = arith.constant 9.99999974E-6 : f32
    %95 = vector.broadcast %cst_39 : f32 to vector<16x1xf32>
    %96 = arith.addf %92, %95 : vector<16x1xf32>
    %97 = math.rsqrt %96 : vector<16x1xf32>
    %98 = vector.broadcast %97 : vector<16x1xf32> to vector<16x32xf32>
    %99 = arith.mulf %94, %98 : vector<16x32xf32>
    %100 = vector.broadcast %6 : vector<1x32xf32> to vector<16x32xf32>
    %101 = arith.mulf %99, %100 : vector<16x32xf32>
    %102 = vector.broadcast %7 : vector<1x32xf32> to vector<16x32xf32>
    %103 = arith.addf %101, %102 : vector<16x32xf32>
    %c0_40 = arith.constant 0 : index
    %c0_41 = arith.constant 0 : index
    %104 = vector.load %arg8[%c0_40, %c0_41] : memref<32x16xf32, #tpu.memory_space<vmem>>, vector<32x16xf32>
    %c0_42 = arith.constant 0 : index
    %c0_43 = arith.constant 0 : index
    %105 = vector.load %arg9[%c0_42, %c0_43] : memref<1x16xf32, #tpu.memory_space<vmem>>, vector<1x16xf32>
    %c0_44 = arith.constant 0 : index
    %c0_45 = arith.constant 0 : index
    %106 = vector.load %arg10[%c0_44, %c0_45] : memref<96x32xf32, #tpu.memory_space<vmem>>, vector<96x32xf32>
    %c0_46 = arith.constant 0 : index
    %c0_47 = arith.constant 0 : index
    %107 = vector.load %arg11[%c0_46, %c0_47] : memref<1x32xf32, #tpu.memory_space<vmem>>, vector<1x32xf32>
    %c0_48 = arith.constant 0 : index
    %c0_49 = arith.constant 0 : index
    %108 = vector.load %arg12[%c0_48, %c0_49] : memref<1x32xf32, #tpu.memory_space<vmem>>, vector<1x32xf32>
    %c0_50 = arith.constant 0 : index
    %c0_51 = arith.constant 0 : index
    %109 = vector.load %arg13[%c0_50, %c0_51] : memref<1x32xf32, #tpu.memory_space<vmem>>, vector<1x32xf32>
    %110 = arith.mulf %103, %0 : vector<16x32xf32>
    %cst_52 = arith.constant dense<0.000000e+00> : vector<16x16xf32>
    %111 = tpu.matmul %110, %104, %cst_52 {dimension_numbers = #tpu.dot_dimension_numbers<[1], [0], [0], [1], [0, 0, 1, 1], [], []>} : vector<16x32xf32>, vector<32x16xf32>, vector<16x16xf32> -> vector<16x16xf32>
    %112 = math.tanh %111 : vector<16x16xf32>
    %113 = vector.broadcast %105 : vector<1x16xf32> to vector<16x16xf32>
    %114 = arith.mulf %112, %113 : vector<16x16xf32>
    %cst_53 = arith.constant dense<0.000000e+00> : vector<16xf32>
    %115 = vector.multi_reduction <add>, %114, %cst_53 [1] : vector<16x16xf32> to vector<16xf32>
    %116 = vector.shape_cast %115 : vector<16xf32> to vector<16x1xf32>
    %117 = tpu.iota {dimensions = array<i32: 0>} : vector<16x1xi32>
    %c2_i32_54 = arith.constant 2 : i32
    %c0_i32_55 = arith.constant 0 : i32
    %118 = arith.cmpi eq, %c2_i32_54, %c0_i32_55 : i32
    %c1_i32_56 = arith.constant 1 : i32
    %119 = arith.select %118, %c1_i32_56, %c2_i32_54 : i32
    %120 = vector.broadcast %119 : i32 to vector<16x1xi32>
    %121 = arith.remsi %117, %120 : vector<16x1xi32>
    %c0_i32_57 = arith.constant 0 : i32
    %122 = vector.broadcast %c0_i32_57 : i32 to vector<16x1xi32>
    %123 = arith.cmpi ne, %121, %122 : vector<16x1xi32>
    %c0_i32_58 = arith.constant 0 : i32
    %124 = vector.broadcast %c0_i32_58 : i32 to vector<16x1xi32>
    %125 = arith.cmpi slt, %121, %124 : vector<16x1xi32>
    %c0_i32_59 = arith.constant 0 : i32
    %126 = arith.cmpi slt, %119, %c0_i32_59 : i32
    %127 = vector.broadcast %126 : i1 to vector<16x1xi1>
    %128 = vector.broadcast %127 : vector<16x1xi1> to vector<16x1xi1>
    %129 = arith.xori %125, %128 : vector<16x1xi1>
    %130 = arith.andi %129, %123 : vector<16x1xi1>
    %131 = vector.broadcast %119 : i32 to vector<16x1xi32>
    %132 = arith.addi %121, %131 : vector<16x1xi32>
    %133 = arith.select %130, %132, %121 : vector<16x1xi1>, vector<16x1xi32>
    %cst_60 = arith.constant 0.000000e+00 : f32
    %134 = vector.broadcast %cst_60 : f32 to vector<16x1xf32>
    %c0_i32_61 = arith.constant 0 : i32
    %135 = vector.broadcast %c0_i32_61 : i32 to vector<16x1xi32>
    %136 = arith.cmpi eq, %133, %135 : vector<16x1xi32>
    %cst_62 = arith.constant 0xFF800000 : f32
    %137 = vector.broadcast %cst_62 : f32 to vector<16x1xf32>
    %138 = arith.select %136, %116, %137 : vector<16x1xi1>, vector<16x1xf32>
    %cst_63 = arith.constant dense<0xFF800000> : vector<1xf32>
    %139 = vector.multi_reduction <maximumf>, %138, %cst_63 [0] : vector<16x1xf32> to vector<1xf32>
    %140 = vector.shape_cast %139 : vector<1xf32> to vector<1x1xf32>
    %141 = vector.shape_cast %140 : vector<1x1xf32> to vector<1x1xf32>
    %142 = vector.broadcast %141 : vector<1x1xf32> to vector<16x1xf32>
    %143 = arith.select %136, %142, %134 : vector<16x1xi1>, vector<16x1xf32>
    %c1_i32_64 = arith.constant 1 : i32
    %144 = vector.broadcast %c1_i32_64 : i32 to vector<16x1xi32>
    %145 = arith.cmpi eq, %133, %144 : vector<16x1xi32>
    %cst_65 = arith.constant 0xFF800000 : f32
    %146 = vector.broadcast %cst_65 : f32 to vector<16x1xf32>
    %147 = arith.select %145, %116, %146 : vector<16x1xi1>, vector<16x1xf32>
    %cst_66 = arith.constant dense<0xFF800000> : vector<1xf32>
    %148 = vector.multi_reduction <maximumf>, %147, %cst_66 [0] : vector<16x1xf32> to vector<1xf32>
    %149 = vector.shape_cast %148 : vector<1xf32> to vector<1x1xf32>
    %150 = vector.shape_cast %149 : vector<1x1xf32> to vector<1x1xf32>
    %151 = vector.broadcast %150 : vector<1x1xf32> to vector<16x1xf32>
    %152 = arith.select %145, %151, %143 : vector<16x1xi1>, vector<16x1xf32>
    %153 = arith.subf %116, %152 : vector<16x1xf32>
    %154 = math.exp %153 : vector<16x1xf32>
    %cst_67 = arith.constant 1.000000e+00 : f32
    %155 = vector.broadcast %cst_67 : f32 to vector<16x1xf32>
    %c0_i32_68 = arith.constant 0 : i32
    %156 = vector.broadcast %c0_i32_68 : i32 to vector<16x1xi32>
    %157 = arith.cmpi eq, %133, %156 : vector<16x1xi32>
    %cst_69 = arith.constant 0.000000e+00 : f32
    %158 = vector.broadcast %cst_69 : f32 to vector<16x1xf32>
    %159 = arith.select %157, %154, %158 : vector<16x1xi1>, vector<16x1xf32>
    %cst_70 = arith.constant dense<0.000000e+00> : vector<1xf32>
    %160 = vector.multi_reduction <add>, %159, %cst_70 [0] : vector<16x1xf32> to vector<1xf32>
    %161 = vector.shape_cast %160 : vector<1xf32> to vector<1x1xf32>
    %162 = vector.shape_cast %161 : vector<1x1xf32> to vector<1x1xf32>
    %163 = vector.broadcast %162 : vector<1x1xf32> to vector<16x1xf32>
    %164 = arith.select %157, %163, %155 : vector<16x1xi1>, vector<16x1xf32>
    %c1_i32_71 = arith.constant 1 : i32
    %165 = vector.broadcast %c1_i32_71 : i32 to vector<16x1xi32>
    %166 = arith.cmpi eq, %133, %165 : vector<16x1xi32>
    %cst_72 = arith.constant 0.000000e+00 : f32
    %167 = vector.broadcast %cst_72 : f32 to vector<16x1xf32>
    %168 = arith.select %166, %154, %167 : vector<16x1xi1>, vector<16x1xf32>
    %cst_73 = arith.constant dense<0.000000e+00> : vector<1xf32>
    %169 = vector.multi_reduction <add>, %168, %cst_73 [0] : vector<16x1xf32> to vector<1xf32>
    %170 = vector.shape_cast %169 : vector<1xf32> to vector<1x1xf32>
    %171 = vector.shape_cast %170 : vector<1x1xf32> to vector<1x1xf32>
    %172 = vector.broadcast %171 : vector<1x1xf32> to vector<16x1xf32>
    %173 = arith.select %166, %172, %164 : vector<16x1xi1>, vector<16x1xf32>
    %174 = arith.divf %154, %173 : vector<16x1xf32>
    %175 = vector.broadcast %174 : vector<16x1xf32> to vector<16x32xf32>
    %176 = arith.mulf %103, %175 : vector<16x32xf32>
    %177 = arith.mulf %0, %176 : vector<16x32xf32>
    %178 = tpu.concatenate %0, %176, %177 in 1 : vector<16x32xf32>, vector<16x32xf32>, vector<16x32xf32> -> vector<16x96xf32>
    %cst_74 = arith.constant dense<0.000000e+00> : vector<16x32xf32>
    %179 = tpu.matmul %178, %106, %cst_74 {dimension_numbers = #tpu.dot_dimension_numbers<[1], [0], [0], [1], [0, 0, 1, 1], [], []>} : vector<16x96xf32>, vector<96x32xf32>, vector<16x32xf32> -> vector<16x32xf32>
    %180 = vector.broadcast %107 : vector<1x32xf32> to vector<16x32xf32>
    %181 = arith.addf %179, %180 : vector<16x32xf32>
    %cst_75 = arith.constant 0.000000e+00 : f32
    %182 = vector.broadcast %cst_75 : f32 to vector<16x32xf32>
    %183 = arith.maximumf %181, %182 : vector<16x32xf32>
    %cst_76 = arith.constant dense<0.000000e+00> : vector<16xf32>
    %184 = vector.multi_reduction <add>, %183, %cst_76 [1] : vector<16x32xf32> to vector<16xf32>
    %185 = vector.shape_cast %184 : vector<16xf32> to vector<16x1xf32>
    %cst_77 = arith.constant 3.200000e+01 : f32
    %186 = vector.broadcast %cst_77 : f32 to vector<16x1xf32>
    %187 = arith.divf %185, %186 : vector<16x1xf32>
    %188 = vector.broadcast %187 : vector<16x1xf32> to vector<16x32xf32>
    %189 = arith.subf %183, %188 : vector<16x32xf32>
    %190 = arith.mulf %189, %189 : vector<16x32xf32>
    %cst_78 = arith.constant dense<0.000000e+00> : vector<16xf32>
    %191 = vector.multi_reduction <add>, %190, %cst_78 [1] : vector<16x32xf32> to vector<16xf32>
    %192 = vector.shape_cast %191 : vector<16xf32> to vector<16x1xf32>
    %cst_79 = arith.constant 3.200000e+01 : f32
    %193 = vector.broadcast %cst_79 : f32 to vector<16x1xf32>
    %194 = arith.divf %192, %193 : vector<16x1xf32>
    %195 = vector.broadcast %187 : vector<16x1xf32> to vector<16x32xf32>
    %196 = arith.subf %183, %195 : vector<16x32xf32>
    %cst_80 = arith.constant 9.99999974E-6 : f32
    %197 = vector.broadcast %cst_80 : f32 to vector<16x1xf32>
    %198 = arith.addf %194, %197 : vector<16x1xf32>
    %199 = math.rsqrt %198 : vector<16x1xf32>
    %200 = vector.broadcast %199 : vector<16x1xf32> to vector<16x32xf32>
    %201 = arith.mulf %196, %200 : vector<16x32xf32>
    %202 = vector.broadcast %108 : vector<1x32xf32> to vector<16x32xf32>
    %203 = arith.mulf %201, %202 : vector<16x32xf32>
    %204 = vector.broadcast %109 : vector<1x32xf32> to vector<16x32xf32>
    %205 = arith.addf %203, %204 : vector<16x32xf32>
    %206 = tpu.concatenate %0, %205 in 1 : vector<16x32xf32>, vector<16x32xf32> -> vector<16x64xf32>
    %207 = tpu.concatenate %1, %103 in 1 : vector<16x32xf32>, vector<16x32xf32> -> vector<16x64xf32>
    %c0_81 = arith.constant 0 : index
    %c0_82 = arith.constant 0 : index
    %208 = vector.load %arg14[%c0_81, %c0_82] : memref<64x128xf32, #tpu.memory_space<vmem>>, vector<64x128xf32>
    %c0_83 = arith.constant 0 : index
    %c0_84 = arith.constant 0 : index
    %209 = vector.load %arg15[%c0_83, %c0_84] : memref<1x128xf32, #tpu.memory_space<vmem>>, vector<1x128xf32>
    %c0_85 = arith.constant 0 : index
    %c0_86 = arith.constant 0 : index
    %210 = vector.load %arg16[%c0_85, %c0_86] : memref<16x64xf32, #tpu.memory_space<vmem>>, vector<16x64xf32>
    %c0_87 = arith.constant 0 : index
    %c0_88 = arith.constant 0 : index
    %211 = vector.load %arg17[%c0_87, %c0_88] : memref<16x64xf32, #tpu.memory_space<vmem>>, vector<16x64xf32>
    %cst_89 = arith.constant dense<0.000000e+00> : vector<16x128xf32>
    %212 = tpu.matmul %206, %208, %cst_89 {dimension_numbers = #tpu.dot_dimension_numbers<[1], [0], [0], [1], [0, 0, 1, 1], [], []>} : vector<16x64xf32>, vector<64x128xf32>, vector<16x128xf32> -> vector<16x128xf32>
    %213 = vector.broadcast %209 : vector<1x128xf32> to vector<16x128xf32>
    %214 = arith.addf %212, %213 : vector<16x128xf32>
    %cst_90 = arith.constant dense<0.000000e+00> : vector<16x128xf32>
    %215 = tpu.matmul %207, %208, %cst_90 {dimension_numbers = #tpu.dot_dimension_numbers<[1], [0], [0], [1], [0, 0, 1, 1], [], []>} : vector<16x64xf32>, vector<64x128xf32>, vector<16x128xf32> -> vector<16x128xf32>
    %216 = vector.broadcast %209 : vector<1x128xf32> to vector<16x128xf32>
    %217 = arith.addf %215, %216 : vector<16x128xf32>
    %cst_91 = arith.constant 0.000000e+00 : f32
    %218 = vector.broadcast %cst_91 : f32 to vector<4x16xf32>
    %cst_92 = arith.constant 0.000000e+00 : f32
    %219 = vector.broadcast %cst_92 : f32 to vector<4x16xf32>
    %cst_93 = arith.constant 0.000000e+00 : f32
    %220 = vector.broadcast %cst_93 : f32 to vector<4x16xf32>
    %cst_94 = arith.constant 0.000000e+00 : f32
    %221 = vector.broadcast %cst_94 : f32 to vector<4x16xf32>
    %cst_95 = arith.constant dense<0.000000e+00> : vector<4x64xf32>
    %222 = tpu.matmul %218, %210, %cst_95 {dimension_numbers = #tpu.dot_dimension_numbers<[1], [0], [0], [1], [0, 0, 1, 1], [], []>} : vector<4x16xf32>, vector<16x64xf32>, vector<4x64xf32> -> vector<4x64xf32>
    %cst_96 = arith.constant dense<0.000000e+00> : vector<4x64xf32>
    %223 = tpu.matmul %219, %211, %cst_96 {dimension_numbers = #tpu.dot_dimension_numbers<[1], [0], [0], [1], [0, 0, 1, 1], [], []>} : vector<4x16xf32>, vector<16x64xf32>, vector<4x64xf32> -> vector<4x64xf32>
    %224 = vector.extract_strided_slice %214 {offsets = [0, 0], sizes = [2, 64], strides = [1, 1]} : vector<16x128xf32> to vector<2x64xf32>
    %225 = vector.extract_strided_slice %217 {offsets = [0, 0], sizes = [2, 64], strides = [1, 1]} : vector<16x128xf32> to vector<2x64xf32>
    %226 = tpu.concatenate %224, %225 in 0 : vector<2x64xf32>, vector<2x64xf32> -> vector<4x64xf32>
    %227 = arith.addf %222, %226 : vector<4x64xf32>
    %228 = vector.extract_strided_slice %214 {offsets = [14, 64], sizes = [2, 64], strides = [1, 1]} : vector<16x128xf32> to vector<2x64xf32>
    %229 = vector.extract_strided_slice %217 {offsets = [14, 64], sizes = [2, 64], strides = [1, 1]} : vector<16x128xf32> to vector<2x64xf32>
    %230 = tpu.concatenate %228, %229 in 0 : vector<2x64xf32>, vector<2x64xf32> -> vector<4x64xf32>
    %231 = arith.addf %223, %230 : vector<4x64xf32>
    %232 = vector.extract_strided_slice %227 {offsets = [0, 0], sizes = [4, 16], strides = [1, 1]} : vector<4x64xf32> to vector<4x16xf32>
    %233 = arith.negf %232 : vector<4x16xf32>
    %234 = math.exp %233 : vector<4x16xf32>
    %cst_97 = arith.constant 1.000000e+00 : f32
    %235 = vector.broadcast %cst_97 : f32 to vector<4x16xf32>
    %236 = arith.addf %235, %234 : vector<4x16xf32>
    %237 = arith.divf %235, %236 : vector<4x16xf32>
    %238 = vector.extract_strided_slice %227 {offsets = [0, 16], sizes = [4, 16], strides = [1, 1]} : vector<4x64xf32> to vector<4x16xf32>
    %239 = arith.negf %238 : vector<4x16xf32>
    %240 = math.exp %239 : vector<4x16xf32>
    %cst_98 = arith.constant 1.000000e+00 : f32
    %241 = vector.broadcast %cst_98 : f32 to vector<4x16xf32>
    %242 = arith.addf %241, %240 : vector<4x16xf32>
    %243 = arith.divf %241, %242 : vector<4x16xf32>
    %244 = vector.extract_strided_slice %227 {offsets = [0, 32], sizes = [4, 16], strides = [1, 1]} : vector<4x64xf32> to vector<4x16xf32>
    %245 = math.tanh %244 : vector<4x16xf32>
    %246 = vector.extract_strided_slice %227 {offsets = [0, 48], sizes = [4, 16], strides = [1, 1]} : vector<4x64xf32> to vector<4x16xf32>
    %247 = arith.negf %246 : vector<4x16xf32>
    %248 = math.exp %247 : vector<4x16xf32>
    %cst_99 = arith.constant 1.000000e+00 : f32
    %249 = vector.broadcast %cst_99 : f32 to vector<4x16xf32>
    %250 = arith.addf %249, %248 : vector<4x16xf32>
    %251 = arith.divf %249, %250 : vector<4x16xf32>
    %252 = vector.extract_strided_slice %231 {offsets = [0, 0], sizes = [4, 16], strides = [1, 1]} : vector<4x64xf32> to vector<4x16xf32>
    %253 = arith.negf %252 : vector<4x16xf32>
    %254 = math.exp %253 : vector<4x16xf32>
    %cst_100 = arith.constant 1.000000e+00 : f32
    %255 = vector.broadcast %cst_100 : f32 to vector<4x16xf32>
    %256 = arith.addf %255, %254 : vector<4x16xf32>
    %257 = arith.divf %255, %256 : vector<4x16xf32>
    %258 = vector.extract_strided_slice %231 {offsets = [0, 16], sizes = [4, 16], strides = [1, 1]} : vector<4x64xf32> to vector<4x16xf32>
    %259 = arith.negf %258 : vector<4x16xf32>
    %260 = math.exp %259 : vector<4x16xf32>
    %cst_101 = arith.constant 1.000000e+00 : f32
    %261 = vector.broadcast %cst_101 : f32 to vector<4x16xf32>
    %262 = arith.addf %261, %260 : vector<4x16xf32>
    %263 = arith.divf %261, %262 : vector<4x16xf32>
    %264 = vector.extract_strided_slice %231 {offsets = [0, 32], sizes = [4, 16], strides = [1, 1]} : vector<4x64xf32> to vector<4x16xf32>
    %265 = math.tanh %264 : vector<4x16xf32>
    %266 = vector.extract_strided_slice %231 {offsets = [0, 48], sizes = [4, 16], strides = [1, 1]} : vector<4x64xf32> to vector<4x16xf32>
    %267 = arith.negf %266 : vector<4x16xf32>
    %268 = math.exp %267 : vector<4x16xf32>
    %cst_102 = arith.constant 1.000000e+00 : f32
    %269 = vector.broadcast %cst_102 : f32 to vector<4x16xf32>
    %270 = arith.addf %269, %268 : vector<4x16xf32>
    %271 = arith.divf %269, %270 : vector<4x16xf32>
    %272 = arith.mulf %243, %220 : vector<4x16xf32>
    %273 = arith.mulf %237, %245 : vector<4x16xf32>
    %274 = arith.addf %272, %273 : vector<4x16xf32>
    %275 = arith.mulf %263, %221 : vector<4x16xf32>
    %276 = arith.mulf %257, %265 : vector<4x16xf32>
    %277 = arith.addf %275, %276 : vector<4x16xf32>
    %278 = math.tanh %274 : vector<4x16xf32>
    %279 = arith.mulf %251, %278 : vector<4x16xf32>
    %280 = math.tanh %277 : vector<4x16xf32>
    %281 = arith.mulf %271, %280 : vector<4x16xf32>
    %cst_103 = arith.constant dense<0.000000e+00> : vector<4x64xf32>
    %282 = tpu.matmul %279, %210, %cst_103 {dimension_numbers = #tpu.dot_dimension_numbers<[1], [0], [0], [1], [0, 0, 1, 1], [], []>} : vector<4x16xf32>, vector<16x64xf32>, vector<4x64xf32> -> vector<4x64xf32>
    %cst_104 = arith.constant dense<0.000000e+00> : vector<4x64xf32>
    %283 = tpu.matmul %281, %211, %cst_104 {dimension_numbers = #tpu.dot_dimension_numbers<[1], [0], [0], [1], [0, 0, 1, 1], [], []>} : vector<4x16xf32>, vector<16x64xf32>, vector<4x64xf32> -> vector<4x64xf32>
    %284 = vector.extract_strided_slice %214 {offsets = [2, 0], sizes = [2, 64], strides = [1, 1]} : vector<16x128xf32> to vector<2x64xf32>
    %285 = vector.extract_strided_slice %217 {offsets = [2, 0], sizes = [2, 64], strides = [1, 1]} : vector<16x128xf32> to vector<2x64xf32>
    %286 = tpu.concatenate %284, %285 in 0 : vector<2x64xf32>, vector<2x64xf32> -> vector<4x64xf32>
    %287 = arith.addf %282, %286 : vector<4x64xf32>
    %288 = vector.extract_strided_slice %214 {offsets = [12, 64], sizes = [2, 64], strides = [1, 1]} : vector<16x128xf32> to vector<2x64xf32>
    %289 = vector.extract_strided_slice %217 {offsets = [12, 64], sizes = [2, 64], strides = [1, 1]} : vector<16x128xf32> to vector<2x64xf32>
    %290 = tpu.concatenate %288, %289 in 0 : vector<2x64xf32>, vector<2x64xf32> -> vector<4x64xf32>
    %291 = arith.addf %283, %290 : vector<4x64xf32>
    %292 = vector.extract_strided_slice %287 {offsets = [0, 0], sizes = [4, 16], strides = [1, 1]} : vector<4x64xf32> to vector<4x16xf32>
    %293 = arith.negf %292 : vector<4x16xf32>
    %294 = math.exp %293 : vector<4x16xf32>
    %cst_105 = arith.constant 1.000000e+00 : f32
    %295 = vector.broadcast %cst_105 : f32 to vector<4x16xf32>
    %296 = arith.addf %295, %294 : vector<4x16xf32>
    %297 = arith.divf %295, %296 : vector<4x16xf32>
    %298 = vector.extract_strided_slice %287 {offsets = [0, 16], sizes = [4, 16], strides = [1, 1]} : vector<4x64xf32> to vector<4x16xf32>
    %299 = arith.negf %298 : vector<4x16xf32>
    %300 = math.exp %299 : vector<4x16xf32>
    %cst_106 = arith.constant 1.000000e+00 : f32
    %301 = vector.broadcast %cst_106 : f32 to vector<4x16xf32>
    %302 = arith.addf %301, %300 : vector<4x16xf32>
    %303 = arith.divf %301, %302 : vector<4x16xf32>
    %304 = vector.extract_strided_slice %287 {offsets = [0, 32], sizes = [4, 16], strides = [1, 1]} : vector<4x64xf32> to vector<4x16xf32>
    %305 = math.tanh %304 : vector<4x16xf32>
    %306 = vector.extract_strided_slice %287 {offsets = [0, 48], sizes = [4, 16], strides = [1, 1]} : vector<4x64xf32> to vector<4x16xf32>
    %307 = arith.negf %306 : vector<4x16xf32>
    %308 = math.exp %307 : vector<4x16xf32>
    %cst_107 = arith.constant 1.000000e+00 : f32
    %309 = vector.broadcast %cst_107 : f32 to vector<4x16xf32>
    %310 = arith.addf %309, %308 : vector<4x16xf32>
    %311 = arith.divf %309, %310 : vector<4x16xf32>
    %312 = vector.extract_strided_slice %291 {offsets = [0, 0], sizes = [4, 16], strides = [1, 1]} : vector<4x64xf32> to vector<4x16xf32>
    %313 = arith.negf %312 : vector<4x16xf32>
    %314 = math.exp %313 : vector<4x16xf32>
    %cst_108 = arith.constant 1.000000e+00 : f32
    %315 = vector.broadcast %cst_108 : f32 to vector<4x16xf32>
    %316 = arith.addf %315, %314 : vector<4x16xf32>
    %317 = arith.divf %315, %316 : vector<4x16xf32>
    %318 = vector.extract_strided_slice %291 {offsets = [0, 16], sizes = [4, 16], strides = [1, 1]} : vector<4x64xf32> to vector<4x16xf32>
    %319 = arith.negf %318 : vector<4x16xf32>
    %320 = math.exp %319 : vector<4x16xf32>
    %cst_109 = arith.constant 1.000000e+00 : f32
    %321 = vector.broadcast %cst_109 : f32 to vector<4x16xf32>
    %322 = arith.addf %321, %320 : vector<4x16xf32>
    %323 = arith.divf %321, %322 : vector<4x16xf32>
    %324 = vector.extract_strided_slice %291 {offsets = [0, 32], sizes = [4, 16], strides = [1, 1]} : vector<4x64xf32> to vector<4x16xf32>
    %325 = math.tanh %324 : vector<4x16xf32>
    %326 = vector.extract_strided_slice %291 {offsets = [0, 48], sizes = [4, 16], strides = [1, 1]} : vector<4x64xf32> to vector<4x16xf32>
    %327 = arith.negf %326 : vector<4x16xf32>
    %328 = math.exp %327 : vector<4x16xf32>
    %cst_110 = arith.constant 1.000000e+00 : f32
    %329 = vector.broadcast %cst_110 : f32 to vector<4x16xf32>
    %330 = arith.addf %329, %328 : vector<4x16xf32>
    %331 = arith.divf %329, %330 : vector<4x16xf32>
    %332 = arith.mulf %303, %274 : vector<4x16xf32>
    %333 = arith.mulf %297, %305 : vector<4x16xf32>
    %334 = arith.addf %332, %333 : vector<4x16xf32>
    %335 = arith.mulf %323, %277 : vector<4x16xf32>
    %336 = arith.mulf %317, %325 : vector<4x16xf32>
    %337 = arith.addf %335, %336 : vector<4x16xf32>
    %338 = math.tanh %334 : vector<4x16xf32>
    %339 = arith.mulf %311, %338 : vector<4x16xf32>
    %340 = math.tanh %337 : vector<4x16xf32>
    %341 = arith.mulf %331, %340 : vector<4x16xf32>
    %cst_111 = arith.constant dense<0.000000e+00> : vector<4x64xf32>
    %342 = tpu.matmul %339, %210, %cst_111 {dimension_numbers = #tpu.dot_dimension_numbers<[1], [0], [0], [1], [0, 0, 1, 1], [], []>} : vector<4x16xf32>, vector<16x64xf32>, vector<4x64xf32> -> vector<4x64xf32>
    %cst_112 = arith.constant dense<0.000000e+00> : vector<4x64xf32>
    %343 = tpu.matmul %341, %211, %cst_112 {dimension_numbers = #tpu.dot_dimension_numbers<[1], [0], [0], [1], [0, 0, 1, 1], [], []>} : vector<4x16xf32>, vector<16x64xf32>, vector<4x64xf32> -> vector<4x64xf32>
    %344 = vector.extract_strided_slice %214 {offsets = [4, 0], sizes = [2, 64], strides = [1, 1]} : vector<16x128xf32> to vector<2x64xf32>
    %345 = vector.extract_strided_slice %217 {offsets = [4, 0], sizes = [2, 64], strides = [1, 1]} : vector<16x128xf32> to vector<2x64xf32>
    %346 = tpu.concatenate %344, %345 in 0 : vector<2x64xf32>, vector<2x64xf32> -> vector<4x64xf32>
    %347 = arith.addf %342, %346 : vector<4x64xf32>
    %348 = vector.extract_strided_slice %214 {offsets = [10, 64], sizes = [2, 64], strides = [1, 1]} : vector<16x128xf32> to vector<2x64xf32>
    %349 = vector.extract_strided_slice %217 {offsets = [10, 64], sizes = [2, 64], strides = [1, 1]} : vector<16x128xf32> to vector<2x64xf32>
    %350 = tpu.concatenate %348, %349 in 0 : vector<2x64xf32>, vector<2x64xf32> -> vector<4x64xf32>
    %351 = arith.addf %343, %350 : vector<4x64xf32>
    %352 = vector.extract_strided_slice %347 {offsets = [0, 0], sizes = [4, 16], strides = [1, 1]} : vector<4x64xf32> to vector<4x16xf32>
    %353 = arith.negf %352 : vector<4x16xf32>
    %354 = math.exp %353 : vector<4x16xf32>
    %cst_113 = arith.constant 1.000000e+00 : f32
    %355 = vector.broadcast %cst_113 : f32 to vector<4x16xf32>
    %356 = arith.addf %355, %354 : vector<4x16xf32>
    %357 = arith.divf %355, %356 : vector<4x16xf32>
    %358 = vector.extract_strided_slice %347 {offsets = [0, 16], sizes = [4, 16], strides = [1, 1]} : vector<4x64xf32> to vector<4x16xf32>
    %359 = arith.negf %358 : vector<4x16xf32>
    %360 = math.exp %359 : vector<4x16xf32>
    %cst_114 = arith.constant 1.000000e+00 : f32
    %361 = vector.broadcast %cst_114 : f32 to vector<4x16xf32>
    %362 = arith.addf %361, %360 : vector<4x16xf32>
    %363 = arith.divf %361, %362 : vector<4x16xf32>
    %364 = vector.extract_strided_slice %347 {offsets = [0, 32], sizes = [4, 16], strides = [1, 1]} : vector<4x64xf32> to vector<4x16xf32>
    %365 = math.tanh %364 : vector<4x16xf32>
    %366 = vector.extract_strided_slice %347 {offsets = [0, 48], sizes = [4, 16], strides = [1, 1]} : vector<4x64xf32> to vector<4x16xf32>
    %367 = arith.negf %366 : vector<4x16xf32>
    %368 = math.exp %367 : vector<4x16xf32>
    %cst_115 = arith.constant 1.000000e+00 : f32
    %369 = vector.broadcast %cst_115 : f32 to vector<4x16xf32>
    %370 = arith.addf %369, %368 : vector<4x16xf32>
    %371 = arith.divf %369, %370 : vector<4x16xf32>
    %372 = vector.extract_strided_slice %351 {offsets = [0, 0], sizes = [4, 16], strides = [1, 1]} : vector<4x64xf32> to vector<4x16xf32>
    %373 = arith.negf %372 : vector<4x16xf32>
    %374 = math.exp %373 : vector<4x16xf32>
    %cst_116 = arith.constant 1.000000e+00 : f32
    %375 = vector.broadcast %cst_116 : f32 to vector<4x16xf32>
    %376 = arith.addf %375, %374 : vector<4x16xf32>
    %377 = arith.divf %375, %376 : vector<4x16xf32>
    %378 = vector.extract_strided_slice %351 {offsets = [0, 16], sizes = [4, 16], strides = [1, 1]} : vector<4x64xf32> to vector<4x16xf32>
    %379 = arith.negf %378 : vector<4x16xf32>
    %380 = math.exp %379 : vector<4x16xf32>
    %cst_117 = arith.constant 1.000000e+00 : f32
    %381 = vector.broadcast %cst_117 : f32 to vector<4x16xf32>
    %382 = arith.addf %381, %380 : vector<4x16xf32>
    %383 = arith.divf %381, %382 : vector<4x16xf32>
    %384 = vector.extract_strided_slice %351 {offsets = [0, 32], sizes = [4, 16], strides = [1, 1]} : vector<4x64xf32> to vector<4x16xf32>
    %385 = math.tanh %384 : vector<4x16xf32>
    %386 = vector.extract_strided_slice %351 {offsets = [0, 48], sizes = [4, 16], strides = [1, 1]} : vector<4x64xf32> to vector<4x16xf32>
    %387 = arith.negf %386 : vector<4x16xf32>
    %388 = math.exp %387 : vector<4x16xf32>
    %cst_118 = arith.constant 1.000000e+00 : f32
    %389 = vector.broadcast %cst_118 : f32 to vector<4x16xf32>
    %390 = arith.addf %389, %388 : vector<4x16xf32>
    %391 = arith.divf %389, %390 : vector<4x16xf32>
    %392 = arith.mulf %363, %334 : vector<4x16xf32>
    %393 = arith.mulf %357, %365 : vector<4x16xf32>
    %394 = arith.addf %392, %393 : vector<4x16xf32>
    %395 = arith.mulf %383, %337 : vector<4x16xf32>
    %396 = arith.mulf %377, %385 : vector<4x16xf32>
    %397 = arith.addf %395, %396 : vector<4x16xf32>
    %398 = math.tanh %394 : vector<4x16xf32>
    %399 = arith.mulf %371, %398 : vector<4x16xf32>
    %400 = math.tanh %397 : vector<4x16xf32>
    %401 = arith.mulf %391, %400 : vector<4x16xf32>
    %cst_119 = arith.constant dense<0.000000e+00> : vector<4x64xf32>
    %402 = tpu.matmul %399, %210, %cst_119 {dimension_numbers = #tpu.dot_dimension_numbers<[1], [0], [0], [1], [0, 0, 1, 1], [], []>} : vector<4x16xf32>, vector<16x64xf32>, vector<4x64xf32> -> vector<4x64xf32>
    %cst_120 = arith.constant dense<0.000000e+00> : vector<4x64xf32>
    %403 = tpu.matmul %401, %211, %cst_120 {dimension_numbers = #tpu.dot_dimension_numbers<[1], [0], [0], [1], [0, 0, 1, 1], [], []>} : vector<4x16xf32>, vector<16x64xf32>, vector<4x64xf32> -> vector<4x64xf32>
    %404 = vector.extract_strided_slice %214 {offsets = [6, 0], sizes = [2, 64], strides = [1, 1]} : vector<16x128xf32> to vector<2x64xf32>
    %405 = vector.extract_strided_slice %217 {offsets = [6, 0], sizes = [2, 64], strides = [1, 1]} : vector<16x128xf32> to vector<2x64xf32>
    %406 = tpu.concatenate %404, %405 in 0 : vector<2x64xf32>, vector<2x64xf32> -> vector<4x64xf32>
    %407 = arith.addf %402, %406 : vector<4x64xf32>
    %408 = vector.extract_strided_slice %214 {offsets = [8, 64], sizes = [2, 64], strides = [1, 1]} : vector<16x128xf32> to vector<2x64xf32>
    %409 = vector.extract_strided_slice %217 {offsets = [8, 64], sizes = [2, 64], strides = [1, 1]} : vector<16x128xf32> to vector<2x64xf32>
    %410 = tpu.concatenate %408, %409 in 0 : vector<2x64xf32>, vector<2x64xf32> -> vector<4x64xf32>
    %411 = arith.addf %403, %410 : vector<4x64xf32>
    %412 = vector.extract_strided_slice %407 {offsets = [0, 0], sizes = [4, 16], strides = [1, 1]} : vector<4x64xf32> to vector<4x16xf32>
    %413 = arith.negf %412 : vector<4x16xf32>
    %414 = math.exp %413 : vector<4x16xf32>
    %cst_121 = arith.constant 1.000000e+00 : f32
    %415 = vector.broadcast %cst_121 : f32 to vector<4x16xf32>
    %416 = arith.addf %415, %414 : vector<4x16xf32>
    %417 = arith.divf %415, %416 : vector<4x16xf32>
    %418 = vector.extract_strided_slice %407 {offsets = [0, 16], sizes = [4, 16], strides = [1, 1]} : vector<4x64xf32> to vector<4x16xf32>
    %419 = arith.negf %418 : vector<4x16xf32>
    %420 = math.exp %419 : vector<4x16xf32>
    %cst_122 = arith.constant 1.000000e+00 : f32
    %421 = vector.broadcast %cst_122 : f32 to vector<4x16xf32>
    %422 = arith.addf %421, %420 : vector<4x16xf32>
    %423 = arith.divf %421, %422 : vector<4x16xf32>
    %424 = vector.extract_strided_slice %407 {offsets = [0, 32], sizes = [4, 16], strides = [1, 1]} : vector<4x64xf32> to vector<4x16xf32>
    %425 = math.tanh %424 : vector<4x16xf32>
    %426 = vector.extract_strided_slice %407 {offsets = [0, 48], sizes = [4, 16], strides = [1, 1]} : vector<4x64xf32> to vector<4x16xf32>
    %427 = arith.negf %426 : vector<4x16xf32>
    %428 = math.exp %427 : vector<4x16xf32>
    %cst_123 = arith.constant 1.000000e+00 : f32
    %429 = vector.broadcast %cst_123 : f32 to vector<4x16xf32>
    %430 = arith.addf %429, %428 : vector<4x16xf32>
    %431 = arith.divf %429, %430 : vector<4x16xf32>
    %432 = vector.extract_strided_slice %411 {offsets = [0, 0], sizes = [4, 16], strides = [1, 1]} : vector<4x64xf32> to vector<4x16xf32>
    %433 = arith.negf %432 : vector<4x16xf32>
    %434 = math.exp %433 : vector<4x16xf32>
    %cst_124 = arith.constant 1.000000e+00 : f32
    %435 = vector.broadcast %cst_124 : f32 to vector<4x16xf32>
    %436 = arith.addf %435, %434 : vector<4x16xf32>
    %437 = arith.divf %435, %436 : vector<4x16xf32>
    %438 = vector.extract_strided_slice %411 {offsets = [0, 16], sizes = [4, 16], strides = [1, 1]} : vector<4x64xf32> to vector<4x16xf32>
    %439 = arith.negf %438 : vector<4x16xf32>
    %440 = math.exp %439 : vector<4x16xf32>
    %cst_125 = arith.constant 1.000000e+00 : f32
    %441 = vector.broadcast %cst_125 : f32 to vector<4x16xf32>
    %442 = arith.addf %441, %440 : vector<4x16xf32>
    %443 = arith.divf %441, %442 : vector<4x16xf32>
    %444 = vector.extract_strided_slice %411 {offsets = [0, 32], sizes = [4, 16], strides = [1, 1]} : vector<4x64xf32> to vector<4x16xf32>
    %445 = math.tanh %444 : vector<4x16xf32>
    %446 = vector.extract_strided_slice %411 {offsets = [0, 48], sizes = [4, 16], strides = [1, 1]} : vector<4x64xf32> to vector<4x16xf32>
    %447 = arith.negf %446 : vector<4x16xf32>
    %448 = math.exp %447 : vector<4x16xf32>
    %cst_126 = arith.constant 1.000000e+00 : f32
    %449 = vector.broadcast %cst_126 : f32 to vector<4x16xf32>
    %450 = arith.addf %449, %448 : vector<4x16xf32>
    %451 = arith.divf %449, %450 : vector<4x16xf32>
    %452 = arith.mulf %423, %394 : vector<4x16xf32>
    %453 = arith.mulf %417, %425 : vector<4x16xf32>
    %454 = arith.addf %452, %453 : vector<4x16xf32>
    %455 = arith.mulf %443, %397 : vector<4x16xf32>
    %456 = arith.mulf %437, %445 : vector<4x16xf32>
    %457 = arith.addf %455, %456 : vector<4x16xf32>
    %458 = math.tanh %454 : vector<4x16xf32>
    %459 = arith.mulf %431, %458 : vector<4x16xf32>
    %460 = math.tanh %457 : vector<4x16xf32>
    %461 = arith.mulf %451, %460 : vector<4x16xf32>
    %cst_127 = arith.constant dense<0.000000e+00> : vector<4x64xf32>
    %462 = tpu.matmul %459, %210, %cst_127 {dimension_numbers = #tpu.dot_dimension_numbers<[1], [0], [0], [1], [0, 0, 1, 1], [], []>} : vector<4x16xf32>, vector<16x64xf32>, vector<4x64xf32> -> vector<4x64xf32>
    %cst_128 = arith.constant dense<0.000000e+00> : vector<4x64xf32>
    %463 = tpu.matmul %461, %211, %cst_128 {dimension_numbers = #tpu.dot_dimension_numbers<[1], [0], [0], [1], [0, 0, 1, 1], [], []>} : vector<4x16xf32>, vector<16x64xf32>, vector<4x64xf32> -> vector<4x64xf32>
    %464 = vector.extract_strided_slice %214 {offsets = [8, 0], sizes = [2, 64], strides = [1, 1]} : vector<16x128xf32> to vector<2x64xf32>
    %465 = vector.extract_strided_slice %217 {offsets = [8, 0], sizes = [2, 64], strides = [1, 1]} : vector<16x128xf32> to vector<2x64xf32>
    %466 = tpu.concatenate %464, %465 in 0 : vector<2x64xf32>, vector<2x64xf32> -> vector<4x64xf32>
    %467 = arith.addf %462, %466 : vector<4x64xf32>
    %468 = vector.extract_strided_slice %214 {offsets = [6, 64], sizes = [2, 64], strides = [1, 1]} : vector<16x128xf32> to vector<2x64xf32>
    %469 = vector.extract_strided_slice %217 {offsets = [6, 64], sizes = [2, 64], strides = [1, 1]} : vector<16x128xf32> to vector<2x64xf32>
    %470 = tpu.concatenate %468, %469 in 0 : vector<2x64xf32>, vector<2x64xf32> -> vector<4x64xf32>
    %471 = arith.addf %463, %470 : vector<4x64xf32>
    %472 = vector.extract_strided_slice %467 {offsets = [0, 0], sizes = [4, 16], strides = [1, 1]} : vector<4x64xf32> to vector<4x16xf32>
    %473 = arith.negf %472 : vector<4x16xf32>
    %474 = math.exp %473 : vector<4x16xf32>
    %cst_129 = arith.constant 1.000000e+00 : f32
    %475 = vector.broadcast %cst_129 : f32 to vector<4x16xf32>
    %476 = arith.addf %475, %474 : vector<4x16xf32>
    %477 = arith.divf %475, %476 : vector<4x16xf32>
    %478 = vector.extract_strided_slice %467 {offsets = [0, 16], sizes = [4, 16], strides = [1, 1]} : vector<4x64xf32> to vector<4x16xf32>
    %479 = arith.negf %478 : vector<4x16xf32>
    %480 = math.exp %479 : vector<4x16xf32>
    %cst_130 = arith.constant 1.000000e+00 : f32
    %481 = vector.broadcast %cst_130 : f32 to vector<4x16xf32>
    %482 = arith.addf %481, %480 : vector<4x16xf32>
    %483 = arith.divf %481, %482 : vector<4x16xf32>
    %484 = vector.extract_strided_slice %467 {offsets = [0, 32], sizes = [4, 16], strides = [1, 1]} : vector<4x64xf32> to vector<4x16xf32>
    %485 = math.tanh %484 : vector<4x16xf32>
    %486 = vector.extract_strided_slice %467 {offsets = [0, 48], sizes = [4, 16], strides = [1, 1]} : vector<4x64xf32> to vector<4x16xf32>
    %487 = arith.negf %486 : vector<4x16xf32>
    %488 = math.exp %487 : vector<4x16xf32>
    %cst_131 = arith.constant 1.000000e+00 : f32
    %489 = vector.broadcast %cst_131 : f32 to vector<4x16xf32>
    %490 = arith.addf %489, %488 : vector<4x16xf32>
    %491 = arith.divf %489, %490 : vector<4x16xf32>
    %492 = vector.extract_strided_slice %471 {offsets = [0, 0], sizes = [4, 16], strides = [1, 1]} : vector<4x64xf32> to vector<4x16xf32>
    %493 = arith.negf %492 : vector<4x16xf32>
    %494 = math.exp %493 : vector<4x16xf32>
    %cst_132 = arith.constant 1.000000e+00 : f32
    %495 = vector.broadcast %cst_132 : f32 to vector<4x16xf32>
    %496 = arith.addf %495, %494 : vector<4x16xf32>
    %497 = arith.divf %495, %496 : vector<4x16xf32>
    %498 = vector.extract_strided_slice %471 {offsets = [0, 16], sizes = [4, 16], strides = [1, 1]} : vector<4x64xf32> to vector<4x16xf32>
    %499 = arith.negf %498 : vector<4x16xf32>
    %500 = math.exp %499 : vector<4x16xf32>
    %cst_133 = arith.constant 1.000000e+00 : f32
    %501 = vector.broadcast %cst_133 : f32 to vector<4x16xf32>
    %502 = arith.addf %501, %500 : vector<4x16xf32>
    %503 = arith.divf %501, %502 : vector<4x16xf32>
    %504 = vector.extract_strided_slice %471 {offsets = [0, 32], sizes = [4, 16], strides = [1, 1]} : vector<4x64xf32> to vector<4x16xf32>
    %505 = math.tanh %504 : vector<4x16xf32>
    %506 = vector.extract_strided_slice %471 {offsets = [0, 48], sizes = [4, 16], strides = [1, 1]} : vector<4x64xf32> to vector<4x16xf32>
    %507 = arith.negf %506 : vector<4x16xf32>
    %508 = math.exp %507 : vector<4x16xf32>
    %cst_134 = arith.constant 1.000000e+00 : f32
    %509 = vector.broadcast %cst_134 : f32 to vector<4x16xf32>
    %510 = arith.addf %509, %508 : vector<4x16xf32>
    %511 = arith.divf %509, %510 : vector<4x16xf32>
    %512 = arith.mulf %483, %454 : vector<4x16xf32>
    %513 = arith.mulf %477, %485 : vector<4x16xf32>
    %514 = arith.addf %512, %513 : vector<4x16xf32>
    %515 = arith.mulf %503, %457 : vector<4x16xf32>
    %516 = arith.mulf %497, %505 : vector<4x16xf32>
    %517 = arith.addf %515, %516 : vector<4x16xf32>
    %518 = math.tanh %514 : vector<4x16xf32>
    %519 = arith.mulf %491, %518 : vector<4x16xf32>
    %520 = math.tanh %517 : vector<4x16xf32>
    %521 = arith.mulf %511, %520 : vector<4x16xf32>
    %cst_135 = arith.constant dense<0.000000e+00> : vector<4x64xf32>
    %522 = tpu.matmul %519, %210, %cst_135 {dimension_numbers = #tpu.dot_dimension_numbers<[1], [0], [0], [1], [0, 0, 1, 1], [], []>} : vector<4x16xf32>, vector<16x64xf32>, vector<4x64xf32> -> vector<4x64xf32>
    %cst_136 = arith.constant dense<0.000000e+00> : vector<4x64xf32>
    %523 = tpu.matmul %521, %211, %cst_136 {dimension_numbers = #tpu.dot_dimension_numbers<[1], [0], [0], [1], [0, 0, 1, 1], [], []>} : vector<4x16xf32>, vector<16x64xf32>, vector<4x64xf32> -> vector<4x64xf32>
    %524 = vector.extract_strided_slice %214 {offsets = [10, 0], sizes = [2, 64], strides = [1, 1]} : vector<16x128xf32> to vector<2x64xf32>
    %525 = vector.extract_strided_slice %217 {offsets = [10, 0], sizes = [2, 64], strides = [1, 1]} : vector<16x128xf32> to vector<2x64xf32>
    %526 = tpu.concatenate %524, %525 in 0 : vector<2x64xf32>, vector<2x64xf32> -> vector<4x64xf32>
    %527 = arith.addf %522, %526 : vector<4x64xf32>
    %528 = vector.extract_strided_slice %214 {offsets = [4, 64], sizes = [2, 64], strides = [1, 1]} : vector<16x128xf32> to vector<2x64xf32>
    %529 = vector.extract_strided_slice %217 {offsets = [4, 64], sizes = [2, 64], strides = [1, 1]} : vector<16x128xf32> to vector<2x64xf32>
    %530 = tpu.concatenate %528, %529 in 0 : vector<2x64xf32>, vector<2x64xf32> -> vector<4x64xf32>
    %531 = arith.addf %523, %530 : vector<4x64xf32>
    %532 = vector.extract_strided_slice %527 {offsets = [0, 0], sizes = [4, 16], strides = [1, 1]} : vector<4x64xf32> to vector<4x16xf32>
    %533 = arith.negf %532 : vector<4x16xf32>
    %534 = math.exp %533 : vector<4x16xf32>
    %cst_137 = arith.constant 1.000000e+00 : f32
    %535 = vector.broadcast %cst_137 : f32 to vector<4x16xf32>
    %536 = arith.addf %535, %534 : vector<4x16xf32>
    %537 = arith.divf %535, %536 : vector<4x16xf32>
    %538 = vector.extract_strided_slice %527 {offsets = [0, 16], sizes = [4, 16], strides = [1, 1]} : vector<4x64xf32> to vector<4x16xf32>
    %539 = arith.negf %538 : vector<4x16xf32>
    %540 = math.exp %539 : vector<4x16xf32>
    %cst_138 = arith.constant 1.000000e+00 : f32
    %541 = vector.broadcast %cst_138 : f32 to vector<4x16xf32>
    %542 = arith.addf %541, %540 : vector<4x16xf32>
    %543 = arith.divf %541, %542 : vector<4x16xf32>
    %544 = vector.extract_strided_slice %527 {offsets = [0, 32], sizes = [4, 16], strides = [1, 1]} : vector<4x64xf32> to vector<4x16xf32>
    %545 = math.tanh %544 : vector<4x16xf32>
    %546 = vector.extract_strided_slice %527 {offsets = [0, 48], sizes = [4, 16], strides = [1, 1]} : vector<4x64xf32> to vector<4x16xf32>
    %547 = arith.negf %546 : vector<4x16xf32>
    %548 = math.exp %547 : vector<4x16xf32>
    %cst_139 = arith.constant 1.000000e+00 : f32
    %549 = vector.broadcast %cst_139 : f32 to vector<4x16xf32>
    %550 = arith.addf %549, %548 : vector<4x16xf32>
    %551 = arith.divf %549, %550 : vector<4x16xf32>
    %552 = vector.extract_strided_slice %531 {offsets = [0, 0], sizes = [4, 16], strides = [1, 1]} : vector<4x64xf32> to vector<4x16xf32>
    %553 = arith.negf %552 : vector<4x16xf32>
    %554 = math.exp %553 : vector<4x16xf32>
    %cst_140 = arith.constant 1.000000e+00 : f32
    %555 = vector.broadcast %cst_140 : f32 to vector<4x16xf32>
    %556 = arith.addf %555, %554 : vector<4x16xf32>
    %557 = arith.divf %555, %556 : vector<4x16xf32>
    %558 = vector.extract_strided_slice %531 {offsets = [0, 16], sizes = [4, 16], strides = [1, 1]} : vector<4x64xf32> to vector<4x16xf32>
    %559 = arith.negf %558 : vector<4x16xf32>
    %560 = math.exp %559 : vector<4x16xf32>
    %cst_141 = arith.constant 1.000000e+00 : f32
    %561 = vector.broadcast %cst_141 : f32 to vector<4x16xf32>
    %562 = arith.addf %561, %560 : vector<4x16xf32>
    %563 = arith.divf %561, %562 : vector<4x16xf32>
    %564 = vector.extract_strided_slice %531 {offsets = [0, 32], sizes = [4, 16], strides = [1, 1]} : vector<4x64xf32> to vector<4x16xf32>
    %565 = math.tanh %564 : vector<4x16xf32>
    %566 = vector.extract_strided_slice %531 {offsets = [0, 48], sizes = [4, 16], strides = [1, 1]} : vector<4x64xf32> to vector<4x16xf32>
    %567 = arith.negf %566 : vector<4x16xf32>
    %568 = math.exp %567 : vector<4x16xf32>
    %cst_142 = arith.constant 1.000000e+00 : f32
    %569 = vector.broadcast %cst_142 : f32 to vector<4x16xf32>
    %570 = arith.addf %569, %568 : vector<4x16xf32>
    %571 = arith.divf %569, %570 : vector<4x16xf32>
    %572 = arith.mulf %543, %514 : vector<4x16xf32>
    %573 = arith.mulf %537, %545 : vector<4x16xf32>
    %574 = arith.addf %572, %573 : vector<4x16xf32>
    %575 = arith.mulf %563, %517 : vector<4x16xf32>
    %576 = arith.mulf %557, %565 : vector<4x16xf32>
    %577 = arith.addf %575, %576 : vector<4x16xf32>
    %578 = math.tanh %574 : vector<4x16xf32>
    %579 = arith.mulf %551, %578 : vector<4x16xf32>
    %580 = math.tanh %577 : vector<4x16xf32>
    %581 = arith.mulf %571, %580 : vector<4x16xf32>
    %cst_143 = arith.constant dense<0.000000e+00> : vector<4x64xf32>
    %582 = tpu.matmul %579, %210, %cst_143 {dimension_numbers = #tpu.dot_dimension_numbers<[1], [0], [0], [1], [0, 0, 1, 1], [], []>} : vector<4x16xf32>, vector<16x64xf32>, vector<4x64xf32> -> vector<4x64xf32>
    %cst_144 = arith.constant dense<0.000000e+00> : vector<4x64xf32>
    %583 = tpu.matmul %581, %211, %cst_144 {dimension_numbers = #tpu.dot_dimension_numbers<[1], [0], [0], [1], [0, 0, 1, 1], [], []>} : vector<4x16xf32>, vector<16x64xf32>, vector<4x64xf32> -> vector<4x64xf32>
    %584 = vector.extract_strided_slice %214 {offsets = [12, 0], sizes = [2, 64], strides = [1, 1]} : vector<16x128xf32> to vector<2x64xf32>
    %585 = vector.extract_strided_slice %217 {offsets = [12, 0], sizes = [2, 64], strides = [1, 1]} : vector<16x128xf32> to vector<2x64xf32>
    %586 = tpu.concatenate %584, %585 in 0 : vector<2x64xf32>, vector<2x64xf32> -> vector<4x64xf32>
    %587 = arith.addf %582, %586 : vector<4x64xf32>
    %588 = vector.extract_strided_slice %214 {offsets = [2, 64], sizes = [2, 64], strides = [1, 1]} : vector<16x128xf32> to vector<2x64xf32>
    %589 = vector.extract_strided_slice %217 {offsets = [2, 64], sizes = [2, 64], strides = [1, 1]} : vector<16x128xf32> to vector<2x64xf32>
    %590 = tpu.concatenate %588, %589 in 0 : vector<2x64xf32>, vector<2x64xf32> -> vector<4x64xf32>
    %591 = arith.addf %583, %590 : vector<4x64xf32>
    %592 = vector.extract_strided_slice %587 {offsets = [0, 0], sizes = [4, 16], strides = [1, 1]} : vector<4x64xf32> to vector<4x16xf32>
    %593 = arith.negf %592 : vector<4x16xf32>
    %594 = math.exp %593 : vector<4x16xf32>
    %cst_145 = arith.constant 1.000000e+00 : f32
    %595 = vector.broadcast %cst_145 : f32 to vector<4x16xf32>
    %596 = arith.addf %595, %594 : vector<4x16xf32>
    %597 = arith.divf %595, %596 : vector<4x16xf32>
    %598 = vector.extract_strided_slice %587 {offsets = [0, 16], sizes = [4, 16], strides = [1, 1]} : vector<4x64xf32> to vector<4x16xf32>
    %599 = arith.negf %598 : vector<4x16xf32>
    %600 = math.exp %599 : vector<4x16xf32>
    %cst_146 = arith.constant 1.000000e+00 : f32
    %601 = vector.broadcast %cst_146 : f32 to vector<4x16xf32>
    %602 = arith.addf %601, %600 : vector<4x16xf32>
    %603 = arith.divf %601, %602 : vector<4x16xf32>
    %604 = vector.extract_strided_slice %587 {offsets = [0, 32], sizes = [4, 16], strides = [1, 1]} : vector<4x64xf32> to vector<4x16xf32>
    %605 = math.tanh %604 : vector<4x16xf32>
    %606 = vector.extract_strided_slice %587 {offsets = [0, 48], sizes = [4, 16], strides = [1, 1]} : vector<4x64xf32> to vector<4x16xf32>
    %607 = arith.negf %606 : vector<4x16xf32>
    %608 = math.exp %607 : vector<4x16xf32>
    %cst_147 = arith.constant 1.000000e+00 : f32
    %609 = vector.broadcast %cst_147 : f32 to vector<4x16xf32>
    %610 = arith.addf %609, %608 : vector<4x16xf32>
    %611 = arith.divf %609, %610 : vector<4x16xf32>
    %612 = vector.extract_strided_slice %591 {offsets = [0, 0], sizes = [4, 16], strides = [1, 1]} : vector<4x64xf32> to vector<4x16xf32>
    %613 = arith.negf %612 : vector<4x16xf32>
    %614 = math.exp %613 : vector<4x16xf32>
    %cst_148 = arith.constant 1.000000e+00 : f32
    %615 = vector.broadcast %cst_148 : f32 to vector<4x16xf32>
    %616 = arith.addf %615, %614 : vector<4x16xf32>
    %617 = arith.divf %615, %616 : vector<4x16xf32>
    %618 = vector.extract_strided_slice %591 {offsets = [0, 16], sizes = [4, 16], strides = [1, 1]} : vector<4x64xf32> to vector<4x16xf32>
    %619 = arith.negf %618 : vector<4x16xf32>
    %620 = math.exp %619 : vector<4x16xf32>
    %cst_149 = arith.constant 1.000000e+00 : f32
    %621 = vector.broadcast %cst_149 : f32 to vector<4x16xf32>
    %622 = arith.addf %621, %620 : vector<4x16xf32>
    %623 = arith.divf %621, %622 : vector<4x16xf32>
    %624 = vector.extract_strided_slice %591 {offsets = [0, 32], sizes = [4, 16], strides = [1, 1]} : vector<4x64xf32> to vector<4x16xf32>
    %625 = math.tanh %624 : vector<4x16xf32>
    %626 = vector.extract_strided_slice %591 {offsets = [0, 48], sizes = [4, 16], strides = [1, 1]} : vector<4x64xf32> to vector<4x16xf32>
    %627 = arith.negf %626 : vector<4x16xf32>
    %628 = math.exp %627 : vector<4x16xf32>
    %cst_150 = arith.constant 1.000000e+00 : f32
    %629 = vector.broadcast %cst_150 : f32 to vector<4x16xf32>
    %630 = arith.addf %629, %628 : vector<4x16xf32>
    %631 = arith.divf %629, %630 : vector<4x16xf32>
    %632 = arith.mulf %603, %574 : vector<4x16xf32>
    %633 = arith.mulf %597, %605 : vector<4x16xf32>
    %634 = arith.addf %632, %633 : vector<4x16xf32>
    %635 = arith.mulf %623, %577 : vector<4x16xf32>
    %636 = arith.mulf %617, %625 : vector<4x16xf32>
    %637 = arith.addf %635, %636 : vector<4x16xf32>
    %638 = math.tanh %634 : vector<4x16xf32>
    %639 = arith.mulf %611, %638 : vector<4x16xf32>
    %640 = math.tanh %637 : vector<4x16xf32>
    %641 = arith.mulf %631, %640 : vector<4x16xf32>
    %cst_151 = arith.constant dense<0.000000e+00> : vector<4x64xf32>
    %642 = tpu.matmul %639, %210, %cst_151 {dimension_numbers = #tpu.dot_dimension_numbers<[1], [0], [0], [1], [0, 0, 1, 1], [], []>} : vector<4x16xf32>, vector<16x64xf32>, vector<4x64xf32> -> vector<4x64xf32>
    %cst_152 = arith.constant dense<0.000000e+00> : vector<4x64xf32>
    %643 = tpu.matmul %641, %211, %cst_152 {dimension_numbers = #tpu.dot_dimension_numbers<[1], [0], [0], [1], [0, 0, 1, 1], [], []>} : vector<4x16xf32>, vector<16x64xf32>, vector<4x64xf32> -> vector<4x64xf32>
    %644 = vector.extract_strided_slice %214 {offsets = [14, 0], sizes = [2, 64], strides = [1, 1]} : vector<16x128xf32> to vector<2x64xf32>
    %645 = vector.extract_strided_slice %217 {offsets = [14, 0], sizes = [2, 64], strides = [1, 1]} : vector<16x128xf32> to vector<2x64xf32>
    %646 = tpu.concatenate %644, %645 in 0 : vector<2x64xf32>, vector<2x64xf32> -> vector<4x64xf32>
    %647 = arith.addf %642, %646 : vector<4x64xf32>
    %648 = vector.extract_strided_slice %214 {offsets = [0, 64], sizes = [2, 64], strides = [1, 1]} : vector<16x128xf32> to vector<2x64xf32>
    %649 = vector.extract_strided_slice %217 {offsets = [0, 64], sizes = [2, 64], strides = [1, 1]} : vector<16x128xf32> to vector<2x64xf32>
    %650 = tpu.concatenate %648, %649 in 0 : vector<2x64xf32>, vector<2x64xf32> -> vector<4x64xf32>
    %651 = arith.addf %643, %650 : vector<4x64xf32>
    %652 = vector.extract_strided_slice %647 {offsets = [0, 0], sizes = [4, 16], strides = [1, 1]} : vector<4x64xf32> to vector<4x16xf32>
    %653 = arith.negf %652 : vector<4x16xf32>
    %654 = math.exp %653 : vector<4x16xf32>
    %cst_153 = arith.constant 1.000000e+00 : f32
    %655 = vector.broadcast %cst_153 : f32 to vector<4x16xf32>
    %656 = arith.addf %655, %654 : vector<4x16xf32>
    %657 = arith.divf %655, %656 : vector<4x16xf32>
    %658 = vector.extract_strided_slice %647 {offsets = [0, 16], sizes = [4, 16], strides = [1, 1]} : vector<4x64xf32> to vector<4x16xf32>
    %659 = arith.negf %658 : vector<4x16xf32>
    %660 = math.exp %659 : vector<4x16xf32>
    %cst_154 = arith.constant 1.000000e+00 : f32
    %661 = vector.broadcast %cst_154 : f32 to vector<4x16xf32>
    %662 = arith.addf %661, %660 : vector<4x16xf32>
    %663 = arith.divf %661, %662 : vector<4x16xf32>
    %664 = vector.extract_strided_slice %647 {offsets = [0, 32], sizes = [4, 16], strides = [1, 1]} : vector<4x64xf32> to vector<4x16xf32>
    %665 = math.tanh %664 : vector<4x16xf32>
    %666 = vector.extract_strided_slice %647 {offsets = [0, 48], sizes = [4, 16], strides = [1, 1]} : vector<4x64xf32> to vector<4x16xf32>
    %667 = arith.negf %666 : vector<4x16xf32>
    %668 = math.exp %667 : vector<4x16xf32>
    %cst_155 = arith.constant 1.000000e+00 : f32
    %669 = vector.broadcast %cst_155 : f32 to vector<4x16xf32>
    %670 = arith.addf %669, %668 : vector<4x16xf32>
    %671 = arith.divf %669, %670 : vector<4x16xf32>
    %672 = vector.extract_strided_slice %651 {offsets = [0, 0], sizes = [4, 16], strides = [1, 1]} : vector<4x64xf32> to vector<4x16xf32>
    %673 = arith.negf %672 : vector<4x16xf32>
    %674 = math.exp %673 : vector<4x16xf32>
    %cst_156 = arith.constant 1.000000e+00 : f32
    %675 = vector.broadcast %cst_156 : f32 to vector<4x16xf32>
    %676 = arith.addf %675, %674 : vector<4x16xf32>
    %677 = arith.divf %675, %676 : vector<4x16xf32>
    %678 = vector.extract_strided_slice %651 {offsets = [0, 16], sizes = [4, 16], strides = [1, 1]} : vector<4x64xf32> to vector<4x16xf32>
    %679 = arith.negf %678 : vector<4x16xf32>
    %680 = math.exp %679 : vector<4x16xf32>
    %cst_157 = arith.constant 1.000000e+00 : f32
    %681 = vector.broadcast %cst_157 : f32 to vector<4x16xf32>
    %682 = arith.addf %681, %680 : vector<4x16xf32>
    %683 = arith.divf %681, %682 : vector<4x16xf32>
    %684 = vector.extract_strided_slice %651 {offsets = [0, 32], sizes = [4, 16], strides = [1, 1]} : vector<4x64xf32> to vector<4x16xf32>
    %685 = math.tanh %684 : vector<4x16xf32>
    %686 = vector.extract_strided_slice %651 {offsets = [0, 48], sizes = [4, 16], strides = [1, 1]} : vector<4x64xf32> to vector<4x16xf32>
    %687 = arith.negf %686 : vector<4x16xf32>
    %688 = math.exp %687 : vector<4x16xf32>
    %cst_158 = arith.constant 1.000000e+00 : f32
    %689 = vector.broadcast %cst_158 : f32 to vector<4x16xf32>
    %690 = arith.addf %689, %688 : vector<4x16xf32>
    %691 = arith.divf %689, %690 : vector<4x16xf32>
    %692 = arith.mulf %663, %634 : vector<4x16xf32>
    %693 = arith.mulf %657, %665 : vector<4x16xf32>
    %694 = arith.addf %692, %693 : vector<4x16xf32>
    %695 = arith.mulf %683, %637 : vector<4x16xf32>
    %696 = arith.mulf %677, %685 : vector<4x16xf32>
    %697 = arith.addf %695, %696 : vector<4x16xf32>
    %698 = math.tanh %694 : vector<4x16xf32>
    %699 = arith.mulf %671, %698 : vector<4x16xf32>
    %700 = math.tanh %697 : vector<4x16xf32>
    %701 = arith.mulf %691, %700 : vector<4x16xf32>
    %702 = tpu.concatenate %279, %701 in 1 : vector<4x16xf32>, vector<4x16xf32> -> vector<4x32xf32>
    %703 = tpu.concatenate %339, %641 in 1 : vector<4x16xf32>, vector<4x16xf32> -> vector<4x32xf32>
    %704 = tpu.concatenate %399, %581 in 1 : vector<4x16xf32>, vector<4x16xf32> -> vector<4x32xf32>
    %705 = tpu.concatenate %459, %521 in 1 : vector<4x16xf32>, vector<4x16xf32> -> vector<4x32xf32>
    %706 = tpu.concatenate %519, %461 in 1 : vector<4x16xf32>, vector<4x16xf32> -> vector<4x32xf32>
    %707 = tpu.concatenate %579, %401 in 1 : vector<4x16xf32>, vector<4x16xf32> -> vector<4x32xf32>
    %708 = tpu.concatenate %639, %341 in 1 : vector<4x16xf32>, vector<4x16xf32> -> vector<4x32xf32>
    %709 = tpu.concatenate %699, %281 in 1 : vector<4x16xf32>, vector<4x16xf32> -> vector<4x32xf32>
    %710 = vector.extract_strided_slice %702 {offsets = [0, 0], sizes = [2, 32], strides = [1, 1]} : vector<4x32xf32> to vector<2x32xf32>
    %711 = vector.extract_strided_slice %703 {offsets = [0, 0], sizes = [2, 32], strides = [1, 1]} : vector<4x32xf32> to vector<2x32xf32>
    %712 = vector.extract_strided_slice %704 {offsets = [0, 0], sizes = [2, 32], strides = [1, 1]} : vector<4x32xf32> to vector<2x32xf32>
    %713 = vector.extract_strided_slice %705 {offsets = [0, 0], sizes = [2, 32], strides = [1, 1]} : vector<4x32xf32> to vector<2x32xf32>
    %714 = vector.extract_strided_slice %706 {offsets = [0, 0], sizes = [2, 32], strides = [1, 1]} : vector<4x32xf32> to vector<2x32xf32>
    %715 = vector.extract_strided_slice %707 {offsets = [0, 0], sizes = [2, 32], strides = [1, 1]} : vector<4x32xf32> to vector<2x32xf32>
    %716 = vector.extract_strided_slice %708 {offsets = [0, 0], sizes = [2, 32], strides = [1, 1]} : vector<4x32xf32> to vector<2x32xf32>
    %717 = vector.extract_strided_slice %709 {offsets = [0, 0], sizes = [2, 32], strides = [1, 1]} : vector<4x32xf32> to vector<2x32xf32>
    %718 = tpu.concatenate %710, %711, %712, %713, %714, %715, %716, %717 in 0 : vector<2x32xf32>, vector<2x32xf32>, vector<2x32xf32>, vector<2x32xf32>, vector<2x32xf32>, vector<2x32xf32>, vector<2x32xf32>, vector<2x32xf32> -> vector<16x32xf32>
    %c0_159 = arith.constant 0 : index
    %c0_160 = arith.constant 0 : index
    %719 = vector.load %arg18[%c0_159, %c0_160] : memref<16x32xf32, #tpu.memory_space<vmem>>, vector<16x32xf32>
    tpu.vector_store %arg18[%c0_159, %c0_160], %718 {strides = array<i32>} : memref<16x32xf32, #tpu.memory_space<vmem>>, vector<16x32xf32>,
    %720 = vector.extract_strided_slice %702 {offsets = [2, 0], sizes = [2, 32], strides = [1, 1]} : vector<4x32xf32> to vector<2x32xf32>
    %721 = vector.extract_strided_slice %703 {offsets = [2, 0], sizes = [2, 32], strides = [1, 1]} : vector<4x32xf32> to vector<2x32xf32>
    %722 = vector.extract_strided_slice %704 {offsets = [2, 0], sizes = [2, 32], strides = [1, 1]} : vector<4x32xf32> to vector<2x32xf32>
    %723 = vector.extract_strided_slice %705 {offsets = [2, 0], sizes = [2, 32], strides = [1, 1]} : vector<4x32xf32> to vector<2x32xf32>
    %724 = vector.extract_strided_slice %706 {offsets = [2, 0], sizes = [2, 32], strides = [1, 1]} : vector<4x32xf32> to vector<2x32xf32>
    %725 = vector.extract_strided_slice %707 {offsets = [2, 0], sizes = [2, 32], strides = [1, 1]} : vector<4x32xf32> to vector<2x32xf32>
    %726 = vector.extract_strided_slice %708 {offsets = [2, 0], sizes = [2, 32], strides = [1, 1]} : vector<4x32xf32> to vector<2x32xf32>
    %727 = vector.extract_strided_slice %709 {offsets = [2, 0], sizes = [2, 32], strides = [1, 1]} : vector<4x32xf32> to vector<2x32xf32>
    %728 = tpu.concatenate %720, %721, %722, %723, %724, %725, %726, %727 in 0 : vector<2x32xf32>, vector<2x32xf32>, vector<2x32xf32>, vector<2x32xf32>, vector<2x32xf32>, vector<2x32xf32>, vector<2x32xf32>, vector<2x32xf32> -> vector<16x32xf32>
    %c0_161 = arith.constant 0 : index
    %c0_162 = arith.constant 0 : index
    %729 = vector.load %arg19[%c0_161, %c0_162] : memref<16x32xf32, #tpu.memory_space<vmem>>, vector<16x32xf32>
    tpu.vector_store %arg19[%c0_161, %c0_162], %728 {strides = array<i32>} : memref<16x32xf32, #tpu.memory_space<vmem>>, vector<16x32xf32>,
    return
  }
}

</mosaic_0001>

<llo_original>
// kernel: async_infer_forward.1
$region0: #{async_infer_forward.1}
  #allocation0 [shape = 'u32[]', space=smem, size = 0x4, offset = 0x4, fixed_abs, tag = 'smem constant byte address 0x4 - core index']
  #allocation1 [shape = 'u32[144,128]{1,0:T(1,128)}', space=vmem, size = 0x12000, scoped, tag = 'internal scratch']
  %s0 = inlined_call_operand.hbm [shape: f32[16,32], index: 0, kind: input, shape index: {}]
  %s1 = inlined_call_operand.hbm [shape: f32[16,32], index: 1, kind: input, shape index: {}]
  %s2 = inlined_call_operand.hbm [shape: f32[32,16], index: 2, kind: input, shape index: {}]
  %s3 = inlined_call_operand.hbm [shape: f32[1,16], index: 3, kind: input, shape index: {}]
  %s4 = inlined_call_operand.hbm [shape: f32[96,32], index: 4, kind: input, shape index: {}]
  %s5 = inlined_call_operand.hbm [shape: f32[1,32], index: 5, kind: input, shape index: {}]
  %s6 = inlined_call_operand.vmem [shape: f32[1,32], index: 6, kind: input, shape index: {}, may-alias: {6,12}]
  %s7 = inlined_call_operand.vmem [shape: f32[1,32], index: 7, kind: input, shape index: {}, may-alias: {7,13}]
  %s8 = inlined_call_operand.hbm [shape: f32[32,16], index: 8, kind: input, shape index: {}]
  %s9 = inlined_call_operand.hbm [shape: f32[1,16], index: 9, kind: input, shape index: {}]
  %s10 = inlined_call_operand.hbm [shape: f32[96,32], index: 10, kind: input, shape index: {}]
  %s11 = inlined_call_operand.hbm [shape: f32[1,32], index: 11, kind: input, shape index: {}]
  %s12 = inlined_call_operand.vmem [shape: f32[1,32], index: 12, kind: input, shape index: {}, may-alias: {6,12}]
  %s13 = inlined_call_operand.vmem [shape: f32[1,32], index: 13, kind: input, shape index: {}, may-alias: {7,13}]
  %s14 = inlined_call_operand.hbm [shape: f32[64,128], index: 14, kind: input, shape index: {}]
  %s15 = inlined_call_operand.vmem [shape: f32[1,128], index: 15, kind: input, shape index: {}]
  %s16 = inlined_call_operand.vmem [shape: f32[16,64], index: 16, kind: input, shape index: {}]
  %s17 = inlined_call_operand.vmem [shape: f32[16,64], index: 17, kind: input, shape index: {}]
  %s18 = inlined_call_operand.hbm [shape: f32[16,32], index: 18, kind: output, shape index: {0}]
  %s19 = inlined_call_operand.hbm [shape: f32[16,32], index: 19, kind: output, shape index: {1}]
  %20 = xla_tuple %s18, %s19
  %s21 = sld [smem:[#allocation0]]
  $region134: #{async_infer_forward.1} parent=0
    _
  %s23 = ssub.s32 1, %s21
  %s24 = scalar_select 0, %s23, %s21
  $region1: #{async_infer_forward.1} parent=0
    #allocation2 [shape = 'u8[8192]{0}', space=vmem, size = 0x2000, scoped, tag = 'input window, operand 0, single buffered']
    #allocation3 [shape = 's32[1]{0}', space=sflag, size = 0x4, scoped, tag = 'scoped memory for async_infer_forward.1']
    #allocation4 [shape = 's32[1]{0}', space=sflag, size = 0x4, scoped, tag = 'scoped memory for async_infer_forward.1']
    #allocation5 [shape = 'u8[8192]{0}', space=vmem, size = 0x2000, scoped, tag = 'input window, operand 1, single buffered']
    #allocation6 [shape = 's32[1]{0}', space=sflag, size = 0x4, scoped, tag = 'scoped memory for async_infer_forward.1']
    #allocation7 [shape = 'u8[16384]{0}', space=vmem, size = 0x4000, scoped, tag = 'input window, operand 2, single buffered']
    #allocation8 [shape = 'u8[512]{0}', space=vmem, size = 0x400, scoped, tag = 'input window, operand 3, single buffered']
    #allocation9 [shape = 's32[1]{0}', space=sflag, size = 0x4, scoped, tag = 'scoped memory for async_infer_forward.1']
    #allocation10 [shape = 'u8[49152]{0}', space=vmem, size = 0xc000, scoped, tag = 'input window, operand 4, single buffered']
    #allocation11 [shape = 'u8[512]{0}', space=vmem, size = 0x400, scoped, tag = 'input window, operand 5, single buffered']
    #allocation12 [shape = 's32[1]{0}', space=sflag, size = 0x4, scoped, tag = 'scoped memory for async_infer_forward.1']
    #allocation13 [shape = 'u8[16384]{0}', space=vmem, size = 0x4000, scoped, tag = 'input window, operand 8, single buffered']
    #allocation14 [shape = 'u8[512]{0}', space=vmem, size = 0x400, scoped, tag = 'input window, operand 9, single buffered']
    #allocation15 [shape = 's32[1]{0}', space=sflag, size = 0x4, scoped, tag = 'scoped memory for async_infer_forward.1']
    #allocation16 [shape = 'u8[49152]{0}', space=vmem, size = 0xc000, scoped, tag = 'input window, operand 10, single buffered']
    #allocation17 [shape = 'u8[512]{0}', space=vmem, size = 0x400, scoped, tag = 'input window, operand 11, single buffered']
    #allocation18 [shape = 's32[1]{0}', space=sflag, size = 0x4, scoped, tag = 'scoped memory for async_infer_forward.1']
    #allocation19 [shape = 'u8[32768]{0}', space=vmem, size = 0x8000, scoped, tag = 'input window, operand 14, single buffered']
    #allocation20 [shape = 'u8[8192]{0}', space=vmem, size = 0x2000, scoped, tag = 'output window, operand 0, single buffered']
    #allocation21 [shape = 'u8[8192]{0}', space=vmem, size = 0x2000, scoped, tag = 'output window, operand 1, single buffered']
    #allocation22 [shape = 's32[1]{0}', space=sflag, size = 0x4, scoped, tag = 'scoped memory for async_infer_forward.1']
    %25 = vsyncpa [#allocation3], 0
    %26 = vsyncpa [#allocation6], 0
    %27 = vsyncpa [#allocation9], 0
    %28 = vsyncpa [#allocation12], 0
    %29 = vsyncpa [#allocation15], 0
    %30 = vsyncpa [#allocation18], 0
    %31 = vsyncpa [#allocation4], 0
    %32 = vsyncpa [#allocation22], 0
    // Predicated region
    $region2: #{async_infer_forward.1} parent=1 // pred_check
      _
    $region3: #{async_infer_forward.1} parent=1 // pred_check_branch
      %34 = sbr.rel (0) target = $region5
    $region4: #{async_infer_forward.1} parent=1 // pred_region
      %s36 = ssub.s32 256, 256
      %37 = vsyncadd [#allocation3], %s36
      %s38 = sshll.u32 [#allocation2], 4
      %s39 = int_to_ptr.vmem [resolvable:$true] %s38
      %44 = dma.hbm_to_vmem [thread:$0]  %s0, 256, %s39, [#allocation3], 128, 128, 8
    $region5: #{async_infer_forward.1} parent=1 // pred_fallthru
      _
    // Predicated region
    $region6: #{async_infer_forward.1} parent=1 // pred_check
      _
    $region7: #{async_infer_forward.1} parent=1 // pred_check_branch
      %46 = sbr.rel (0) target = $region9
    $region8: #{async_infer_forward.1} parent=1 // pred_region
      %s48 = ssub.s32 256, 256
      %49 = vsyncadd [#allocation6], %s48
      %s50 = sshll.u32 [#allocation5], 4
      %s51 = int_to_ptr.vmem [resolvable:$true] %s50
      %56 = dma.hbm_to_vmem [thread:$0]  %s1, 256, %s51, [#allocation6], 128, 128, 8
    $region9: #{async_infer_forward.1} parent=1 // pred_fallthru
      _
    // Predicated region
    $region10: #{async_infer_forward.1} parent=1 // pred_check
      _
    $region11: #{async_infer_forward.1} parent=1 // pred_check_branch
      %58 = sbr.rel (0) target = $region13
    $region12: #{async_infer_forward.1} parent=1 // pred_region
      %s60 = ssub.s32 512, 512
      %61 = vsyncadd [#allocation6], %s60
      %s62 = sshll.u32 [#allocation7], 4
      %s63 = int_to_ptr.vmem [resolvable:$true] %s62
      %68 = dma.hbm_to_vmem [thread:$0]  %s2, 512, %s63, [#allocation6], 128, 128, 8
    $region13: #{async_infer_forward.1} parent=1 // pred_fallthru
      _
    // Predicated region
    $region14: #{async_infer_forward.1} parent=1 // pred_check
      _
    $region15: #{async_infer_forward.1} parent=1 // pred_check_branch
      %70 = sbr.rel (0) target = $region17
    $region16: #{async_infer_forward.1} parent=1 // pred_region
      %s72 = ssub.s32 16, 16
      %73 = vsyncadd [#allocation9], %s72
      %s75 = sshll.u32 [#allocation8], 4
      %s76 = int_to_ptr.vmem [resolvable:$true] %s75
      %78 = dma.hbm_to_vmem [thread:$0]  %s3, 16, %s76, [#allocation9]
    $region17: #{async_infer_forward.1} parent=1 // pred_fallthru
      _
    // Predicated region
    $region18: #{async_infer_forward.1} parent=1 // pred_check
      _
    $region19: #{async_infer_forward.1} parent=1 // pred_check_branch
      %80 = sbr.rel (0) target = $region21
    $region20: #{async_infer_forward.1} parent=1 // pred_region
      %s82 = ssub.s32 1536, 1536
      %83 = vsyncadd [#allocation9], %s82
      %s84 = sshll.u32 [#allocation10], 4
      %s85 = int_to_ptr.vmem [resolvable:$true] %s84
      %90 = dma.hbm_to_vmem [thread:$0]  %s4, 1536, %s85, [#allocation9], 128, 128, 8
    $region21: #{async_infer_forward.1} parent=1 // pred_fallthru
      _
    // Predicated region
    $region22: #{async_infer_forward.1} parent=1 // pred_check
      _
    $region23: #{async_infer_forward.1} parent=1 // pred_check_branch
      %92 = sbr.rel (0) target = $region25
    $region24: #{async_infer_forward.1} parent=1 // pred_region
      %s94 = ssub.s32 16, 16
      %95 = vsyncadd [#allocation12], %s94
      %s97 = sshll.u32 [#allocation11], 4
      %s98 = int_to_ptr.vmem [resolvable:$true] %s97
      %100 = dma.hbm_to_vmem [thread:$0]  %s5, 16, %s98, [#allocation12]
    $region25: #{async_infer_forward.1} parent=1 // pred_fallthru
      _
    // Predicated region
    $region26: #{async_infer_forward.1} parent=1 // pred_check
      _
    $region27: #{async_infer_forward.1} parent=1 // pred_check_branch
      %102 = sbr.rel (0) target = $region29
    $region28: #{async_infer_forward.1} parent=1 // pred_region
      _
    $region29: #{async_infer_forward.1} parent=1 // pred_fallthru
      _
    // Predicated region
    $region30: #{async_infer_forward.1} parent=1 // pred_check
      _
    $region31: #{async_infer_forward.1} parent=1 // pred_check_branch
      %104 = sbr.rel (0) target = $region33
    $region32: #{async_infer_forward.1} parent=1 // pred_region
      _
    $region33: #{async_infer_forward.1} parent=1 // pred_fallthru
      _
    // Predicated region
    $region34: #{async_infer_forward.1} parent=1 // pred_check
      _
    $region35: #{async_infer_forward.1} parent=1 // pred_check_branch
      %106 = sbr.rel (0) target = $region37
    $region36: #{async_infer_forward.1} parent=1 // pred_region
      %s108 = ssub.s32 512, 512
      %109 = vsyncadd [#allocation12], %s108
      %s110 = sshll.u32 [#allocation13], 4
      %s111 = int_to_ptr.vmem [resolvable:$true] %s110
      %116 = dma.hbm_to_vmem [thread:$0]  %s8, 512, %s111, [#allocation12], 128, 128, 8
    $region37: #{async_infer_forward.1} parent=1 // pred_fallthru
      _
    // Predicated region
    $region38: #{async_infer_forward.1} parent=1 // pred_check
      _
    $region39: #{async_infer_forward.1} parent=1 // pred_check_branch
      %118 = sbr.rel (0) target = $region41
    $region40: #{async_infer_forward.1} parent=1 // pred_region
      %s120 = ssub.s32 16, 16
      %121 = vsyncadd [#allocation15], %s120
      %s123 = sshll.u32 [#allocation14], 4
      %s124 = int_to_ptr.vmem [resolvable:$true] %s123
      %126 = dma.hbm_to_vmem [thread:$0]  %s9, 16, %s124, [#allocation15]
    $region41: #{async_infer_forward.1} parent=1 // pred_fallthru
      _
    // Predicated region
    $region42: #{async_infer_forward.1} parent=1 // pred_check
      _
    $region43: #{async_infer_forward.1} parent=1 // pred_check_branch
      %128 = sbr.rel (0) target = $region45
    $region44: #{async_infer_forward.1} parent=1 // pred_region
      %s130 = ssub.s32 1536, 1536
      %131 = vsyncadd [#allocation15], %s130
      %s132 = sshll.u32 [#allocation16], 4
      %s133 = int_to_ptr.vmem [resolvable:$true] %s132
      %138 = dma.hbm_to_vmem [thread:$0]  %s10, 1536, %s133, [#allocation15], 128, 128, 8
    $region45: #{async_infer_forward.1} parent=1 // pred_fallthru
      _
    // Predicated region
    $region46: #{async_infer_forward.1} parent=1 // pred_check
      _
    $region47: #{async_infer_forward.1} parent=1 // pred_check_branch
      %140 = sbr.rel (0) target = $region49
    $region48: #{async_infer_forward.1} parent=1 // pred_region
      %s142 = ssub.s32 16, 16
      %143 = vsyncadd [#allocation18], %s142
      %s145 = sshll.u32 [#allocation17], 4
      %s146 = int_to_ptr.vmem [resolvable:$true] %s145
      %148 = dma.hbm_to_vmem [thread:$0]  %s11, 16, %s146, [#allocation18]
    $region49: #{async_infer_forward.1} parent=1 // pred_fallthru
      _
    // Predicated region
    $region50: #{async_infer_forward.1} parent=1 // pred_check
      _
    $region51: #{async_infer_forward.1} parent=1 // pred_check_branch
      %150 = sbr.rel (0) target = $region53
    $region52: #{async_infer_forward.1} parent=1 // pred_region
      _
    $region53: #{async_infer_forward.1} parent=1 // pred_fallthru
      _
    // Predicated region
    $region54: #{async_infer_forward.1} parent=1 // pred_check
      _
    $region55: #{async_infer_forward.1} parent=1 // pred_check_branch
      %152 = sbr.rel (0) target = $region57
    $region56: #{async_infer_forward.1} parent=1 // pred_region
      _
    $region57: #{async_infer_forward.1} parent=1 // pred_fallthru
      _
    // Predicated region
    $region58: #{async_infer_forward.1} parent=1 // pred_check
      _
    $region59: #{async_infer_forward.1} parent=1 // pred_check_branch
      %154 = sbr.rel (0) target = $region61
    $region60: #{async_infer_forward.1} parent=1 // pred_region
      %s156 = ssub.s32 1024, 1024
      %157 = vsyncadd [#allocation18], %s156
      %s158 = sshll.u32 [#allocation19], 4
      %s159 = int_to_ptr.vmem [resolvable:$true] %s158
      %164 = dma.hbm_to_vmem [thread:$0]  %s14, 1024, %s159, [#allocation18], 128, 128, 8
    $region61: #{async_infer_forward.1} parent=1 // pred_fallthru
      _
    // Predicated region
    $region62: #{async_infer_forward.1} parent=1 // pred_check
      _
    $region63: #{async_infer_forward.1} parent=1 // pred_check_branch
      %166 = sbr.rel (0) target = $region65
    $region64: #{async_infer_forward.1} parent=1 // pred_region
      _
    $region65: #{async_infer_forward.1} parent=1 // pred_fallthru
      _
    // Predicated region
    $region66: #{async_infer_forward.1} parent=1 // pred_check
      _
    $region67: #{async_infer_forward.1} parent=1 // pred_check_branch
      %168 = sbr.rel (0) target = $region69
    $region68: #{async_infer_forward.1} parent=1 // pred_region
      _
    $region69: #{async_infer_forward.1} parent=1 // pred_fallthru
      _
    // Predicated region
    $region70: #{async_infer_forward.1} parent=1 // pred_check
      _
    $region71: #{async_infer_forward.1} parent=1 // pred_check_branch
      %170 = sbr.rel (0) target = $region73
    $region72: #{async_infer_forward.1} parent=1 // pred_region
      _
    $region73: #{async_infer_forward.1} parent=1 // pred_fallthru
      _
    // Predicated region
    $region74: #{async_infer_forward.1} parent=1 // pred_check
      _
    $region75: #{async_infer_forward.1} parent=1 // pred_check_branch
      %172 = sbr.rel (0) target = $region77
    $region76: #{async_infer_forward.1} parent=1 // pred_region
      %173 = dma.done [#allocation3], 256
    $region77: #{async_infer_forward.1} parent=1 // pred_fallthru
      _
    // Predicated region
    $region78: #{async_infer_forward.1} parent=1 // pred_check
      _
    $region79: #{async_infer_forward.1} parent=1 // pred_check_branch
      %175 = sbr.rel (0) target = $region81
    $region80: #{async_infer_forward.1} parent=1 // pred_region
      %176 = dma.done [#allocation6], 256
    $region81: #{async_infer_forward.1} parent=1 // pred_fallthru
      _
    // Predicated region
    $region82: #{async_infer_forward.1} parent=1 // pred_check
      _
    $region83: #{async_infer_forward.1} parent=1 // pred_check_branch
      %178 = sbr.rel (0) target = $region85
    $region84: #{async_infer_forward.1} parent=1 // pred_region
      %179 = dma.done [#allocation6], 512
    $region85: #{async_infer_forward.1} parent=1 // pred_fallthru
      _
    // Predicated region
    $region86: #{async_infer_forward.1} parent=1 // pred_check
      _
    $region87: #{async_infer_forward.1} parent=1 // pred_check_branch
      %181 = sbr.rel (0) target = $region89
    $region88: #{async_infer_forward.1} parent=1 // pred_region
      %182 = dma.done [#allocation9], 16
    $region89: #{async_infer_forward.1} parent=1 // pred_fallthru
      _
    // Predicated region
    $region90: #{async_infer_forward.1} parent=1 // pred_check
      _
    $region91: #{async_infer_forward.1} parent=1 // pred_check_branch
      %184 = sbr.rel (0) target = $region93
    $region92: #{async_infer_forward.1} parent=1 // pred_region
      %185 = dma.done [#allocation9], 1536
    $region93: #{async_infer_forward.1} parent=1 // pred_fallthru
      _
    // Predicated region
    $region94: #{async_infer_forward.1} parent=1 // pred_check
      _
    $region95: #{async_infer_forward.1} parent=1 // pred_check_branch
      %187 = sbr.rel (0) target = $region97
    $region96: #{async_infer_forward.1} parent=1 // pred_region
      %188 = dma.done [#allocation12], 16
    $region97: #{async_infer_forward.1} parent=1 // pred_fallthru
      _
    // Predicated region
    $region98: #{async_infer_forward.1} parent=1 // pred_check
      _
    $region99: #{async_infer_forward.1} parent=1 // pred_check_branch
      %190 = sbr.rel (0) target = $region101
    $region100: #{async_infer_forward.1} parent=1 // pred_region
      %191 = dma.done [#allocation12], 512
    $region101: #{async_infer_forward.1} parent=1 // pred_fallthru
      _
    // Predicated region
    $region102: #{async_infer_forward.1} parent=1 // pred_check
      _
    $region103: #{async_infer_forward.1} parent=1 // pred_check_branch
      %193 = sbr.rel (0) target = $region105
    $region104: #{async_infer_forward.1} parent=1 // pred_region
      %194 = dma.done [#allocation15], 16
    $region105: #{async_infer_forward.1} parent=1 // pred_fallthru
      _
    // Predicated region
    $region106: #{async_infer_forward.1} parent=1 // pred_check
      _
    $region107: #{async_infer_forward.1} parent=1 // pred_check_branch
      %196 = sbr.rel (0) target = $region109
    $region108: #{async_infer_forward.1} parent=1 // pred_region
      %197 = dma.done [#allocation15], 1536
    $region109: #{async_infer_forward.1} parent=1 // pred_fallthru
      _
    // Predicated region
    $region110: #{async_infer_forward.1} parent=1 // pred_check
      _
    $region111: #{async_infer_forward.1} parent=1 // pred_check_branch
      %199 = sbr.rel (0) target = $region113
    $region112: #{async_infer_forward.1} parent=1 // pred_region
      %200 = dma.done [#allocation18], 16
    $region113: #{async_infer_forward.1} parent=1 // pred_fallthru
      _
    // Predicated region
    $region114: #{async_infer_forward.1} parent=1 // pred_check
      _
    $region115: #{async_infer_forward.1} parent=1 // pred_check_branch
      %202 = sbr.rel (0) target = $region117
    $region116: #{async_infer_forward.1} parent=1 // pred_region
      %203 = dma.done [#allocation18], 1024
    $region117: #{async_infer_forward.1} parent=1 // pred_fallthru
      _
    %v204 = vld [vmem:[#allocation2] sm:$0xff]
    %v205 = vld [vmem:[#allocation2 + $0x8] sm:$0xff]
    %v206 = vld [vmem:[#allocation5] sm:$0xff]
    %v207 = vld [vmem:[#allocation5 + $0x8] sm:$0xff]
    %v208 = vld [vmem:[#allocation7] sm:$0xff]
    %v209 = vld [vmem:[#allocation7 + $0x8] sm:$0xff]
    %v210 = vld [vmem:[#allocation7 + $0x10] sm:$0xff]
    %v211 = vld [vmem:[#allocation7 + $0x18] sm:$0xff]
    %v212 = vld [vmem:[#allocation8] sm:$0x1]
    %v213 = vld [vmem:[#allocation10] sm:$0xff]
    %v214 = vld [vmem:[#allocation10 + $0x8] sm:$0xff]
    %v215 = vld [vmem:[#allocation10 + $0x10] sm:$0xff]
    %v216 = vld [vmem:[#allocation10 + $0x18] sm:$0xff]
    %v217 = vld [vmem:[#allocation10 + $0x20] sm:$0xff]
    %v218 = vld [vmem:[#allocation10 + $0x28] sm:$0xff]
    %v219 = vld [vmem:[#allocation10 + $0x30] sm:$0xff]
    %v220 = vld [vmem:[#allocation10 + $0x38] sm:$0xff]
    %v221 = vld [vmem:[#allocation10 + $0x40] sm:$0xff]
    %v222 = vld [vmem:[#allocation10 + $0x48] sm:$0xff]
    %v223 = vld [vmem:[#allocation10 + $0x50] sm:$0xff]
    %v224 = vld [vmem:[#allocation10 + $0x58] sm:$0xff]
    %v225 = vld [vmem:[#allocation11] sm:$0x1]
    %v226 = vld [vmem:[%s6] sm:$0x1]
    %v227 = vld [vmem:[%s7] sm:$0x1]
    %v228 = vmul.f32 %v204, %v206
    %v229 = vmul.f32 %v205, %v207
    %vm230 = vcmask 261120
    %v232 = vsel %vm230, %v228, 0
    %v235 = vsel %vm230, %v229, 0
    %237 = vmatprep.subr.mxu0 0.0
    %238 = vmatpush1.msra.mxu0 0.0
    %239 = vmatprep.subr.mxu0 0.0
    %240 = vmatpush1.msra.mxu0 0.0
    %241 = vmatprep.subr.mxu0 0.0
    %242 = vmatpush1.msra.mxu0 0.0
    %243 = vmatprep.subr.mxu0 0.0
    %244 = vmatpush1.msra.mxu0 0.0
    %245 = vmatprep.subr.mxu0 0.0
    %246 = vmatpush1.msra.mxu0 0.0
    %247 = vmatprep.subr.mxu0 0.0
    %248 = vmatpush1.msra.mxu0 0.0
    %249 = vmatprep.subr.mxu0 0.0
    %250 = vmatpush1.msra.mxu0 0.0
    %251 = vmatprep.subr.mxu0 0.0
    %252 = vmatpush1.msra.mxu0 0.0
    %253 = vmatprep.subr.mxu0 0.0
    %254 = vmatpush1.msra.mxu0 0.0
    %255 = vmatprep.subr.mxu0 0.0
    %256 = vmatpush1.msra.mxu0 0.0
    %257 = vmatprep.subr.mxu0 0.0
    %258 = vmatpush1.msra.mxu0 0.0
    %259 = vmatprep.subr.mxu0 0.0
    %260 = vmatpush1.msra.mxu0 0.0
    %261 = vmatprep.subr.mxu0 0.0
    %262 = vmatpush1.msra.mxu0 %v211
    %263 = vmatprep.subr.mxu0 0.0
    %264 = vmatpush1.msra.mxu0 %v210
    %265 = vmatprep.subr.mxu0 0.0
    %266 = vmatpush1.msra.mxu0 %v209
    %267 = vmatprep.subr.mxu0 0.0
    %268 = vmatpush1.msra.mxu0 %v208
    %269 = vmatprep.subr.mxu0 0.0
    %270 = vmatpush2.msra.mxu0 0.0
    %271 = vmatprep.subr.mxu0 0.0
    %272 = vmatpush2.msra.mxu0 0.0
    %273 = vmatprep.subr.mxu0 0.0
    %274 = vmatpush2.msra.mxu0 0.0
    %275 = vmatprep.subr.mxu0 0.0
    %276 = vmatpush2.msra.mxu0 0.0
    %277 = vmatprep.subr.mxu0 0.0
    %278 = vmatpush2.msra.mxu0 0.0
    %279 = vmatprep.subr.mxu0 0.0
    %280 = vmatpush2.msra.mxu0 0.0
    %281 = vmatprep.subr.mxu0 0.0
    %282 = vmatpush2.msra.mxu0 0.0
    %283 = vmatprep.subr.mxu0 0.0
    %284 = vmatpush2.msra.mxu0 0.0
    %285 = vmatprep.subr.mxu0 0.0
    %286 = vmatpush2.msra.mxu0 0.0
    %287 = vmatprep.subr.mxu0 0.0
    %288 = vmatpush2.msra.mxu0 0.0
    %289 = vmatprep.subr.mxu0 0.0
    %290 = vmatpush2.msra.mxu0 0.0
    %291 = vmatprep.subr.mxu0 0.0
    %292 = vmatpush2.msra.mxu0 0.0
    %293 = vmatprep.subr.mxu0 0.0
    %294 = vmatpush2.msra.mxu0 0.0
    %295 = vmatprep.subr.mxu0 0.0
    %296 = vmatpush2.msra.mxu0 0.0
    %297 = vmatprep.subr.mxu0 0.0
    %298 = vmatpush2.msra.mxu0 0.0
    %299 = vmatprep.subr.mxu0 0.0
    %300 = vmatpush2.msra.mxu0 0.0
    %301 = vmatprep.mubr.f32.mxu0 0.0
    %302 = vmatmul.mubr.f32.gmra.mxu0 %v232
    %v303 = vpop.f32.mrf.mxu0
    %v304 = vadd.f32 0.0, %v303
    %v305 = vpop.f32.mrf.mxu0
    %306 = vmatprep.mubr.f32.mxu0 0.0
    %307 = vmatmul.mubr.f32.gmra.mxu0 %v235
    %v308 = vpop.f32.mrf.mxu0
    %v309 = vadd.f32 0.0, %v308
    %v310 = vpop.f32.mrf.mxu0
    %311 = vdwg.mxu0
    %v312 = vtanh.pop %v304
    %v313 = vtanh.pop %v309
    %v315 = vlaneseq
    %v316 = vshrl.u32 %v315, 7
    %v317 = vsub.s32 0, %v316
    %v318 = vrot.slane %v212, %v317
    %v320 = vmul.f32 %v312, %v318
    %v321 = vmul.f32 %v313, %v318
    %vm322 = vcmask 130048
    %v323 = vsel %vm322, %v320, 0.0
    %324 = vadd.xlane.f32.xlu0 %v323
    %v325 = vpop.xlane.xlu0 %324
    %v326 = vsel %vm322, %v321, 0.0
    %327 = vadd.xlane.f32.xlu0 %v326
    %v328 = vpop.xlane.xlu0 %327
    %v329 = vlaneseq
    %v330 = vshrl.u32 %v329, 7
    %v331 = vadd.s32 %v330, 8
    %vm332 = vcmp.lt.s32.totalorder %v330, 0
    %v333 = vsub.s32 0, %v330
    %v334 = vsel %vm332, %v333, %v330
    %v335 = vshrl.u32 %v334, 1
    %v336 = vand.u32 %v334, 1
    %v337 = vsub.s32 0, %v336
    %v338 = vsel %vm332, %v337, %v336
    %vm339 = vcmp.lt.s32.totalorder %v331, 0
    %v340 = vsub.s32 0, %v331
    %v341 = vsel %vm339, %v340, %v331
    %v342 = vshrl.u32 %v341, 1
    %v343 = vand.u32 %v341, 1
    %v344 = vsub.s32 0, %v343
    %v345 = vsel %vm339, %v344, %v343
    %vm346 = vcmp.ne.s32.totalorder %v338, 0
    %vm347 = vcmp.ne.s32.totalorder %v345, 0
    %vm348 = vcmp.lt.s32.totalorder %v338, 0
    %vm349 = vcmp.lt.s32.totalorder %v345, 0
    %vm350 = vmand %vm348, %vm346
    %vm351 = vmand %vm349, %vm347
    %v352 = vadd.s32 %v338, 2
    %v353 = vadd.s32 %v345, 2
    %v354 = vsel %vm350, %v352, %v338
    %v355 = vsel %vm351, %v353, %v345
    %vm356 = vcmp.eq.s32.totalorder %v354, 0
    %vm357 = vcmp.eq.s32.totalorder %v355, 0
    %v358 = vsel %vm356, %v325, -inf
    %v359 = vsel %vm357, %v328, -inf
    %v360 = vmax.f32 %v358, %v359
    %v361 = vrot.slane %v360, 4
    %v362 = vmax.f32 %v360, %v361
    %v363 = vrot.slane %v362, 2
    %v364 = vmax.f32 %v362, %v363
    %v365 = vrot.slane %v364, 1
    %v366 = vmax.f32 %v364, %v365
    %v367 = vsel %vm356, %v366, 0.0
    %v368 = vsel %vm357, %v366, 0.0
    %vm369 = vcmp.eq.s32.totalorder %v354, 1
    %vm370 = vcmp.eq.s32.totalorder %v355, 1
    %v371 = vsel %vm369, %v325, -inf
    %v372 = vsel %vm370, %v328, -inf
    %v373 = vmax.f32 %v371, %v372
    %v374 = vrot.slane %v373, 4
    %v375 = vmax.f32 %v373, %v374
    %v376 = vrot.slane %v375, 2
    %v377 = vmax.f32 %v375, %v376
    %v378 = vrot.slane %v377, 1
    %v379 = vmax.f32 %v377, %v378
    %v380 = vsel %vm369, %v379, %v367
    %v381 = vsel %vm370, %v379, %v368
    %v382 = vsub.f32 %v325, %v380
    %v383 = vsub.f32 %v328, %v381
    %v384 = vmul.f32 %v382, 1.442695
    %v385 = vpow.pop %v384
    %v386 = vmul.f32 %v383, 1.442695
    %v387 = vpow.pop %v386
    %v388 = vsel %vm356, %v385, 0.0
    %v389 = vsel %vm357, %v387, 0.0
    %v390 = vadd.f32 %v388, %v389
    %v391 = vrot.slane %v390, 4
    %v392 = vadd.f32 %v390, %v391
    %v393 = vrot.slane %v392, 2
    %v394 = vadd.f32 %v392, %v393
    %v395 = vrot.slane %v394, 1
    %v396 = vadd.f32 %v394, %v395
    %v397 = vsel %vm356, %v396, 1.0
    %v398 = vsel %vm357, %v396, 1.0
    %v399 = vsel %vm369, %v385, 0.0
    %v400 = vsel %vm370, %v387, 0.0
    %v401 = vadd.f32 %v399, %v400
    %v402 = vrot.slane %v401, 4
    %v403 = vadd.f32 %v401, %v402
    %v404 = vrot.slane %v403, 2
    %v405 = vadd.f32 %v403, %v404
    %v406 = vrot.slane %v405, 1
    %v407 = vadd.f32 %v405, %v406
    %v408 = vsel %vm369, %v407, %v397
    %v409 = vsel %vm370, %v407, %v398
    %v410 = vrcp.pop %v408
    %v411 = vmul.f32 %v385, %v410
    %v412 = vrcp.pop %v409
    %v413 = vmul.f32 %v387, %v412
    %v414 = vmul.f32 %v204, %v411
    %v415 = vmul.f32 %v205, %v413
    %v416 = vmul.f32 %v206, %v414
    %v417 = vmul.f32 %v207, %v415
    %420 = vrot.lane.b32.xlu0 %v414, 32
    %v421 = vpop.permute.xlu0 %420
    %422 = vrot.lane.b32.xlu0 %v415, 32
    %v423 = vpop.permute.xlu0 %422
    %428 = vrot.lane.b32.xlu0 %v416, 64
    %v429 = vpop.permute.xlu0 %428
    %430 = vrot.lane.b32.xlu0 %v417, 64
    %v431 = vpop.permute.xlu0 %430
    %v434 = vsel %vm230, %v206, %v421
    %v435 = vsel %vm230, %v207, %v423
    %vm436 = vcmask 523264
    %v437 = vsel %vm436, %v434, %v429
    %v438 = vsel %vm436, %v435, %v431
    %v440 = vlaneseq
    %v441 = vshrl.u32 %v440, 7
    %v442 = vsub.s32 0, %v441
    %v443 = vrot.slane %v225, %v442
    %vm445 = vcmask 785408
    %v447 = vsel %vm445, %v437, 0
    %v450 = vsel %vm445, %v438, 0
    %452 = vmatprep.subr.mxu0 0.0
    %453 = vmatpush1.msra.mxu0 0.0
    %454 = vmatprep.subr.mxu0 0.0
    %455 = vmatpush1.msra.mxu0 0.0
    %456 = vmatprep.subr.mxu0 0.0
    %457 = vmatpush1.msra.mxu0 0.0
    %458 = vmatprep.subr.mxu0 0.0
    %459 = vmatpush1.msra.mxu0 0.0
    %460 = vmatprep.subr.mxu0 0.0
    %461 = vmatpush1.msra.mxu0 %v224
    %462 = vmatprep.subr.mxu0 0.0
    %463 = vmatpush1.msra.mxu0 %v223
    %464 = vmatprep.subr.mxu0 0.0
    %465 = vmatpush1.msra.mxu0 %v222
    %466 = vmatprep.subr.mxu0 0.0
    %467 = vmatpush1.msra.mxu0 %v221
    %468 = vmatprep.subr.mxu0 0.0
    %469 = vmatpush1.msra.mxu0 %v220
    %470 = vmatprep.subr.mxu0 0.0
    %471 = vmatpush1.msra.mxu0 %v219
    %472 = vmatprep.subr.mxu0 0.0
    %473 = vmatpush1.msra.mxu0 %v218
    %474 = vmatprep.subr.mxu0 0.0
    %475 = vmatpush1.msra.mxu0 %v217
    %476 = vmatprep.subr.mxu0 0.0
    %477 = vmatpush1.msra.mxu0 %v216
    %478 = vmatprep.subr.mxu0 0.0
    %479 = vmatpush1.msra.mxu0 %v215
    %480 = vmatprep.subr.mxu0 0.0
    %481 = vmatpush1.msra.mxu0 %v214
    %482 = vmatprep.subr.mxu0 0.0
    %483 = vmatpush1.msra.mxu0 %v213
    %484 = vmatprep.subr.mxu0 0.0
    %485 = vmatpush2.msra.mxu0 0.0
    %486 = vmatprep.subr.mxu0 0.0
    %487 = vmatpush2.msra.mxu0 0.0
    %488 = vmatprep.subr.mxu0 0.0
    %489 = vmatpush2.msra.mxu0 0.0
    %490 = vmatprep.subr.mxu0 0.0
    %491 = vmatpush2.msra.mxu0 0.0
    %492 = vmatprep.subr.mxu0 0.0
    %493 = vmatpush2.msra.mxu0 0.0
    %494 = vmatprep.subr.mxu0 0.0
    %495 = vmatpush2.msra.mxu0 0.0
    %496 = vmatprep.subr.mxu0 0.0
    %497 = vmatpush2.msra.mxu0 0.0
    %498 = vmatprep.subr.mxu0 0.0
    %499 = vmatpush2.msra.mxu0 0.0
    %500 = vmatprep.subr.mxu0 0.0
    %501 = vmatpush2.msra.mxu0 0.0
    %502 = vmatprep.subr.mxu0 0.0
    %503 = vmatpush2.msra.mxu0 0.0
    %504 = vmatprep.subr.mxu0 0.0
    %505 = vmatpush2.msra.mxu0 0.0
    %506 = vmatprep.subr.mxu0 0.0
    %507 = vmatpush2.msra.mxu0 0.0
    %508 = vmatprep.subr.mxu0 0.0
    %509 = vmatpush2.msra.mxu0 0.0
    %510 = vmatprep.subr.mxu0 0.0
    %511 = vmatpush2.msra.mxu0 0.0
    %512 = vmatprep.subr.mxu0 0.0
    %513 = vmatpush2.msra.mxu0 0.0
    %514 = vmatprep.subr.mxu0 0.0
    %515 = vmatpush2.msra.mxu0 0.0
    %516 = vmatprep.mubr.f32.mxu0 0.0
    %517 = vmatmul.mubr.f32.gmra.mxu0 %v447
    %v518 = vpop.f32.mrf.mxu0
    %v519 = vadd.f32 %v443, %v518
    %v520 = vpop.f32.mrf.mxu0
    %521 = vmatprep.mubr.f32.mxu0 0.0
    %522 = vmatmul.mubr.f32.gmra.mxu0 %v450
    %v523 = vpop.f32.mrf.mxu0
    %v524 = vadd.f32 %v443, %v523
    %v525 = vpop.f32.mrf.mxu0
    %526 = vdwg.mxu0
    %v527 = vmax.f32 %v519, 0.0
    %v528 = vmax.f32 %v524, 0.0
    %v529 = vsel %vm230, %v527, 0.0
    %530 = vadd.xlane.f32.xlu0 %v529
    %v531 = vpop.xlane.xlu0 %530
    %v532 = vsel %vm230, %v528, 0.0
    %533 = vadd.xlane.f32.xlu0 %v532
    %v534 = vpop.xlane.xlu0 %533
    %v535 = vrcp.pop 32.0
    %v536 = vmul.f32 %v531, %v535
    %v537 = vmul.f32 %v534, %v535
    %v538 = vsub.f32 %v527, %v536
    %v539 = vsub.f32 %v528, %v537
    %v540 = vmul.f32 %v538, %v538
    %v541 = vmul.f32 %v539, %v539
    %v542 = vsel %vm230, %v540, 0.0
    %543 = vadd.xlane.f32.xlu0 %v542
    %v544 = vpop.xlane.xlu0 %543
    %v545 = vsel %vm230, %v541, 0.0
    %546 = vadd.xlane.f32.xlu0 %v545
    %v547 = vpop.xlane.xlu0 %546
    %v548 = vmul.f32 %v544, %v535
    %v549 = vmul.f32 %v547, %v535
    %v550 = vadd.f32 %v548, 1e-05
    %v551 = vadd.f32 %v549, 1e-05
    %v552 = vrsqrt.pop %v550
    %v553 = vrsqrt.pop %v551
    %v554 = vmul.f32 %v538, %v552
    %v555 = vmul.f32 %v539, %v553
    %v557 = vlaneseq
    %v558 = vshrl.u32 %v557, 7
    %v559 = vsub.s32 0, %v558
    %v560 = vrot.slane %v226, %v559
    %v562 = vmul.f32 %v554, %v560
    %v563 = vmul.f32 %v555, %v560
    %v565 = vlaneseq
    %v566 = vshrl.u32 %v565, 7
    %v567 = vsub.s32 0, %v566
    %v568 = vrot.slane %v227, %v567
    %v570 = vadd.f32 %v562, %v568
    %v571 = vadd.f32 %v563, %v568
    %v572 = vld [vmem:[#allocation13] sm:$0xff]
    %v573 = vld [vmem:[#allocation13 + $0x8] sm:$0xff]
    %v574 = vld [vmem:[#allocation13 + $0x10] sm:$0xff]
    %v575 = vld [vmem:[#allocation13 + $0x18] sm:$0xff]
    %v576 = vld [vmem:[#allocation14] sm:$0x1]
    %v577 = vld [vmem:[#allocation16] sm:$0xff]
    %v578 = vld [vmem:[#allocation16 + $0x8] sm:$0xff]
    %v579 = vld [vmem:[#allocation16 + $0x10] sm:$0xff]
    %v580 = vld [vmem:[#allocation16 + $0x18] sm:$0xff]
    %v581 = vld [vmem:[#allocation16 + $0x20] sm:$0xff]
    %v582 = vld [vmem:[#allocation16 + $0x28] sm:$0xff]
    %v583 = vld [vmem:[#allocation16 + $0x30] sm:$0xff]
    %v584 = vld [vmem:[#allocation16 + $0x38] sm:$0xff]
    %v585 = vld [vmem:[#allocation16 + $0x40] sm:$0xff]
    %v586 = vld [vmem:[#allocation16 + $0x48] sm:$0xff]
    %v587 = vld [vmem:[#allocation16 + $0x50] sm:$0xff]
    %v588 = vld [vmem:[#allocation16 + $0x58] sm:$0xff]
    %v589 = vld [vmem:[#allocation17] sm:$0x1]
    %v590 = vld [vmem:[%s12] sm:$0x1]
    %v591 = vld [vmem:[%s13] sm:$0x1]
    %v592 = vmul.f32 %v570, %v204
    %v593 = vmul.f32 %v571, %v205
    %v595 = vsel %vm230, %v592, 0
    %v598 = vsel %vm230, %v593, 0
    %600 = vmatprep.subr.mxu0 0.0
    %601 = vmatpush1.msra.mxu0 0.0
    %602 = vmatprep.subr.mxu0 0.0
    %603 = vmatpush1.msra.mxu0 0.0
    %604 = vmatprep.subr.mxu0 0.0
    %605 = vmatpush1.msra.mxu0 0.0
    %606 = vmatprep.subr.mxu0 0.0
    %607 = vmatpush1.msra.mxu0 0.0
    %608 = vmatprep.subr.mxu0 0.0
    %609 = vmatpush1.msra.mxu0 0.0
    %610 = vmatprep.subr.mxu0 0.0
    %611 = vmatpush1.msra.mxu0 0.0
    %612 = vmatprep.subr.mxu0 0.0
    %613 = vmatpush1.msra.mxu0 0.0
    %614 = vmatprep.subr.mxu0 0.0
    %615 = vmatpush1.msra.mxu0 0.0
    %616 = vmatprep.subr.mxu0 0.0
    %617 = vmatpush1.msra.mxu0 0.0
    %618 = vmatprep.subr.mxu0 0.0
    %619 = vmatpush1.msra.mxu0 0.0
    %620 = vmatprep.subr.mxu0 0.0
    %621 = vmatpush1.msra.mxu0 0.0
    %622 = vmatprep.subr.mxu0 0.0
    %623 = vmatpush1.msra.mxu0 0.0
    %624 = vmatprep.subr.mxu0 0.0
    %625 = vmatpush1.msra.mxu0 %v575
    %626 = vmatprep.subr.mxu0 0.0
    %627 = vmatpush1.msra.mxu0 %v574
    %628 = vmatprep.subr.mxu0 0.0
    %629 = vmatpush1.msra.mxu0 %v573
    %630 = vmatprep.subr.mxu0 0.0
    %631 = vmatpush1.msra.mxu0 %v572
    %632 = vmatprep.subr.mxu0 0.0
    %633 = vmatpush2.msra.mxu0 0.0
    %634 = vmatprep.subr.mxu0 0.0
    %635 = vmatpush2.msra.mxu0 0.0
    %636 = vmatprep.subr.mxu0 0.0
    %637 = vmatpush2.msra.mxu0 0.0
    %638 = vmatprep.subr.mxu0 0.0
    %639 = vmatpush2.msra.mxu0 0.0
    %640 = vmatprep.subr.mxu0 0.0
    %641 = vmatpush2.msra.mxu0 0.0
    %642 = vmatprep.subr.mxu0 0.0
    %643 = vmatpush2.msra.mxu0 0.0
    %644 = vmatprep.subr.mxu0 0.0
    %645 = vmatpush2.msra.mxu0 0.0
    %646 = vmatprep.subr.mxu0 0.0
    %647 = vmatpush2.msra.mxu0 0.0
    %648 = vmatprep.subr.mxu0 0.0
    %649 = vmatpush2.msra.mxu0 0.0
    %650 = vmatprep.subr.mxu0 0.0
    %651 = vmatpush2.msra.mxu0 0.0
    %652 = vmatprep.subr.mxu0 0.0
    %653 = vmatpush2.msra.mxu0 0.0
    %654 = vmatprep.subr.mxu0 0.0
    %655 = vmatpush2.msra.mxu0 0.0
    %656 = vmatprep.subr.mxu0 0.0
    %657 = vmatpush2.msra.mxu0 0.0
    %658 = vmatprep.subr.mxu0 0.0
    %659 = vmatpush2.msra.mxu0 0.0
    %660 = vmatprep.subr.mxu0 0.0
    %661 = vmatpush2.msra.mxu0 0.0
    %662 = vmatprep.subr.mxu0 0.0
    %663 = vmatpush2.msra.mxu0 0.0
    %664 = vmatprep.mubr.f32.mxu0 0.0
    %665 = vmatmul.mubr.f32.gmra.mxu0 %v595
    %v666 = vpop.f32.mrf.mxu0
    %v667 = vadd.f32 0.0, %v666
    %v668 = vpop.f32.mrf.mxu0
    %669 = vmatprep.mubr.f32.mxu0 0.0
    %670 = vmatmul.mubr.f32.gmra.mxu0 %v598
    %v671 = vpop.f32.mrf.mxu0
    %v672 = vadd.f32 0.0, %v671
    %v673 = vpop.f32.mrf.mxu0
    %674 = vdwg.mxu0
    %v675 = vtanh.pop %v667
    %v676 = vtanh.pop %v672
    %v678 = vlaneseq
    %v679 = vshrl.u32 %v678, 7
    %v680 = vsub.s32 0, %v679
    %v681 = vrot.slane %v576, %v680
    %v683 = vmul.f32 %v675, %v681
    %v684 = vmul.f32 %v676, %v681
    %v685 = vsel %vm322, %v683, 0.0
    %686 = vadd.xlane.f32.xlu0 %v685
    %v687 = vpop.xlane.xlu0 %686
    %v688 = vsel %vm322, %v684, 0.0
    %689 = vadd.xlane.f32.xlu0 %v688
    %v690 = vpop.xlane.xlu0 %689
    %v691 = vsel %vm356, %v687, -inf
    %v692 = vsel %vm357, %v690, -inf
    %v693 = vmax.f32 %v691, %v692
    %v694 = vrot.slane %v693, 4
    %v695 = vmax.f32 %v693, %v694
    %v696 = vrot.slane %v695, 2
    %v697 = vmax.f32 %v695, %v696
    %v698 = vrot.slane %v697, 1
    %v699 = vmax.f32 %v697, %v698
    %v700 = vsel %vm356, %v699, 0.0
    %v701 = vsel %vm357, %v699, 0.0
    %v702 = vsel %vm369, %v687, -inf
    %v703 = vsel %vm370, %v690, -inf
    %v704 = vmax.f32 %v702, %v703
    %v705 = vrot.slane %v704, 4
    %v706 = vmax.f32 %v704, %v705
    %v707 = vrot.slane %v706, 2
    %v708 = vmax.f32 %v706, %v707
    %v709 = vrot.slane %v708, 1
    %v710 = vmax.f32 %v708, %v709
    %v711 = vsel %vm369, %v710, %v700
    %v712 = vsel %vm370, %v710, %v701
    %v713 = vsub.f32 %v687, %v711
    %v714 = vsub.f32 %v690, %v712
    %v715 = vmul.f32 %v713, 1.442695
    %v716 = vpow.pop %v715
    %v717 = vmul.f32 %v714, 1.442695
    %v718 = vpow.pop %v717
    %v719 = vsel %vm356, %v716, 0.0
    %v720 = vsel %vm357, %v718, 0.0
    %v721 = vadd.f32 %v719, %v720
    %v722 = vrot.slane %v721, 4
    %v723 = vadd.f32 %v721, %v722
    %v724 = vrot.slane %v723, 2
    %v725 = vadd.f32 %v723, %v724
    %v726 = vrot.slane %v725, 1
    %v727 = vadd.f32 %v725, %v726
    %v728 = vsel %vm356, %v727, 1.0
    %v729 = vsel %vm357, %v727, 1.0
    %v730 = vsel %vm369, %v716, 0.0
    %v731 = vsel %vm370, %v718, 0.0
    %v732 = vadd.f32 %v730, %v731
    %v733 = vrot.slane %v732, 4
    %v734 = vadd.f32 %v732, %v733
    %v735 = vrot.slane %v734, 2
    %v736 = vadd.f32 %v734, %v735
    %v737 = vrot.slane %v736, 1
    %v738 = vadd.f32 %v736, %v737
    %v739 = vsel %vm369, %v738, %v728
    %v740 = vsel %vm370, %v738, %v729
    %v741 = vrcp.pop %v739
    %v742 = vmul.f32 %v716, %v741
    %v743 = vrcp.pop %v740
    %v744 = vmul.f32 %v718, %v743
    %v745 = vmul.f32 %v570, %v742
    %v746 = vmul.f32 %v571, %v744
    %v747 = vmul.f32 %v204, %v745
    %v748 = vmul.f32 %v205, %v746
    %751 = vrot.lane.b32.xlu0 %v745, 32
    %v752 = vpop.permute.xlu0 %751
    %753 = vrot.lane.b32.xlu0 %v746, 32
    %v754 = vpop.permute.xlu0 %753
    %759 = vrot.lane.b32.xlu0 %v747, 64
    %v760 = vpop.permute.xlu0 %759
    %761 = vrot.lane.b32.xlu0 %v748, 64
    %v762 = vpop.permute.xlu0 %761
    %v765 = vsel %vm230, %v204, %v752
    %v766 = vsel %vm230, %v205, %v754
    %v767 = vsel %vm436, %v765, %v760
    %v768 = vsel %vm436, %v766, %v762
    %v770 = vlaneseq
    %v771 = vshrl.u32 %v770, 7
    %v772 = vsub.s32 0, %v771
    %v773 = vrot.slane %v589, %v772
    %v776 = vsel %vm445, %v767, 0
    %v779 = vsel %vm445, %v768, 0
    %781 = vmatprep.subr.mxu0 0.0
    %782 = vmatpush1.msra.mxu0 0.0
    %783 = vmatprep.subr.mxu0 0.0
    %784 = vmatpush1.msra.mxu0 0.0
    %785 = vmatprep.subr.mxu0 0.0
    %786 = vmatpush1.msra.mxu0 0.0
    %787 = vmatprep.subr.mxu0 0.0
    %788 = vmatpush1.msra.mxu0 0.0
    %789 = vmatprep.subr.mxu0 0.0
    %790 = vmatpush1.msra.mxu0 %v588
    %791 = vmatprep.subr.mxu0 0.0
    %792 = vmatpush1.msra.mxu0 %v587
    %793 = vmatprep.subr.mxu0 0.0
    %794 = vmatpush1.msra.mxu0 %v586
    %795 = vmatprep.subr.mxu0 0.0
    %796 = vmatpush1.msra.mxu0 %v585
    %797 = vmatprep.subr.mxu0 0.0
    %798 = vmatpush1.msra.mxu0 %v584
    %799 = vmatprep.subr.mxu0 0.0
    %800 = vmatpush1.msra.mxu0 %v583
    %801 = vmatprep.subr.mxu0 0.0
    %802 = vmatpush1.msra.mxu0 %v582
    %803 = vmatprep.subr.mxu0 0.0
    %804 = vmatpush1.msra.mxu0 %v581
    %805 = vmatprep.subr.mxu0 0.0
    %806 = vmatpush1.msra.mxu0 %v580
    %807 = vmatprep.subr.mxu0 0.0
    %808 = vmatpush1.msra.mxu0 %v579
    %809 = vmatprep.subr.mxu0 0.0
    %810 = vmatpush1.msra.mxu0 %v578
    %811 = vmatprep.subr.mxu0 0.0
    %812 = vmatpush1.msra.mxu0 %v577
    %813 = vmatprep.subr.mxu0 0.0
    %814 = vmatpush2.msra.mxu0 0.0
    %815 = vmatprep.subr.mxu0 0.0
    %816 = vmatpush2.msra.mxu0 0.0
    %817 = vmatprep.subr.mxu0 0.0
    %818 = vmatpush2.msra.mxu0 0.0
    %819 = vmatprep.subr.mxu0 0.0
    %820 = vmatpush2.msra.mxu0 0.0
    %821 = vmatprep.subr.mxu0 0.0
    %822 = vmatpush2.msra.mxu0 0.0
    %823 = vmatprep.subr.mxu0 0.0
    %824 = vmatpush2.msra.mxu0 0.0
    %825 = vmatprep.subr.mxu0 0.0
    %826 = vmatpush2.msra.mxu0 0.0
    %827 = vmatprep.subr.mxu0 0.0
    %828 = vmatpush2.msra.mxu0 0.0
    %829 = vmatprep.subr.mxu0 0.0
    %830 = vmatpush2.msra.mxu0 0.0
    %831 = vmatprep.subr.mxu0 0.0
    %832 = vmatpush2.msra.mxu0 0.0
    %833 = vmatprep.subr.mxu0 0.0
    %834 = vmatpush2.msra.mxu0 0.0
    %835 = vmatprep.subr.mxu0 0.0
    %836 = vmatpush2.msra.mxu0 0.0
    %837 = vmatprep.subr.mxu0 0.0
    %838 = vmatpush2.msra.mxu0 0.0
    %839 = vmatprep.subr.mxu0 0.0
    %840 = vmatpush2.msra.mxu0 0.0
    %841 = vmatprep.subr.mxu0 0.0
    %842 = vmatpush2.msra.mxu0 0.0
    %843 = vmatprep.subr.mxu0 0.0
    %844 = vmatpush2.msra.mxu0 0.0
    %845 = vmatprep.mubr.f32.mxu0 0.0
    %846 = vmatmul.mubr.f32.gmra.mxu0 %v776
    %v847 = vpop.f32.mrf.mxu0
    %v848 = vadd.f32 %v773, %v847
    %v849 = vpop.f32.mrf.mxu0
    %850 = vmatprep.mubr.f32.mxu0 0.0
    %851 = vmatmul.mubr.f32.gmra.mxu0 %v779
    %v852 = vpop.f32.mrf.mxu0
    %v853 = vadd.f32 %v773, %v852
    %v854 = vpop.f32.mrf.mxu0
    %855 = vdwg.mxu0
    %v856 = vmax.f32 %v848, 0.0
    %v857 = vmax.f32 %v853, 0.0
    %v858 = vsel %vm230, %v856, 0.0
    %859 = vadd.xlane.f32.xlu0 %v858
    %v860 = vpop.xlane.xlu0 %859
    %v861 = vsel %vm230, %v857, 0.0
    %862 = vadd.xlane.f32.xlu0 %v861
    %v863 = vpop.xlane.xlu0 %862
    %v864 = vmul.f32 %v860, %v535
    %v865 = vmul.f32 %v863, %v535
    %v866 = vsub.f32 %v856, %v864
    %v867 = vsub.f32 %v857, %v865
    %v868 = vmul.f32 %v866, %v866
    %v869 = vmul.f32 %v867, %v867
    %v870 = vsel %vm230, %v868, 0.0
    %871 = vadd.xlane.f32.xlu0 %v870
    %v872 = vpop.xlane.xlu0 %871
    %v873 = vsel %vm230, %v869, 0.0
    %874 = vadd.xlane.f32.xlu0 %v873
    %v875 = vpop.xlane.xlu0 %874
    %v876 = vmul.f32 %v872, %v535
    %v877 = vmul.f32 %v875, %v535
    %v878 = vadd.f32 %v876, 1e-05
    %v879 = vadd.f32 %v877, 1e-05
    %v880 = vrsqrt.pop %v878
    %v881 = vrsqrt.pop %v879
    %v882 = vmul.f32 %v866, %v880
    %v883 = vmul.f32 %v867, %v881
    %v885 = vlaneseq
    %v886 = vshrl.u32 %v885, 7
    %v887 = vsub.s32 0, %v886
    %v888 = vrot.slane %v590, %v887
    %v890 = vmul.f32 %v882, %v888
    %v891 = vmul.f32 %v883, %v888
    %v893 = vlaneseq
    %v894 = vshrl.u32 %v893, 7
    %v895 = vsub.s32 0, %v894
    %v896 = vrot.slane %v591, %v895
    %v898 = vadd.f32 %v890, %v896
    %v899 = vadd.f32 %v891, %v896
    %902 = vrot.lane.b32.xlu0 %v898, 32
    %v903 = vpop.permute.xlu0 %902
    %904 = vrot.lane.b32.xlu0 %v899, 32
    %v905 = vpop.permute.xlu0 %904
    %v908 = vsel %vm230, %v204, %v903
    %v909 = vsel %vm230, %v205, %v905
    %912 = vrot.lane.b32.xlu0 %v570, 32
    %v913 = vpop.permute.xlu0 %912
    %914 = vrot.lane.b32.xlu0 %v571, 32
    %v915 = vpop.permute.xlu0 %914
    %v918 = vsel %vm230, %v206, %v913
    %v919 = vsel %vm230, %v207, %v915
    %v920 = vld [vmem:[#allocation19] sm:$0xff]
    %v921 = vld [vmem:[#allocation19 + $0x8] sm:$0xff]
    %v922 = vld [vmem:[#allocation19 + $0x10] sm:$0xff]
    %v923 = vld [vmem:[#allocation19 + $0x18] sm:$0xff]
    %v924 = vld [vmem:[#allocation19 + $0x20] sm:$0xff]
    %v925 = vld [vmem:[#allocation19 + $0x28] sm:$0xff]
    %v926 = vld [vmem:[#allocation19 + $0x30] sm:$0xff]
    %v927 = vld [vmem:[#allocation19 + $0x38] sm:$0xff]
    %v928 = vld [vmem:[%s15] sm:$0x1]
    %v929 = vld [vmem:[%s16] sm:$0xff]
    %v930 = vld [vmem:[%s16 + $0x8] sm:$0xff]
    %v931 = vld [vmem:[%s17] sm:$0xff]
    %v932 = vld [vmem:[%s17 + $0x8] sm:$0xff]
    %v934 = vlaneseq
    %v935 = vshrl.u32 %v934, 7
    %v936 = vsub.s32 0, %v935
    %v937 = vrot.slane %v928, %v936
    %v940 = vsel %vm436, %v908, 0
    %v943 = vsel %vm436, %v909, 0
    %945 = vmatprep.subr.mxu0 0.0
    %946 = vmatpush1.msra.mxu0 0.0
    %947 = vmatprep.subr.mxu0 0.0
    %948 = vmatpush1.msra.mxu0 0.0
    %949 = vmatprep.subr.mxu0 0.0
    %950 = vmatpush1.msra.mxu0 0.0
    %951 = vmatprep.subr.mxu0 0.0
    %952 = vmatpush1.msra.mxu0 0.0
    %953 = vmatprep.subr.mxu0 0.0
    %954 = vmatpush1.msra.mxu0 0.0
    %955 = vmatprep.subr.mxu0 0.0
    %956 = vmatpush1.msra.mxu0 0.0
    %957 = vmatprep.subr.mxu0 0.0
    %958 = vmatpush1.msra.mxu0 0.0
    %959 = vmatprep.subr.mxu0 0.0
    %960 = vmatpush1.msra.mxu0 0.0
    %961 = vmatprep.subr.mxu0 0.0
    %962 = vmatpush1.msra.mxu0 %v927
    %963 = vmatprep.subr.mxu0 0.0
    %964 = vmatpush1.msra.mxu0 %v926
    %965 = vmatprep.subr.mxu0 0.0
    %966 = vmatpush1.msra.mxu0 %v925
    %967 = vmatprep.subr.mxu0 0.0
    %968 = vmatpush1.msra.mxu0 %v924
    %969 = vmatprep.subr.mxu0 0.0
    %970 = vmatpush1.msra.mxu0 %v923
    %971 = vmatprep.subr.mxu0 0.0
    %972 = vmatpush1.msra.mxu0 %v922
    %973 = vmatprep.subr.mxu0 0.0
    %974 = vmatpush1.msra.mxu0 %v921
    %975 = vmatprep.subr.mxu0 0.0
    %976 = vmatpush1.msra.mxu0 %v920
    %977 = vmatprep.subr.mxu0 0.0
    %978 = vmatpush2.msra.mxu0 0.0
    %979 = vmatprep.subr.mxu0 0.0
    %980 = vmatpush2.msra.mxu0 0.0
    %981 = vmatprep.subr.mxu0 0.0
    %982 = vmatpush2.msra.mxu0 0.0
    %983 = vmatprep.subr.mxu0 0.0
    %984 = vmatpush2.msra.mxu0 0.0
    %985 = vmatprep.subr.mxu0 0.0
    %986 = vmatpush2.msra.mxu0 0.0
    %987 = vmatprep.subr.mxu0 0.0
    %988 = vmatpush2.msra.mxu0 0.0
    %989 = vmatprep.subr.mxu0 0.0
    %990 = vmatpush2.msra.mxu0 0.0
    %991 = vmatprep.subr.mxu0 0.0
    %992 = vmatpush2.msra.mxu0 0.0
    %993 = vmatprep.subr.mxu0 0.0
    %994 = vmatpush2.msra.mxu0 0.0
    %995 = vmatprep.subr.mxu0 0.0
    %996 = vmatpush2.msra.mxu0 0.0
    %997 = vmatprep.subr.mxu0 0.0
    %998 = vmatpush2.msra.mxu0 0.0
    %999 = vmatprep.subr.mxu0 0.0
    %1000 = vmatpush2.msra.mxu0 0.0
    %1001 = vmatprep.subr.mxu0 0.0
    %1002 = vmatpush2.msra.mxu0 0.0
    %1003 = vmatprep.subr.mxu0 0.0
    %1004 = vmatpush2.msra.mxu0 0.0
    %1005 = vmatprep.subr.mxu0 0.0
    %1006 = vmatpush2.msra.mxu0 0.0
    %1007 = vmatprep.subr.mxu0 0.0
    %1008 = vmatpush2.msra.mxu0 0.0
    %1009 = vmatprep.mubr.f32.mxu0 0.0
    %1010 = vmatmul.mubr.f32.gmra.mxu0 %v940
    %v1011 = vpop.f32.mrf.mxu0
    %v1012 = vadd.f32 %v937, %v1011
    %v1013 = vpop.f32.mrf.mxu0
    %1014 = vmatprep.mubr.f32.mxu0 0.0
    %1015 = vmatmul.mubr.f32.gmra.mxu0 %v943
    %v1016 = vpop.f32.mrf.mxu0
    %v1017 = vadd.f32 %v937, %v1016
    %v1018 = vpop.f32.mrf.mxu0
    %1019 = vdwg.mxu0
    %v1021 = vsel %vm436, %v918, 0
    %v1024 = vsel %vm436, %v919, 0
    %1026 = vmatprep.subr.mxu0 0.0
    %1027 = vmatpush1.msra.mxu0 0.0
    %1028 = vmatprep.subr.mxu0 0.0
    %1029 = vmatpush1.msra.mxu0 0.0
    %1030 = vmatprep.subr.mxu0 0.0
    %1031 = vmatpush1.msra.mxu0 0.0
    %1032 = vmatprep.subr.mxu0 0.0
    %1033 = vmatpush1.msra.mxu0 0.0
    %1034 = vmatprep.subr.mxu0 0.0
    %1035 = vmatpush1.msra.mxu0 0.0
    %1036 = vmatprep.subr.mxu0 0.0
    %1037 = vmatpush1.msra.mxu0 0.0
    %1038 = vmatprep.subr.mxu0 0.0
    %1039 = vmatpush1.msra.mxu0 0.0
    %1040 = vmatprep.subr.mxu0 0.0
    %1041 = vmatpush1.msra.mxu0 0.0
    %1042 = vmatprep.subr.mxu0 0.0
    %1043 = vmatpush1.msra.mxu0 %v927
    %1044 = vmatprep.subr.mxu0 0.0
    %1045 = vmatpush1.msra.mxu0 %v926
    %1046 = vmatprep.subr.mxu0 0.0
    %1047 = vmatpush1.msra.mxu0 %v925
    %1048 = vmatprep.subr.mxu0 0.0
    %1049 = vmatpush1.msra.mxu0 %v924
    %1050 = vmatprep.subr.mxu0 0.0
    %1051 = vmatpush1.msra.mxu0 %v923
    %1052 = vmatprep.subr.mxu0 0.0
    %1053 = vmatpush1.msra.mxu0 %v922
    %1054 = vmatprep.subr.mxu0 0.0
    %1055 = vmatpush1.msra.mxu0 %v921
    %1056 = vmatprep.subr.mxu0 0.0
    %1057 = vmatpush1.msra.mxu0 %v920
    %1058 = vmatprep.subr.mxu0 0.0
    %1059 = vmatpush2.msra.mxu0 0.0
    %1060 = vmatprep.subr.mxu0 0.0
    %1061 = vmatpush2.msra.mxu0 0.0
    %1062 = vmatprep.subr.mxu0 0.0
    %1063 = vmatpush2.msra.mxu0 0.0
    %1064 = vmatprep.subr.mxu0 0.0
    %1065 = vmatpush2.msra.mxu0 0.0
    %1066 = vmatprep.subr.mxu0 0.0
    %1067 = vmatpush2.msra.mxu0 0.0
    %1068 = vmatprep.subr.mxu0 0.0
    %1069 = vmatpush2.msra.mxu0 0.0
    %1070 = vmatprep.subr.mxu0 0.0
    %1071 = vmatpush2.msra.mxu0 0.0
    %1072 = vmatprep.subr.mxu0 0.0
    %1073 = vmatpush2.msra.mxu0 0.0
    %1074 = vmatprep.subr.mxu0 0.0
    %1075 = vmatpush2.msra.mxu0 0.0
    %1076 = vmatprep.subr.mxu0 0.0
    %1077 = vmatpush2.msra.mxu0 0.0
    %1078 = vmatprep.subr.mxu0 0.0
    %1079 = vmatpush2.msra.mxu0 0.0
    %1080 = vmatprep.subr.mxu0 0.0
    %1081 = vmatpush2.msra.mxu0 0.0
    %1082 = vmatprep.subr.mxu0 0.0
    %1083 = vmatpush2.msra.mxu0 0.0
    %1084 = vmatprep.subr.mxu0 0.0
    %1085 = vmatpush2.msra.mxu0 0.0
    %1086 = vmatprep.subr.mxu0 0.0
    %1087 = vmatpush2.msra.mxu0 0.0
    %1088 = vmatprep.subr.mxu0 0.0
    %1089 = vmatpush2.msra.mxu0 0.0
    %1090 = vmatprep.mubr.f32.mxu0 0.0
    %1091 = vmatmul.mubr.f32.gmra.mxu0 %v1021
    %v1092 = vpop.f32.mrf.mxu0
    %v1093 = vadd.f32 %v937, %v1092
    %v1094 = vpop.f32.mrf.mxu0
    %1095 = vmatprep.mubr.f32.mxu0 0.0
    %1096 = vmatmul.mubr.f32.gmra.mxu0 %v1024
    %v1097 = vpop.f32.mrf.mxu0
    %v1098 = vadd.f32 %v937, %v1097
    %v1099 = vpop.f32.mrf.mxu0
    %1100 = vdwg.mxu0
    %v1102 = vrot.slane %v1093, 6
    %vm1104 = vcmask 1041408
    %v1105 = vsel %vm1104, %v1012, %v1102
    %v1107 = vsel %vm322, 0.0, 0
    %1109 = vmatprep.subr.mxu0 0.0
    %1110 = vmatpush1.msra.mxu0 0.0
    %1111 = vmatprep.subr.mxu0 0.0
    %1112 = vmatpush1.msra.mxu0 0.0
    %1113 = vmatprep.subr.mxu0 0.0
    %1114 = vmatpush1.msra.mxu0 0.0
    %1115 = vmatprep.subr.mxu0 0.0
    %1116 = vmatpush1.msra.mxu0 0.0
    %1117 = vmatprep.subr.mxu0 0.0
    %1118 = vmatpush1.msra.mxu0 0.0
    %1119 = vmatprep.subr.mxu0 0.0
    %1120 = vmatpush1.msra.mxu0 0.0
    %1121 = vmatprep.subr.mxu0 0.0
    %1122 = vmatpush1.msra.mxu0 0.0
    %1123 = vmatprep.subr.mxu0 0.0
    %1124 = vmatpush1.msra.mxu0 0.0
    %1125 = vmatprep.subr.mxu0 0.0
    %1126 = vmatpush1.msra.mxu0 0.0
    %1127 = vmatprep.subr.mxu0 0.0
    %1128 = vmatpush1.msra.mxu0 0.0
    %1129 = vmatprep.subr.mxu0 0.0
    %1130 = vmatpush1.msra.mxu0 0.0
    %1131 = vmatprep.subr.mxu0 0.0
    %1132 = vmatpush1.msra.mxu0 0.0
    %1133 = vmatprep.subr.mxu0 0.0
    %1134 = vmatpush1.msra.mxu0 0.0
    %1135 = vmatprep.subr.mxu0 0.0
    %1136 = vmatpush1.msra.mxu0 0.0
    %1137 = vmatprep.subr.mxu0 0.0
    %1138 = vmatpush1.msra.mxu0 %v930
    %1139 = vmatprep.subr.mxu0 0.0
    %1140 = vmatpush1.msra.mxu0 %v929
    %1141 = vmatprep.subr.mxu0 0.0
    %1142 = vmatpush2.msra.mxu0 0.0
    %1143 = vmatprep.subr.mxu0 0.0
    %1144 = vmatpush2.msra.mxu0 0.0
    %1145 = vmatprep.subr.mxu0 0.0
    %1146 = vmatpush2.msra.mxu0 0.0
    %1147 = vmatprep.subr.mxu0 0.0
    %1148 = vmatpush2.msra.mxu0 0.0
    %1149 = vmatprep.subr.mxu0 0.0
    %1150 = vmatpush2.msra.mxu0 0.0
    %1151 = vmatprep.subr.mxu0 0.0
    %1152 = vmatpush2.msra.mxu0 0.0
    %1153 = vmatprep.subr.mxu0 0.0
    %1154 = vmatpush2.msra.mxu0 0.0
    %1155 = vmatprep.subr.mxu0 0.0
    %1156 = vmatpush2.msra.mxu0 0.0
    %1157 = vmatprep.subr.mxu0 0.0
    %1158 = vmatpush2.msra.mxu0 0.0
    %1159 = vmatprep.subr.mxu0 0.0
    %1160 = vmatpush2.msra.mxu0 0.0
    %1161 = vmatprep.subr.mxu0 0.0
    %1162 = vmatpush2.msra.mxu0 0.0
    %1163 = vmatprep.subr.mxu0 0.0
    %1164 = vmatpush2.msra.mxu0 0.0
    %1165 = vmatprep.subr.mxu0 0.0
    %1166 = vmatpush2.msra.mxu0 0.0
    %1167 = vmatprep.subr.mxu0 0.0
    %1168 = vmatpush2.msra.mxu0 0.0
    %1169 = vmatprep.subr.mxu0 0.0
    %1170 = vmatpush2.msra.mxu0 0.0
    %1171 = vmatprep.subr.mxu0 0.0
    %1172 = vmatpush2.msra.mxu0 0.0
    %1173 = vmatprep.mubr.f32.mxu0 0.0
    %1174 = vmatmul.mubr.f32.gmra.mxu0 %v1107
    %v1175 = vpop.f32.mrf.mxu0
    %v1176 = vadd.f32 %v1105, %v1175
    %v1177 = vpop.f32.mrf.mxu0
    %1178 = vdwg.mxu0
    %v1180 = vrot.slane %v1017, 6
    %v1183 = vrot.slane %v1098, 4
    %v1185 = vsel %vm1104, %v1180, %v1183
    %1187 = vrot.lane.b32.xlu0 %v1185, 64
    %v1188 = vpop.permute.xlu0 %1187
    %1190 = vmatprep.subr.mxu0 0.0
    %1191 = vmatpush1.msra.mxu0 0.0
    %1192 = vmatprep.subr.mxu0 0.0
    %1193 = vmatpush1.msra.mxu0 0.0
    %1194 = vmatprep.subr.mxu0 0.0
    %1195 = vmatpush1.msra.mxu0 0.0
    %1196 = vmatprep.subr.mxu0 0.0
    %1197 = vmatpush1.msra.mxu0 0.0
    %1198 = vmatprep.subr.mxu0 0.0
    %1199 = vmatpush1.msra.mxu0 0.0
    %1200 = vmatprep.subr.mxu0 0.0
    %1201 = vmatpush1.msra.mxu0 0.0
    %1202 = vmatprep.subr.mxu0 0.0
    %1203 = vmatpush1.msra.mxu0 0.0
    %1204 = vmatprep.subr.mxu0 0.0
    %1205 = vmatpush1.msra.mxu0 0.0
    %1206 = vmatprep.subr.mxu0 0.0
    %1207 = vmatpush1.msra.mxu0 0.0
    %1208 = vmatprep.subr.mxu0 0.0
    %1209 = vmatpush1.msra.mxu0 0.0
    %1210 = vmatprep.subr.mxu0 0.0
    %1211 = vmatpush1.msra.mxu0 0.0
    %1212 = vmatprep.subr.mxu0 0.0
    %1213 = vmatpush1.msra.mxu0 0.0
    %1214 = vmatprep.subr.mxu0 0.0
    %1215 = vmatpush1.msra.mxu0 0.0
    %1216 = vmatprep.subr.mxu0 0.0
    %1217 = vmatpush1.msra.mxu0 0.0
    %1218 = vmatprep.subr.mxu0 0.0
    %1219 = vmatpush1.msra.mxu0 %v932
    %1220 = vmatprep.subr.mxu0 0.0
    %1221 = vmatpush1.msra.mxu0 %v931
    %1222 = vmatprep.subr.mxu0 0.0
    %1223 = vmatpush2.msra.mxu0 0.0
    %1224 = vmatprep.subr.mxu0 0.0
    %1225 = vmatpush2.msra.mxu0 0.0
    %1226 = vmatprep.subr.mxu0 0.0
    %1227 = vmatpush2.msra.mxu0 0.0
    %1228 = vmatprep.subr.mxu0 0.0
    %1229 = vmatpush2.msra.mxu0 0.0
    %1230 = vmatprep.subr.mxu0 0.0
    %1231 = vmatpush2.msra.mxu0 0.0
    %1232 = vmatprep.subr.mxu0 0.0
    %1233 = vmatpush2.msra.mxu0 0.0
    %1234 = vmatprep.subr.mxu0 0.0
    %1235 = vmatpush2.msra.mxu0 0.0
    %1236 = vmatprep.subr.mxu0 0.0
    %1237 = vmatpush2.msra.mxu0 0.0
    %1238 = vmatprep.subr.mxu0 0.0
    %1239 = vmatpush2.msra.mxu0 0.0
    %1240 = vmatprep.subr.mxu0 0.0
    %1241 = vmatpush2.msra.mxu0 0.0
    %1242 = vmatprep.subr.mxu0 0.0
    %1243 = vmatpush2.msra.mxu0 0.0
    %1244 = vmatprep.subr.mxu0 0.0
    %1245 = vmatpush2.msra.mxu0 0.0
    %1246 = vmatprep.subr.mxu0 0.0
    %1247 = vmatpush2.msra.mxu0 0.0
    %1248 = vmatprep.subr.mxu0 0.0
    %1249 = vmatpush2.msra.mxu0 0.0
    %1250 = vmatprep.subr.mxu0 0.0
    %1251 = vmatpush2.msra.mxu0 0.0
    %1252 = vmatprep.subr.mxu0 0.0
    %1253 = vmatpush2.msra.mxu0 0.0
    %1254 = vmatprep.mubr.f32.mxu0 0.0
    %1255 = vmatmul.mubr.f32.gmra.mxu0 %v1107
    %v1256 = vpop.f32.mrf.mxu0
    %v1257 = vadd.f32 %v1188, %v1256
    %v1258 = vpop.f32.mrf.mxu0
    %1259 = vdwg.mxu0
    %v1260 = vxor.u32 %v1176, 2147483648
    %v1261 = vmul.f32 %v1260, 1.442695
    %v1262 = vpow.pop %v1261
    %v1263 = vadd.f32 %v1262, 1.0
    %v1264 = vrcp.pop %v1263
    %v1265 = vmul.f32 1.0, %v1264
    %v1266 = vtanh.pop %v1176
    %v1267 = vxor.u32 %v1257, 2147483648
    %v1268 = vmul.f32 %v1267, 1.442695
    %v1269 = vpow.pop %v1268
    %v1270 = vadd.f32 %v1269, 1.0
    %v1271 = vrcp.pop %v1270
    %v1272 = vmul.f32 1.0, %v1271
    %v1273 = vtanh.pop %v1257
    %v1274 = vmul.f32 %v1265, 0.0
    %1276 = vrot.lane.b32.xlu0 %v1266, 96
    %v1277 = vpop.permute.xlu0 %1276
    %v1279 = vmul.f32 %v1265, %v1277
    %1281 = vrot.lane.b32.xlu0 %v1279, 16
    %v1282 = vpop.permute.xlu0 %1281
    %v1284 = vadd.f32 %v1274, %v1282
    %v1285 = vmul.f32 %v1272, 0.0
    %1287 = vrot.lane.b32.xlu0 %v1273, 96
    %v1288 = vpop.permute.xlu0 %1287
    %v1290 = vmul.f32 %v1272, %v1288
    %1292 = vrot.lane.b32.xlu0 %v1290, 16
    %v1293 = vpop.permute.xlu0 %1292
    %v1295 = vadd.f32 %v1285, %v1293
    %v1296 = vtanh.pop %v1284
    %1298 = vrot.lane.b32.xlu0 %v1296, 32
    %v1299 = vpop.permute.xlu0 %1298
    %v1301 = vmul.f32 %v1265, %v1299
    %v1302 = vtanh.pop %v1295
    %1304 = vrot.lane.b32.xlu0 %v1302, 32
    %v1305 = vpop.permute.xlu0 %1304
    %v1307 = vmul.f32 %v1272, %v1305
    %v1309 = vrot.slane %v1012, 2
    %v1311 = vsel %vm1104, %v1309, %v1093
    %1313 = vrot.lane.b32.xlu0 %v1301, 80
    %v1314 = vpop.permute.xlu0 %1313
    %v1315 = vsel %vm322, %v1314, 0
    %1317 = vmatprep.subr.mxu0 0.0
    %1318 = vmatpush1.msra.mxu0 0.0
    %1319 = vmatprep.subr.mxu0 0.0
    %1320 = vmatpush1.msra.mxu0 0.0
    %1321 = vmatprep.subr.mxu0 0.0
    %1322 = vmatpush1.msra.mxu0 0.0
    %1323 = vmatprep.subr.mxu0 0.0
    %1324 = vmatpush1.msra.mxu0 0.0
    %1325 = vmatprep.subr.mxu0 0.0
    %1326 = vmatpush1.msra.mxu0 0.0
    %1327 = vmatprep.subr.mxu0 0.0
    %1328 = vmatpush1.msra.mxu0 0.0
    %1329 = vmatprep.subr.mxu0 0.0
    %1330 = vmatpush1.msra.mxu0 0.0
    %1331 = vmatprep.subr.mxu0 0.0
    %1332 = vmatpush1.msra.mxu0 0.0
    %1333 = vmatprep.subr.mxu0 0.0
    %1334 = vmatpush1.msra.mxu0 0.0
    %1335 = vmatprep.subr.mxu0 0.0
    %1336 = vmatpush1.msra.mxu0 0.0
    %1337 = vmatprep.subr.mxu0 0.0
    %1338 = vmatpush1.msra.mxu0 0.0
    %1339 = vmatprep.subr.mxu0 0.0
    %1340 = vmatpush1.msra.mxu0 0.0
    %1341 = vmatprep.subr.mxu0 0.0
    %1342 = vmatpush1.msra.mxu0 0.0
    %1343 = vmatprep.subr.mxu0 0.0
    %1344 = vmatpush1.msra.mxu0 0.0
    %1345 = vmatprep.subr.mxu0 0.0
    %1346 = vmatpush1.msra.mxu0 %v930
    %1347 = vmatprep.subr.mxu0 0.0
    %1348 = vmatpush1.msra.mxu0 %v929
    %1349 = vmatprep.subr.mxu0 0.0
    %1350 = vmatpush2.msra.mxu0 0.0
    %1351 = vmatprep.subr.mxu0 0.0
    %1352 = vmatpush2.msra.mxu0 0.0
    %1353 = vmatprep.subr.mxu0 0.0
    %1354 = vmatpush2.msra.mxu0 0.0
    %1355 = vmatprep.subr.mxu0 0.0
    %1356 = vmatpush2.msra.mxu0 0.0
    %1357 = vmatprep.subr.mxu0 0.0
    %1358 = vmatpush2.msra.mxu0 0.0
    %1359 = vmatprep.subr.mxu0 0.0
    %1360 = vmatpush2.msra.mxu0 0.0
    %1361 = vmatprep.subr.mxu0 0.0
    %1362 = vmatpush2.msra.mxu0 0.0
    %1363 = vmatprep.subr.mxu0 0.0
    %1364 = vmatpush2.msra.mxu0 0.0
    %1365 = vmatprep.subr.mxu0 0.0
    %1366 = vmatpush2.msra.mxu0 0.0
    %1367 = vmatprep.subr.mxu0 0.0
    %1368 = vmatpush2.msra.mxu0 0.0
    %1369 = vmatprep.subr.mxu0 0.0
    %1370 = vmatpush2.msra.mxu0 0.0
    %1371 = vmatprep.subr.mxu0 0.0
    %1372 = vmatpush2.msra.mxu0 0.0
    %1373 = vmatprep.subr.mxu0 0.0
    %1374 = vmatpush2.msra.mxu0 0.0
    %1375 = vmatprep.subr.mxu0 0.0
    %1376 = vmatpush2.msra.mxu0 0.0
    %1377 = vmatprep.subr.mxu0 0.0
    %1378 = vmatpush2.msra.mxu0 0.0
    %1379 = vmatprep.subr.mxu0 0.0
    %1380 = vmatpush2.msra.mxu0 0.0
    %1381 = vmatprep.mubr.f32.mxu0 0.0
    %1382 = vmatmul.mubr.f32.gmra.mxu0 %v1315
    %v1383 = vpop.f32.mrf.mxu0
    %v1384 = vadd.f32 %v1311, %v1383
    %v1385 = vpop.f32.mrf.mxu0
    %1386 = vdwg.mxu0
    %v1387 = vrot.slane %v1017, 4
    %v1389 = vrot.slane %v1098, 2
    %v1391 = vsel %vm1104, %v1387, %v1389
    %1393 = vrot.lane.b32.xlu0 %v1307, 80
    %v1394 = vpop.permute.xlu0 %1393
    %1396 = vrot.lane.b32.xlu0 %v1391, 64
    %v1397 = vpop.permute.xlu0 %1396
    %v1399 = vsel %vm322, %v1394, 0
    %1401 = vmatprep.subr.mxu0 0.0
    %1402 = vmatpush1.msra.mxu0 0.0
    %1403 = vmatprep.subr.mxu0 0.0
    %1404 = vmatpush1.msra.mxu0 0.0
    %1405 = vmatprep.subr.mxu0 0.0
    %1406 = vmatpush1.msra.mxu0 0.0
    %1407 = vmatprep.subr.mxu0 0.0
    %1408 = vmatpush1.msra.mxu0 0.0
    %1409 = vmatprep.subr.mxu0 0.0
    %1410 = vmatpush1.msra.mxu0 0.0
    %1411 = vmatprep.subr.mxu0 0.0
    %1412 = vmatpush1.msra.mxu0 0.0
    %1413 = vmatprep.subr.mxu0 0.0
    %1414 = vmatpush1.msra.mxu0 0.0
    %1415 = vmatprep.subr.mxu0 0.0
    %1416 = vmatpush1.msra.mxu0 0.0
    %1417 = vmatprep.subr.mxu0 0.0
    %1418 = vmatpush1.msra.mxu0 0.0
    %1419 = vmatprep.subr.mxu0 0.0
    %1420 = vmatpush1.msra.mxu0 0.0
    %1421 = vmatprep.subr.mxu0 0.0
    %1422 = vmatpush1.msra.mxu0 0.0
    %1423 = vmatprep.subr.mxu0 0.0
    %1424 = vmatpush1.msra.mxu0 0.0
    %1425 = vmatprep.subr.mxu0 0.0
    %1426 = vmatpush1.msra.mxu0 0.0
    %1427 = vmatprep.subr.mxu0 0.0
    %1428 = vmatpush1.msra.mxu0 0.0
    %1429 = vmatprep.subr.mxu0 0.0
    %1430 = vmatpush1.msra.mxu0 %v932
    %1431 = vmatprep.subr.mxu0 0.0
    %1432 = vmatpush1.msra.mxu0 %v931
    %1433 = vmatprep.subr.mxu0 0.0
    %1434 = vmatpush2.msra.mxu0 0.0
    %1435 = vmatprep.subr.mxu0 0.0
    %1436 = vmatpush2.msra.mxu0 0.0
    %1437 = vmatprep.subr.mxu0 0.0
    %1438 = vmatpush2.msra.mxu0 0.0
    %1439 = vmatprep.subr.mxu0 0.0
    %1440 = vmatpush2.msra.mxu0 0.0
    %1441 = vmatprep.subr.mxu0 0.0
    %1442 = vmatpush2.msra.mxu0 0.0
    %1443 = vmatprep.subr.mxu0 0.0
    %1444 = vmatpush2.msra.mxu0 0.0
    %1445 = vmatprep.subr.mxu0 0.0
    %1446 = vmatpush2.msra.mxu0 0.0
    %1447 = vmatprep.subr.mxu0 0.0
    %1448 = vmatpush2.msra.mxu0 0.0
    %1449 = vmatprep.subr.mxu0 0.0
    %1450 = vmatpush2.msra.mxu0 0.0
    %1451 = vmatprep.subr.mxu0 0.0
    %1452 = vmatpush2.msra.mxu0 0.0
    %1453 = vmatprep.subr.mxu0 0.0
    %1454 = vmatpush2.msra.mxu0 0.0
    %1455 = vmatprep.subr.mxu0 0.0
    %1456 = vmatpush2.msra.mxu0 0.0
    %1457 = vmatprep.subr.mxu0 0.0
    %1458 = vmatpush2.msra.mxu0 0.0
    %1459 = vmatprep.subr.mxu0 0.0
    %1460 = vmatpush2.msra.mxu0 0.0
    %1461 = vmatprep.subr.mxu0 0.0
    %1462 = vmatpush2.msra.mxu0 0.0
    %1463 = vmatprep.subr.mxu0 0.0
    %1464 = vmatpush2.msra.mxu0 0.0
    %1465 = vmatprep.mubr.f32.mxu0 0.0
    %1466 = vmatmul.mubr.f32.gmra.mxu0 %v1399
    %v1467 = vpop.f32.mrf.mxu0
    %v1468 = vadd.f32 %v1397, %v1467
    %v1469 = vpop.f32.mrf.mxu0
    %1470 = vdwg.mxu0
    %v1471 = vxor.u32 %v1384, 2147483648
    %v1472 = vmul.f32 %v1471, 1.442695
    %v1473 = vpow.pop %v1472
    %v1474 = vadd.f32 %v1473, 1.0
    %v1475 = vrcp.pop %v1474
    %v1476 = vmul.f32 1.0, %v1475
    %v1477 = vtanh.pop %v1384
    %v1478 = vxor.u32 %v1468, 2147483648
    %v1479 = vmul.f32 %v1478, 1.442695
    %v1480 = vpow.pop %v1479
    %v1481 = vadd.f32 %v1480, 1.0
    %v1482 = vrcp.pop %v1481
    %v1483 = vmul.f32 1.0, %v1482
    %v1484 = vtanh.pop %v1468
    %v1485 = vmul.f32 %v1476, %v1284
    %1487 = vrot.lane.b32.xlu0 %v1477, 96
    %v1488 = vpop.permute.xlu0 %1487
    %v1490 = vmul.f32 %v1476, %v1488
    %1492 = vrot.lane.b32.xlu0 %v1490, 16
    %v1493 = vpop.permute.xlu0 %1492
    %v1495 = vadd.f32 %v1485, %v1493
    %v1496 = vmul.f32 %v1483, %v1295
    %1498 = vrot.lane.b32.xlu0 %v1484, 96
    %v1499 = vpop.permute.xlu0 %1498
    %v1501 = vmul.f32 %v1483, %v1499
    %1503 = vrot.lane.b32.xlu0 %v1501, 16
    %v1504 = vpop.permute.xlu0 %1503
    %v1506 = vadd.f32 %v1496, %v1504
    %v1507 = vtanh.pop %v1495
    %1509 = vrot.lane.b32.xlu0 %v1507, 32
    %v1510 = vpop.permute.xlu0 %1509
    %v1512 = vmul.f32 %v1476, %v1510
    %v1513 = vtanh.pop %v1506
    %1515 = vrot.lane.b32.xlu0 %v1513, 32
    %v1516 = vpop.permute.xlu0 %1515
    %v1518 = vmul.f32 %v1483, %v1516
    %v1519 = vrot.slane %v1012, 4
    %v1521 = vrot.slane %v1093, 2
    %v1523 = vsel %vm1104, %v1519, %v1521
    %1525 = vrot.lane.b32.xlu0 %v1512, 80
    %v1526 = vpop.permute.xlu0 %1525
    %v1527 = vsel %vm322, %v1526, 0
    %1529 = vmatprep.subr.mxu0 0.0
    %1530 = vmatpush1.msra.mxu0 0.0
    %1531 = vmatprep.subr.mxu0 0.0
    %1532 = vmatpush1.msra.mxu0 0.0
    %1533 = vmatprep.subr.mxu0 0.0
    %1534 = vmatpush1.msra.mxu0 0.0
    %1535 = vmatprep.subr.mxu0 0.0
    %1536 = vmatpush1.msra.mxu0 0.0
    %1537 = vmatprep.subr.mxu0 0.0
    %1538 = vmatpush1.msra.mxu0 0.0
    %1539 = vmatprep.subr.mxu0 0.0
    %1540 = vmatpush1.msra.mxu0 0.0
    %1541 = vmatprep.subr.mxu0 0.0
    %1542 = vmatpush1.msra.mxu0 0.0
    %1543 = vmatprep.subr.mxu0 0.0
    %1544 = vmatpush1.msra.mxu0 0.0
    %1545 = vmatprep.subr.mxu0 0.0
    %1546 = vmatpush1.msra.mxu0 0.0
    %1547 = vmatprep.subr.mxu0 0.0
    %1548 = vmatpush1.msra.mxu0 0.0
    %1549 = vmatprep.subr.mxu0 0.0
    %1550 = vmatpush1.msra.mxu0 0.0
    %1551 = vmatprep.subr.mxu0 0.0
    %1552 = vmatpush1.msra.mxu0 0.0
    %1553 = vmatprep.subr.mxu0 0.0
    %1554 = vmatpush1.msra.mxu0 0.0
    %1555 = vmatprep.subr.mxu0 0.0
    %1556 = vmatpush1.msra.mxu0 0.0
    %1557 = vmatprep.subr.mxu0 0.0
    %1558 = vmatpush1.msra.mxu0 %v930
    %1559 = vmatprep.subr.mxu0 0.0
    %1560 = vmatpush1.msra.mxu0 %v929
    %1561 = vmatprep.subr.mxu0 0.0
    %1562 = vmatpush2.msra.mxu0 0.0
    %1563 = vmatprep.subr.mxu0 0.0
    %1564 = vmatpush2.msra.mxu0 0.0
    %1565 = vmatprep.subr.mxu0 0.0
    %1566 = vmatpush2.msra.mxu0 0.0
    %1567 = vmatprep.subr.mxu0 0.0
    %1568 = vmatpush2.msra.mxu0 0.0
    %1569 = vmatprep.subr.mxu0 0.0
    %1570 = vmatpush2.msra.mxu0 0.0
    %1571 = vmatprep.subr.mxu0 0.0
    %1572 = vmatpush2.msra.mxu0 0.0
    %1573 = vmatprep.subr.mxu0 0.0
    %1574 = vmatpush2.msra.mxu0 0.0
    %1575 = vmatprep.subr.mxu0 0.0
    %1576 = vmatpush2.msra.mxu0 0.0
    %1577 = vmatprep.subr.mxu0 0.0
    %1578 = vmatpush2.msra.mxu0 0.0
    %1579 = vmatprep.subr.mxu0 0.0
    %1580 = vmatpush2.msra.mxu0 0.0
    %1581 = vmatprep.subr.mxu0 0.0
    %1582 = vmatpush2.msra.mxu0 0.0
    %1583 = vmatprep.subr.mxu0 0.0
    %1584 = vmatpush2.msra.mxu0 0.0
    %1585 = vmatprep.subr.mxu0 0.0
    %1586 = vmatpush2.msra.mxu0 0.0
    %1587 = vmatprep.subr.mxu0 0.0
    %1588 = vmatpush2.msra.mxu0 0.0
    %1589 = vmatprep.subr.mxu0 0.0
    %1590 = vmatpush2.msra.mxu0 0.0
    %1591 = vmatprep.subr.mxu0 0.0
    %1592 = vmatpush2.msra.mxu0 0.0
    %1593 = vmatprep.mubr.f32.mxu0 0.0
    %1594 = vmatmul.mubr.f32.gmra.mxu0 %v1527
    %v1595 = vpop.f32.mrf.mxu0
    %v1596 = vadd.f32 %v1523, %v1595
    %v1597 = vpop.f32.mrf.mxu0
    %1598 = vdwg.mxu0
    %v1599 = vrot.slane %v1017, 2
    %v1601 = vsel %vm1104, %v1599, %v1098
    %1603 = vrot.lane.b32.xlu0 %v1518, 80
    %v1604 = vpop.permute.xlu0 %1603
    %1606 = vrot.lane.b32.xlu0 %v1601, 64
    %v1607 = vpop.permute.xlu0 %1606
    %v1609 = vsel %vm322, %v1604, 0
    %1611 = vmatprep.subr.mxu0 0.0
    %1612 = vmatpush1.msra.mxu0 0.0
    %1613 = vmatprep.subr.mxu0 0.0
    %1614 = vmatpush1.msra.mxu0 0.0
    %1615 = vmatprep.subr.mxu0 0.0
    %1616 = vmatpush1.msra.mxu0 0.0
    %1617 = vmatprep.subr.mxu0 0.0
    %1618 = vmatpush1.msra.mxu0 0.0
    %1619 = vmatprep.subr.mxu0 0.0
    %1620 = vmatpush1.msra.mxu0 0.0
    %1621 = vmatprep.subr.mxu0 0.0
    %1622 = vmatpush1.msra.mxu0 0.0
    %1623 = vmatprep.subr.mxu0 0.0
    %1624 = vmatpush1.msra.mxu0 0.0
    %1625 = vmatprep.subr.mxu0 0.0
    %1626 = vmatpush1.msra.mxu0 0.0
    %1627 = vmatprep.subr.mxu0 0.0
    %1628 = vmatpush1.msra.mxu0 0.0
    %1629 = vmatprep.subr.mxu0 0.0
    %1630 = vmatpush1.msra.mxu0 0.0
    %1631 = vmatprep.subr.mxu0 0.0
    %1632 = vmatpush1.msra.mxu0 0.0
    %1633 = vmatprep.subr.mxu0 0.0
    %1634 = vmatpush1.msra.mxu0 0.0
    %1635 = vmatprep.subr.mxu0 0.0
    %1636 = vmatpush1.msra.mxu0 0.0
    %1637 = vmatprep.subr.mxu0 0.0
    %1638 = vmatpush1.msra.mxu0 0.0
    %1639 = vmatprep.subr.mxu0 0.0
    %1640 = vmatpush1.msra.mxu0 %v932
    %1641 = vmatprep.subr.mxu0 0.0
    %1642 = vmatpush1.msra.mxu0 %v931
    %1643 = vmatprep.subr.mxu0 0.0
    %1644 = vmatpush2.msra.mxu0 0.0
    %1645 = vmatprep.subr.mxu0 0.0
    %1646 = vmatpush2.msra.mxu0 0.0
    %1647 = vmatprep.subr.mxu0 0.0
    %1648 = vmatpush2.msra.mxu0 0.0
    %1649 = vmatprep.subr.mxu0 0.0
    %1650 = vmatpush2.msra.mxu0 0.0
    %1651 = vmatprep.subr.mxu0 0.0
    %1652 = vmatpush2.msra.mxu0 0.0
    %1653 = vmatprep.subr.mxu0 0.0
    %1654 = vmatpush2.msra.mxu0 0.0
    %1655 = vmatprep.subr.mxu0 0.0
    %1656 = vmatpush2.msra.mxu0 0.0
    %1657 = vmatprep.subr.mxu0 0.0
    %1658 = vmatpush2.msra.mxu0 0.0
    %1659 = vmatprep.subr.mxu0 0.0
    %1660 = vmatpush2.msra.mxu0 0.0
    %1661 = vmatprep.subr.mxu0 0.0
    %1662 = vmatpush2.msra.mxu0 0.0
    %1663 = vmatprep.subr.mxu0 0.0
    %1664 = vmatpush2.msra.mxu0 0.0
    %1665 = vmatprep.subr.mxu0 0.0
    %1666 = vmatpush2.msra.mxu0 0.0
    %1667 = vmatprep.subr.mxu0 0.0
    %1668 = vmatpush2.msra.mxu0 0.0
    %1669 = vmatprep.subr.mxu0 0.0
    %1670 = vmatpush2.msra.mxu0 0.0
    %1671 = vmatprep.subr.mxu0 0.0
    %1672 = vmatpush2.msra.mxu0 0.0
    %1673 = vmatprep.subr.mxu0 0.0
    %1674 = vmatpush2.msra.mxu0 0.0
    %1675 = vmatprep.mubr.f32.mxu0 0.0
    %1676 = vmatmul.mubr.f32.gmra.mxu0 %v1609
    %v1677 = vpop.f32.mrf.mxu0
    %v1678 = vadd.f32 %v1607, %v1677
    %v1679 = vpop.f32.mrf.mxu0
    %1680 = vdwg.mxu0
    %v1681 = vxor.u32 %v1596, 2147483648
    %v1682 = vmul.f32 %v1681, 1.442695
    %v1683 = vpow.pop %v1682
    %v1684 = vadd.f32 %v1683, 1.0
    %v1685 = vrcp.pop %v1684
    %v1686 = vmul.f32 1.0, %v1685
    %v1687 = vtanh.pop %v1596
    %v1688 = vxor.u32 %v1678, 2147483648
    %v1689 = vmul.f32 %v1688, 1.442695
    %v1690 = vpow.pop %v1689
    %v1691 = vadd.f32 %v1690, 1.0
    %v1692 = vrcp.pop %v1691
    %v1693 = vmul.f32 1.0, %v1692
    %v1694 = vtanh.pop %v1678
    %v1695 = vmul.f32 %v1686, %v1495
    %1697 = vrot.lane.b32.xlu0 %v1687, 96
    %v1698 = vpop.permute.xlu0 %1697
    %v1700 = vmul.f32 %v1686, %v1698
    %1702 = vrot.lane.b32.xlu0 %v1700, 16
    %v1703 = vpop.permute.xlu0 %1702
    %v1705 = vadd.f32 %v1695, %v1703
    %v1706 = vmul.f32 %v1693, %v1506
    %1708 = vrot.lane.b32.xlu0 %v1694, 96
    %v1709 = vpop.permute.xlu0 %1708
    %v1711 = vmul.f32 %v1693, %v1709
    %1713 = vrot.lane.b32.xlu0 %v1711, 16
    %v1714 = vpop.permute.xlu0 %1713
    %v1716 = vadd.f32 %v1706, %v1714
    %v1717 = vtanh.pop %v1705
    %1719 = vrot.lane.b32.xlu0 %v1717, 32
    %v1720 = vpop.permute.xlu0 %1719
    %v1722 = vmul.f32 %v1686, %v1720
    %v1723 = vtanh.pop %v1716
    %1725 = vrot.lane.b32.xlu0 %v1723, 32
    %v1726 = vpop.permute.xlu0 %1725
    %v1728 = vmul.f32 %v1693, %v1726
    %v1729 = vrot.slane %v1012, 6
    %v1731 = vrot.slane %v1093, 4
    %v1733 = vsel %vm1104, %v1729, %v1731
    %1735 = vrot.lane.b32.xlu0 %v1722, 80
    %v1736 = vpop.permute.xlu0 %1735
    %v1737 = vsel %vm322, %v1736, 0
    %1739 = vmatprep.subr.mxu0 0.0
    %1740 = vmatpush1.msra.mxu0 0.0
    %1741 = vmatprep.subr.mxu0 0.0
    %1742 = vmatpush1.msra.mxu0 0.0
    %1743 = vmatprep.subr.mxu0 0.0
    %1744 = vmatpush1.msra.mxu0 0.0
    %1745 = vmatprep.subr.mxu0 0.0
    %1746 = vmatpush1.msra.mxu0 0.0
    %1747 = vmatprep.subr.mxu0 0.0
    %1748 = vmatpush1.msra.mxu0 0.0
    %1749 = vmatprep.subr.mxu0 0.0
    %1750 = vmatpush1.msra.mxu0 0.0
    %1751 = vmatprep.subr.mxu0 0.0
    %1752 = vmatpush1.msra.mxu0 0.0
    %1753 = vmatprep.subr.mxu0 0.0
    %1754 = vmatpush1.msra.mxu0 0.0
    %1755 = vmatprep.subr.mxu0 0.0
    %1756 = vmatpush1.msra.mxu0 0.0
    %1757 = vmatprep.subr.mxu0 0.0
    %1758 = vmatpush1.msra.mxu0 0.0
    %1759 = vmatprep.subr.mxu0 0.0
    %1760 = vmatpush1.msra.mxu0 0.0
    %1761 = vmatprep.subr.mxu0 0.0
    %1762 = vmatpush1.msra.mxu0 0.0
    %1763 = vmatprep.subr.mxu0 0.0
    %1764 = vmatpush1.msra.mxu0 0.0
    %1765 = vmatprep.subr.mxu0 0.0
    %1766 = vmatpush1.msra.mxu0 0.0
    %1767 = vmatprep.subr.mxu0 0.0
    %1768 = vmatpush1.msra.mxu0 %v930
    %1769 = vmatprep.subr.mxu0 0.0
    %1770 = vmatpush1.msra.mxu0 %v929
    %1771 = vmatprep.subr.mxu0 0.0
    %1772 = vmatpush2.msra.mxu0 0.0
    %1773 = vmatprep.subr.mxu0 0.0
    %1774 = vmatpush2.msra.mxu0 0.0
    %1775 = vmatprep.subr.mxu0 0.0
    %1776 = vmatpush2.msra.mxu0 0.0
    %1777 = vmatprep.subr.mxu0 0.0
    %1778 = vmatpush2.msra.mxu0 0.0
    %1779 = vmatprep.subr.mxu0 0.0
    %1780 = vmatpush2.msra.mxu0 0.0
    %1781 = vmatprep.subr.mxu0 0.0
    %1782 = vmatpush2.msra.mxu0 0.0
    %1783 = vmatprep.subr.mxu0 0.0
    %1784 = vmatpush2.msra.mxu0 0.0
    %1785 = vmatprep.subr.mxu0 0.0
    %1786 = vmatpush2.msra.mxu0 0.0
    %1787 = vmatprep.subr.mxu0 0.0
    %1788 = vmatpush2.msra.mxu0 0.0
    %1789 = vmatprep.subr.mxu0 0.0
    %1790 = vmatpush2.msra.mxu0 0.0
    %1791 = vmatprep.subr.mxu0 0.0
    %1792 = vmatpush2.msra.mxu0 0.0
    %1793 = vmatprep.subr.mxu0 0.0
    %1794 = vmatpush2.msra.mxu0 0.0
    %1795 = vmatprep.subr.mxu0 0.0
    %1796 = vmatpush2.msra.mxu0 0.0
    %1797 = vmatprep.subr.mxu0 0.0
    %1798 = vmatpush2.msra.mxu0 0.0
    %1799 = vmatprep.subr.mxu0 0.0
    %1800 = vmatpush2.msra.mxu0 0.0
    %1801 = vmatprep.subr.mxu0 0.0
    %1802 = vmatpush2.msra.mxu0 0.0
    %1803 = vmatprep.mubr.f32.mxu0 0.0
    %1804 = vmatmul.mubr.f32.gmra.mxu0 %v1737
    %v1805 = vpop.f32.mrf.mxu0
    %v1806 = vadd.f32 %v1733, %v1805
    %v1807 = vpop.f32.mrf.mxu0
    %1808 = vdwg.mxu0
    %v1809 = vrot.slane %v1098, 6
    %v1811 = vsel %vm1104, %v1017, %v1809
    %1813 = vrot.lane.b32.xlu0 %v1728, 80
    %v1814 = vpop.permute.xlu0 %1813
    %1816 = vrot.lane.b32.xlu0 %v1811, 64
    %v1817 = vpop.permute.xlu0 %1816
    %v1819 = vsel %vm322, %v1814, 0
    %1821 = vmatprep.subr.mxu0 0.0
    %1822 = vmatpush1.msra.mxu0 0.0
    %1823 = vmatprep.subr.mxu0 0.0
    %1824 = vmatpush1.msra.mxu0 0.0
    %1825 = vmatprep.subr.mxu0 0.0
    %1826 = vmatpush1.msra.mxu0 0.0
    %1827 = vmatprep.subr.mxu0 0.0
    %1828 = vmatpush1.msra.mxu0 0.0
    %1829 = vmatprep.subr.mxu0 0.0
    %1830 = vmatpush1.msra.mxu0 0.0
    %1831 = vmatprep.subr.mxu0 0.0
    %1832 = vmatpush1.msra.mxu0 0.0
    %1833 = vmatprep.subr.mxu0 0.0
    %1834 = vmatpush1.msra.mxu0 0.0
    %1835 = vmatprep.subr.mxu0 0.0
    %1836 = vmatpush1.msra.mxu0 0.0
    %1837 = vmatprep.subr.mxu0 0.0
    %1838 = vmatpush1.msra.mxu0 0.0
    %1839 = vmatprep.subr.mxu0 0.0
    %1840 = vmatpush1.msra.mxu0 0.0
    %1841 = vmatprep.subr.mxu0 0.0
    %1842 = vmatpush1.msra.mxu0 0.0
    %1843 = vmatprep.subr.mxu0 0.0
    %1844 = vmatpush1.msra.mxu0 0.0
    %1845 = vmatprep.subr.mxu0 0.0
    %1846 = vmatpush1.msra.mxu0 0.0
    %1847 = vmatprep.subr.mxu0 0.0
    %1848 = vmatpush1.msra.mxu0 0.0
    %1849 = vmatprep.subr.mxu0 0.0
    %1850 = vmatpush1.msra.mxu0 %v932
    %1851 = vmatprep.subr.mxu0 0.0
    %1852 = vmatpush1.msra.mxu0 %v931
    %1853 = vmatprep.subr.mxu0 0.0
    %1854 = vmatpush2.msra.mxu0 0.0
    %1855 = vmatprep.subr.mxu0 0.0
    %1856 = vmatpush2.msra.mxu0 0.0
    %1857 = vmatprep.subr.mxu0 0.0
    %1858 = vmatpush2.msra.mxu0 0.0
    %1859 = vmatprep.subr.mxu0 0.0
    %1860 = vmatpush2.msra.mxu0 0.0
    %1861 = vmatprep.subr.mxu0 0.0
    %1862 = vmatpush2.msra.mxu0 0.0
    %1863 = vmatprep.subr.mxu0 0.0
    %1864 = vmatpush2.msra.mxu0 0.0
    %1865 = vmatprep.subr.mxu0 0.0
    %1866 = vmatpush2.msra.mxu0 0.0
    %1867 = vmatprep.subr.mxu0 0.0
    %1868 = vmatpush2.msra.mxu0 0.0
    %1869 = vmatprep.subr.mxu0 0.0
    %1870 = vmatpush2.msra.mxu0 0.0
    %1871 = vmatprep.subr.mxu0 0.0
    %1872 = vmatpush2.msra.mxu0 0.0
    %1873 = vmatprep.subr.mxu0 0.0
    %1874 = vmatpush2.msra.mxu0 0.0
    %1875 = vmatprep.subr.mxu0 0.0
    %1876 = vmatpush2.msra.mxu0 0.0
    %1877 = vmatprep.subr.mxu0 0.0
    %1878 = vmatpush2.msra.mxu0 0.0
    %1879 = vmatprep.subr.mxu0 0.0
    %1880 = vmatpush2.msra.mxu0 0.0
    %1881 = vmatprep.subr.mxu0 0.0
    %1882 = vmatpush2.msra.mxu0 0.0
    %1883 = vmatprep.subr.mxu0 0.0
    %1884 = vmatpush2.msra.mxu0 0.0
    %1885 = vmatprep.mubr.f32.mxu0 0.0
    %1886 = vmatmul.mubr.f32.gmra.mxu0 %v1819
    %v1887 = vpop.f32.mrf.mxu0
    %v1888 = vadd.f32 %v1817, %v1887
    %v1889 = vpop.f32.mrf.mxu0
    %1890 = vdwg.mxu0
    %v1891 = vxor.u32 %v1806, 2147483648
    %v1892 = vmul.f32 %v1891, 1.442695
    %v1893 = vpow.pop %v1892
    %v1894 = vadd.f32 %v1893, 1.0
    %v1895 = vrcp.pop %v1894
    %v1896 = vmul.f32 1.0, %v1895
    %v1897 = vtanh.pop %v1806
    %v1898 = vxor.u32 %v1888, 2147483648
    %v1899 = vmul.f32 %v1898, 1.442695
    %v1900 = vpow.pop %v1899
    %v1901 = vadd.f32 %v1900, 1.0
    %v1902 = vrcp.pop %v1901
    %v1903 = vmul.f32 1.0, %v1902
    %v1904 = vtanh.pop %v1888
    %v1905 = vmul.f32 %v1896, %v1705
    %1907 = vrot.lane.b32.xlu0 %v1897, 96
    %v1908 = vpop.permute.xlu0 %1907
    %v1910 = vmul.f32 %v1896, %v1908
    %1912 = vrot.lane.b32.xlu0 %v1910, 16
    %v1913 = vpop.permute.xlu0 %1912
    %v1915 = vadd.f32 %v1905, %v1913
    %v1916 = vmul.f32 %v1903, %v1716
    %1918 = vrot.lane.b32.xlu0 %v1904, 96
    %v1919 = vpop.permute.xlu0 %1918
    %v1921 = vmul.f32 %v1903, %v1919
    %1923 = vrot.lane.b32.xlu0 %v1921, 16
    %v1924 = vpop.permute.xlu0 %1923
    %v1926 = vadd.f32 %v1916, %v1924
    %v1927 = vtanh.pop %v1915
    %1929 = vrot.lane.b32.xlu0 %v1927, 32
    %v1930 = vpop.permute.xlu0 %1929
    %v1932 = vmul.f32 %v1896, %v1930
    %v1933 = vtanh.pop %v1926
    %1935 = vrot.lane.b32.xlu0 %v1933, 32
    %v1936 = vpop.permute.xlu0 %1935
    %v1938 = vmul.f32 %v1903, %v1936
    %1940 = vrot.lane.b32.xlu0 %v1932, 80
    %v1941 = vpop.permute.xlu0 %1940
    %v1942 = vsel %vm322, %v1941, 0
    %1944 = vmatprep.subr.mxu0 0.0
    %1945 = vmatpush1.msra.mxu0 0.0
    %1946 = vmatprep.subr.mxu0 0.0
    %1947 = vmatpush1.msra.mxu0 0.0
    %1948 = vmatprep.subr.mxu0 0.0
    %1949 = vmatpush1.msra.mxu0 0.0
    %1950 = vmatprep.subr.mxu0 0.0
    %1951 = vmatpush1.msra.mxu0 0.0
    %1952 = vmatprep.subr.mxu0 0.0
    %1953 = vmatpush1.msra.mxu0 0.0
    %1954 = vmatprep.subr.mxu0 0.0
    %1955 = vmatpush1.msra.mxu0 0.0
    %1956 = vmatprep.subr.mxu0 0.0
    %1957 = vmatpush1.msra.mxu0 0.0
    %1958 = vmatprep.subr.mxu0 0.0
    %1959 = vmatpush1.msra.mxu0 0.0
    %1960 = vmatprep.subr.mxu0 0.0
    %1961 = vmatpush1.msra.mxu0 0.0
    %1962 = vmatprep.subr.mxu0 0.0
    %1963 = vmatpush1.msra.mxu0 0.0
    %1964 = vmatprep.subr.mxu0 0.0
    %1965 = vmatpush1.msra.mxu0 0.0
    %1966 = vmatprep.subr.mxu0 0.0
    %1967 = vmatpush1.msra.mxu0 0.0
    %1968 = vmatprep.subr.mxu0 0.0
    %1969 = vmatpush1.msra.mxu0 0.0
    %1970 = vmatprep.subr.mxu0 0.0
    %1971 = vmatpush1.msra.mxu0 0.0
    %1972 = vmatprep.subr.mxu0 0.0
    %1973 = vmatpush1.msra.mxu0 %v930
    %1974 = vmatprep.subr.mxu0 0.0
    %1975 = vmatpush1.msra.mxu0 %v929
    %1976 = vmatprep.subr.mxu0 0.0
    %1977 = vmatpush2.msra.mxu0 0.0
    %1978 = vmatprep.subr.mxu0 0.0
    %1979 = vmatpush2.msra.mxu0 0.0
    %1980 = vmatprep.subr.mxu0 0.0
    %1981 = vmatpush2.msra.mxu0 0.0
    %1982 = vmatprep.subr.mxu0 0.0
    %1983 = vmatpush2.msra.mxu0 0.0
    %1984 = vmatprep.subr.mxu0 0.0
    %1985 = vmatpush2.msra.mxu0 0.0
    %1986 = vmatprep.subr.mxu0 0.0
    %1987 = vmatpush2.msra.mxu0 0.0
    %1988 = vmatprep.subr.mxu0 0.0
    %1989 = vmatpush2.msra.mxu0 0.0
    %1990 = vmatprep.subr.mxu0 0.0
    %1991 = vmatpush2.msra.mxu0 0.0
    %1992 = vmatprep.subr.mxu0 0.0
    %1993 = vmatpush2.msra.mxu0 0.0
    %1994 = vmatprep.subr.mxu0 0.0
    %1995 = vmatpush2.msra.mxu0 0.0
    %1996 = vmatprep.subr.mxu0 0.0
    %1997 = vmatpush2.msra.mxu0 0.0
    %1998 = vmatprep.subr.mxu0 0.0
    %1999 = vmatpush2.msra.mxu0 0.0
    %2000 = vmatprep.subr.mxu0 0.0
    %2001 = vmatpush2.msra.mxu0 0.0
    %2002 = vmatprep.subr.mxu0 0.0
    %2003 = vmatpush2.msra.mxu0 0.0
    %2004 = vmatprep.subr.mxu0 0.0
    %2005 = vmatpush2.msra.mxu0 0.0
    %2006 = vmatprep.subr.mxu0 0.0
    %2007 = vmatpush2.msra.mxu0 0.0
    %2008 = vmatprep.mubr.f32.mxu0 0.0
    %2009 = vmatmul.mubr.f32.gmra.mxu0 %v1942
    %v2010 = vpop.f32.mrf.mxu0
    %v2011 = vadd.f32 %v1811, %v2010
    %v2012 = vpop.f32.mrf.mxu0
    %2013 = vdwg.mxu0
    %2015 = vrot.lane.b32.xlu0 %v1938, 80
    %v2016 = vpop.permute.xlu0 %2015
    %2018 = vrot.lane.b32.xlu0 %v1733, 64
    %v2019 = vpop.permute.xlu0 %2018
    %v2021 = vsel %vm322, %v2016, 0
    %2023 = vmatprep.subr.mxu0 0.0
    %2024 = vmatpush1.msra.mxu0 0.0
    %2025 = vmatprep.subr.mxu0 0.0
    %2026 = vmatpush1.msra.mxu0 0.0
    %2027 = vmatprep.subr.mxu0 0.0
    %2028 = vmatpush1.msra.mxu0 0.0
    %2029 = vmatprep.subr.mxu0 0.0
    %2030 = vmatpush1.msra.mxu0 0.0
    %2031 = vmatprep.subr.mxu0 0.0
    %2032 = vmatpush1.msra.mxu0 0.0
    %2033 = vmatprep.subr.mxu0 0.0
    %2034 = vmatpush1.msra.mxu0 0.0
    %2035 = vmatprep.subr.mxu0 0.0
    %2036 = vmatpush1.msra.mxu0 0.0
    %2037 = vmatprep.subr.mxu0 0.0
    %2038 = vmatpush1.msra.mxu0 0.0
    %2039 = vmatprep.subr.mxu0 0.0
    %2040 = vmatpush1.msra.mxu0 0.0
    %2041 = vmatprep.subr.mxu0 0.0
    %2042 = vmatpush1.msra.mxu0 0.0
    %2043 = vmatprep.subr.mxu0 0.0
    %2044 = vmatpush1.msra.mxu0 0.0
    %2045 = vmatprep.subr.mxu0 0.0
    %2046 = vmatpush1.msra.mxu0 0.0
    %2047 = vmatprep.subr.mxu0 0.0
    %2048 = vmatpush1.msra.mxu0 0.0
    %2049 = vmatprep.subr.mxu0 0.0
    %2050 = vmatpush1.msra.mxu0 0.0
    %2051 = vmatprep.subr.mxu0 0.0
    %2052 = vmatpush1.msra.mxu0 %v932
    %2053 = vmatprep.subr.mxu0 0.0
    %2054 = vmatpush1.msra.mxu0 %v931
    %2055 = vmatprep.subr.mxu0 0.0
    %2056 = vmatpush2.msra.mxu0 0.0
    %2057 = vmatprep.subr.mxu0 0.0
    %2058 = vmatpush2.msra.mxu0 0.0
    %2059 = vmatprep.subr.mxu0 0.0
    %2060 = vmatpush2.msra.mxu0 0.0
    %2061 = vmatprep.subr.mxu0 0.0
    %2062 = vmatpush2.msra.mxu0 0.0
    %2063 = vmatprep.subr.mxu0 0.0
    %2064 = vmatpush2.msra.mxu0 0.0
    %2065 = vmatprep.subr.mxu0 0.0
    %2066 = vmatpush2.msra.mxu0 0.0
    %2067 = vmatprep.subr.mxu0 0.0
    %2068 = vmatpush2.msra.mxu0 0.0
    %2069 = vmatprep.subr.mxu0 0.0
    %2070 = vmatpush2.msra.mxu0 0.0
    %2071 = vmatprep.subr.mxu0 0.0
    %2072 = vmatpush2.msra.mxu0 0.0
    %2073 = vmatprep.subr.mxu0 0.0
    %2074 = vmatpush2.msra.mxu0 0.0
    %2075 = vmatprep.subr.mxu0 0.0
    %2076 = vmatpush2.msra.mxu0 0.0
    %2077 = vmatprep.subr.mxu0 0.0
    %2078 = vmatpush2.msra.mxu0 0.0
    %2079 = vmatprep.subr.mxu0 0.0
    %2080 = vmatpush2.msra.mxu0 0.0
    %2081 = vmatprep.subr.mxu0 0.0
    %2082 = vmatpush2.msra.mxu0 0.0
    %2083 = vmatprep.subr.mxu0 0.0
    %2084 = vmatpush2.msra.mxu0 0.0
    %2085 = vmatprep.subr.mxu0 0.0
    %2086 = vmatpush2.msra.mxu0 0.0
    %2087 = vmatprep.mubr.f32.mxu0 0.0
    %2088 = vmatmul.mubr.f32.gmra.mxu0 %v2021
    %v2089 = vpop.f32.mrf.mxu0
    %v2090 = vadd.f32 %v2019, %v2089
    %v2091 = vpop.f32.mrf.mxu0
    %2092 = vdwg.mxu0
    %v2093 = vxor.u32 %v2011, 2147483648
    %v2094 = vmul.f32 %v2093, 1.442695
    %v2095 = vpow.pop %v2094
    %v2096 = vadd.f32 %v2095, 1.0
    %v2097 = vrcp.pop %v2096
    %v2098 = vmul.f32 1.0, %v2097
    %v2099 = vtanh.pop %v2011
    %v2100 = vxor.u32 %v2090, 2147483648
    %v2101 = vmul.f32 %v2100, 1.442695
    %v2102 = vpow.pop %v2101
    %v2103 = vadd.f32 %v2102, 1.0
    %v2104 = vrcp.pop %v2103
    %v2105 = vmul.f32 1.0, %v2104
    %v2106 = vtanh.pop %v2090
    %v2107 = vmul.f32 %v2098, %v1915
    %2109 = vrot.lane.b32.xlu0 %v2099, 96
    %v2110 = vpop.permute.xlu0 %2109
    %v2112 = vmul.f32 %v2098, %v2110
    %2114 = vrot.lane.b32.xlu0 %v2112, 16
    %v2115 = vpop.permute.xlu0 %2114
    %v2117 = vadd.f32 %v2107, %v2115
    %v2118 = vmul.f32 %v2105, %v1926
    %2120 = vrot.lane.b32.xlu0 %v2106, 96
    %v2121 = vpop.permute.xlu0 %2120
    %v2123 = vmul.f32 %v2105, %v2121
    %2125 = vrot.lane.b32.xlu0 %v2123, 16
    %v2126 = vpop.permute.xlu0 %2125
    %v2128 = vadd.f32 %v2118, %v2126
    %v2129 = vtanh.pop %v2117
    %2131 = vrot.lane.b32.xlu0 %v2129, 32
    %v2132 = vpop.permute.xlu0 %2131
    %v2134 = vmul.f32 %v2098, %v2132
    %v2135 = vtanh.pop %v2128
    %2137 = vrot.lane.b32.xlu0 %v2135, 32
    %v2138 = vpop.permute.xlu0 %2137
    %v2140 = vmul.f32 %v2105, %v2138
    %2142 = vrot.lane.b32.xlu0 %v2134, 80
    %v2143 = vpop.permute.xlu0 %2142
    %v2144 = vsel %vm322, %v2143, 0
    %2146 = vmatprep.subr.mxu0 0.0
    %2147 = vmatpush1.msra.mxu0 0.0
    %2148 = vmatprep.subr.mxu0 0.0
    %2149 = vmatpush1.msra.mxu0 0.0
    %2150 = vmatprep.subr.mxu0 0.0
    %2151 = vmatpush1.msra.mxu0 0.0
    %2152 = vmatprep.subr.mxu0 0.0
    %2153 = vmatpush1.msra.mxu0 0.0
    %2154 = vmatprep.subr.mxu0 0.0
    %2155 = vmatpush1.msra.mxu0 0.0
    %2156 = vmatprep.subr.mxu0 0.0
    %2157 = vmatpush1.msra.mxu0 0.0
    %2158 = vmatprep.subr.mxu0 0.0
    %2159 = vmatpush1.msra.mxu0 0.0
    %2160 = vmatprep.subr.mxu0 0.0
    %2161 = vmatpush1.msra.mxu0 0.0
    %2162 = vmatprep.subr.mxu0 0.0
    %2163 = vmatpush1.msra.mxu0 0.0
    %2164 = vmatprep.subr.mxu0 0.0
    %2165 = vmatpush1.msra.mxu0 0.0
    %2166 = vmatprep.subr.mxu0 0.0
    %2167 = vmatpush1.msra.mxu0 0.0
    %2168 = vmatprep.subr.mxu0 0.0
    %2169 = vmatpush1.msra.mxu0 0.0
    %2170 = vmatprep.subr.mxu0 0.0
    %2171 = vmatpush1.msra.mxu0 0.0
    %2172 = vmatprep.subr.mxu0 0.0
    %2173 = vmatpush1.msra.mxu0 0.0
    %2174 = vmatprep.subr.mxu0 0.0
    %2175 = vmatpush1.msra.mxu0 %v930
    %2176 = vmatprep.subr.mxu0 0.0
    %2177 = vmatpush1.msra.mxu0 %v929
    %2178 = vmatprep.subr.mxu0 0.0
    %2179 = vmatpush2.msra.mxu0 0.0
    %2180 = vmatprep.subr.mxu0 0.0
    %2181 = vmatpush2.msra.mxu0 0.0
    %2182 = vmatprep.subr.mxu0 0.0
    %2183 = vmatpush2.msra.mxu0 0.0
    %2184 = vmatprep.subr.mxu0 0.0
    %2185 = vmatpush2.msra.mxu0 0.0
    %2186 = vmatprep.subr.mxu0 0.0
    %2187 = vmatpush2.msra.mxu0 0.0
    %2188 = vmatprep.subr.mxu0 0.0
    %2189 = vmatpush2.msra.mxu0 0.0
    %2190 = vmatprep.subr.mxu0 0.0
    %2191 = vmatpush2.msra.mxu0 0.0
    %2192 = vmatprep.subr.mxu0 0.0
    %2193 = vmatpush2.msra.mxu0 0.0
    %2194 = vmatprep.subr.mxu0 0.0
    %2195 = vmatpush2.msra.mxu0 0.0
    %2196 = vmatprep.subr.mxu0 0.0
    %2197 = vmatpush2.msra.mxu0 0.0
    %2198 = vmatprep.subr.mxu0 0.0
    %2199 = vmatpush2.msra.mxu0 0.0
    %2200 = vmatprep.subr.mxu0 0.0
    %2201 = vmatpush2.msra.mxu0 0.0
    %2202 = vmatprep.subr.mxu0 0.0
    %2203 = vmatpush2.msra.mxu0 0.0
    %2204 = vmatprep.subr.mxu0 0.0
    %2205 = vmatpush2.msra.mxu0 0.0
    %2206 = vmatprep.subr.mxu0 0.0
    %2207 = vmatpush2.msra.mxu0 0.0
    %2208 = vmatprep.subr.mxu0 0.0
    %2209 = vmatpush2.msra.mxu0 0.0
    %2210 = vmatprep.mubr.f32.mxu0 0.0
    %2211 = vmatmul.mubr.f32.gmra.mxu0 %v2144
    %v2212 = vpop.f32.mrf.mxu0
    %v2213 = vadd.f32 %v1601, %v2212
    %v2214 = vpop.f32.mrf.mxu0
    %2215 = vdwg.mxu0
    %2217 = vrot.lane.b32.xlu0 %v2140, 80
    %v2218 = vpop.permute.xlu0 %2217
    %2220 = vrot.lane.b32.xlu0 %v1523, 64
    %v2221 = vpop.permute.xlu0 %2220
    %v2223 = vsel %vm322, %v2218, 0
    %2225 = vmatprep.subr.mxu0 0.0
    %2226 = vmatpush1.msra.mxu0 0.0
    %2227 = vmatprep.subr.mxu0 0.0
    %2228 = vmatpush1.msra.mxu0 0.0
    %2229 = vmatprep.subr.mxu0 0.0
    %2230 = vmatpush1.msra.mxu0 0.0
    %2231 = vmatprep.subr.mxu0 0.0
    %2232 = vmatpush1.msra.mxu0 0.0
    %2233 = vmatprep.subr.mxu0 0.0
    %2234 = vmatpush1.msra.mxu0 0.0
    %2235 = vmatprep.subr.mxu0 0.0
    %2236 = vmatpush1.msra.mxu0 0.0
    %2237 = vmatprep.subr.mxu0 0.0
    %2238 = vmatpush1.msra.mxu0 0.0
    %2239 = vmatprep.subr.mxu0 0.0
    %2240 = vmatpush1.msra.mxu0 0.0
    %2241 = vmatprep.subr.mxu0 0.0
    %2242 = vmatpush1.msra.mxu0 0.0
    %2243 = vmatprep.subr.mxu0 0.0
    %2244 = vmatpush1.msra.mxu0 0.0
    %2245 = vmatprep.subr.mxu0 0.0
    %2246 = vmatpush1.msra.mxu0 0.0
    %2247 = vmatprep.subr.mxu0 0.0
    %2248 = vmatpush1.msra.mxu0 0.0
    %2249 = vmatprep.subr.mxu0 0.0
    %2250 = vmatpush1.msra.mxu0 0.0
    %2251 = vmatprep.subr.mxu0 0.0
    %2252 = vmatpush1.msra.mxu0 0.0
    %2253 = vmatprep.subr.mxu0 0.0
    %2254 = vmatpush1.msra.mxu0 %v932
    %2255 = vmatprep.subr.mxu0 0.0
    %2256 = vmatpush1.msra.mxu0 %v931
    %2257 = vmatprep.subr.mxu0 0.0
    %2258 = vmatpush2.msra.mxu0 0.0
    %2259 = vmatprep.subr.mxu0 0.0
    %2260 = vmatpush2.msra.mxu0 0.0
    %2261 = vmatprep.subr.mxu0 0.0
    %2262 = vmatpush2.msra.mxu0 0.0
    %2263 = vmatprep.subr.mxu0 0.0
    %2264 = vmatpush2.msra.mxu0 0.0
    %2265 = vmatprep.subr.mxu0 0.0
    %2266 = vmatpush2.msra.mxu0 0.0
    %2267 = vmatprep.subr.mxu0 0.0
    %2268 = vmatpush2.msra.mxu0 0.0
    %2269 = vmatprep.subr.mxu0 0.0
    %2270 = vmatpush2.msra.mxu0 0.0
    %2271 = vmatprep.subr.mxu0 0.0
    %2272 = vmatpush2.msra.mxu0 0.0
    %2273 = vmatprep.subr.mxu0 0.0
    %2274 = vmatpush2.msra.mxu0 0.0
    %2275 = vmatprep.subr.mxu0 0.0
    %2276 = vmatpush2.msra.mxu0 0.0
    %2277 = vmatprep.subr.mxu0 0.0
    %2278 = vmatpush2.msra.mxu0 0.0
    %2279 = vmatprep.subr.mxu0 0.0
    %2280 = vmatpush2.msra.mxu0 0.0
    %2281 = vmatprep.subr.mxu0 0.0
    %2282 = vmatpush2.msra.mxu0 0.0
    %2283 = vmatprep.subr.mxu0 0.0
    %2284 = vmatpush2.msra.mxu0 0.0
    %2285 = vmatprep.subr.mxu0 0.0
    %2286 = vmatpush2.msra.mxu0 0.0
    %2287 = vmatprep.subr.mxu0 0.0
    %2288 = vmatpush2.msra.mxu0 0.0
    %2289 = vmatprep.mubr.f32.mxu0 0.0
    %2290 = vmatmul.mubr.f32.gmra.mxu0 %v2223
    %v2291 = vpop.f32.mrf.mxu0
    %v2292 = vadd.f32 %v2221, %v2291
    %v2293 = vpop.f32.mrf.mxu0
    %2294 = vdwg.mxu0
    %v2295 = vxor.u32 %v2213, 2147483648
    %v2296 = vmul.f32 %v2295, 1.442695
    %v2297 = vpow.pop %v2296
    %v2298 = vadd.f32 %v2297, 1.0
    %v2299 = vrcp.pop %v2298
    %v2300 = vmul.f32 1.0, %v2299
    %v2301 = vtanh.pop %v2213
    %v2302 = vxor.u32 %v2292, 2147483648
    %v2303 = vmul.f32 %v2302, 1.442695
    %v2304 = vpow.pop %v2303
    %v2305 = vadd.f32 %v2304, 1.0
    %v2306 = vrcp.pop %v2305
    %v2307 = vmul.f32 1.0, %v2306
    %v2308 = vtanh.pop %v2292
    %v2309 = vmul.f32 %v2300, %v2117
    %2311 = vrot.lane.b32.xlu0 %v2301, 96
    %v2312 = vpop.permute.xlu0 %2311
    %v2314 = vmul.f32 %v2300, %v2312
    %2316 = vrot.lane.b32.xlu0 %v2314, 16
    %v2317 = vpop.permute.xlu0 %2316
    %v2319 = vadd.f32 %v2309, %v2317
    %v2320 = vmul.f32 %v2307, %v2128
    %2322 = vrot.lane.b32.xlu0 %v2308, 96
    %v2323 = vpop.permute.xlu0 %2322
    %v2325 = vmul.f32 %v2307, %v2323
    %2327 = vrot.lane.b32.xlu0 %v2325, 16
    %v2328 = vpop.permute.xlu0 %2327
    %v2330 = vadd.f32 %v2320, %v2328
    %v2331 = vtanh.pop %v2319
    %2333 = vrot.lane.b32.xlu0 %v2331, 32
    %v2334 = vpop.permute.xlu0 %2333
    %v2336 = vmul.f32 %v2300, %v2334
    %v2337 = vtanh.pop %v2330
    %2339 = vrot.lane.b32.xlu0 %v2337, 32
    %v2340 = vpop.permute.xlu0 %2339
    %v2342 = vmul.f32 %v2307, %v2340
    %2344 = vrot.lane.b32.xlu0 %v2336, 80
    %v2345 = vpop.permute.xlu0 %2344
    %v2346 = vsel %vm322, %v2345, 0
    %2348 = vmatprep.subr.mxu0 0.0
    %2349 = vmatpush1.msra.mxu0 0.0
    %2350 = vmatprep.subr.mxu0 0.0
    %2351 = vmatpush1.msra.mxu0 0.0
    %2352 = vmatprep.subr.mxu0 0.0
    %2353 = vmatpush1.msra.mxu0 0.0
    %2354 = vmatprep.subr.mxu0 0.0
    %2355 = vmatpush1.msra.mxu0 0.0
    %2356 = vmatprep.subr.mxu0 0.0
    %2357 = vmatpush1.msra.mxu0 0.0
    %2358 = vmatprep.subr.mxu0 0.0
    %2359 = vmatpush1.msra.mxu0 0.0
    %2360 = vmatprep.subr.mxu0 0.0
    %2361 = vmatpush1.msra.mxu0 0.0
    %2362 = vmatprep.subr.mxu0 0.0
    %2363 = vmatpush1.msra.mxu0 0.0
    %2364 = vmatprep.subr.mxu0 0.0
    %2365 = vmatpush1.msra.mxu0 0.0
    %2366 = vmatprep.subr.mxu0 0.0
    %2367 = vmatpush1.msra.mxu0 0.0
    %2368 = vmatprep.subr.mxu0 0.0
    %2369 = vmatpush1.msra.mxu0 0.0
    %2370 = vmatprep.subr.mxu0 0.0
    %2371 = vmatpush1.msra.mxu0 0.0
    %2372 = vmatprep.subr.mxu0 0.0
    %2373 = vmatpush1.msra.mxu0 0.0
    %2374 = vmatprep.subr.mxu0 0.0
    %2375 = vmatpush1.msra.mxu0 0.0
    %2376 = vmatprep.subr.mxu0 0.0
    %2377 = vmatpush1.msra.mxu0 %v930
    %2378 = vmatprep.subr.mxu0 0.0
    %2379 = vmatpush1.msra.mxu0 %v929
    %2380 = vmatprep.subr.mxu0 0.0
    %2381 = vmatpush2.msra.mxu0 0.0
    %2382 = vmatprep.subr.mxu0 0.0
    %2383 = vmatpush2.msra.mxu0 0.0
    %2384 = vmatprep.subr.mxu0 0.0
    %2385 = vmatpush2.msra.mxu0 0.0
    %2386 = vmatprep.subr.mxu0 0.0
    %2387 = vmatpush2.msra.mxu0 0.0
    %2388 = vmatprep.subr.mxu0 0.0
    %2389 = vmatpush2.msra.mxu0 0.0
    %2390 = vmatprep.subr.mxu0 0.0
    %2391 = vmatpush2.msra.mxu0 0.0
    %2392 = vmatprep.subr.mxu0 0.0
    %2393 = vmatpush2.msra.mxu0 0.0
    %2394 = vmatprep.subr.mxu0 0.0
    %2395 = vmatpush2.msra.mxu0 0.0
    %2396 = vmatprep.subr.mxu0 0.0
    %2397 = vmatpush2.msra.mxu0 0.0
    %2398 = vmatprep.subr.mxu0 0.0
    %2399 = vmatpush2.msra.mxu0 0.0
    %2400 = vmatprep.subr.mxu0 0.0
    %2401 = vmatpush2.msra.mxu0 0.0
    %2402 = vmatprep.subr.mxu0 0.0
    %2403 = vmatpush2.msra.mxu0 0.0
    %2404 = vmatprep.subr.mxu0 0.0
    %2405 = vmatpush2.msra.mxu0 0.0
    %2406 = vmatprep.subr.mxu0 0.0
    %2407 = vmatpush2.msra.mxu0 0.0
    %2408 = vmatprep.subr.mxu0 0.0
    %2409 = vmatpush2.msra.mxu0 0.0
    %2410 = vmatprep.subr.mxu0 0.0
    %2411 = vmatpush2.msra.mxu0 0.0
    %2412 = vmatprep.mubr.f32.mxu0 0.0
    %2413 = vmatmul.mubr.f32.gmra.mxu0 %v2346
    %v2414 = vpop.f32.mrf.mxu0
    %v2415 = vadd.f32 %v1391, %v2414
    %v2416 = vpop.f32.mrf.mxu0
    %2417 = vdwg.mxu0
    %2419 = vrot.lane.b32.xlu0 %v2342, 80
    %v2420 = vpop.permute.xlu0 %2419
    %2422 = vrot.lane.b32.xlu0 %v1311, 64
    %v2423 = vpop.permute.xlu0 %2422
    %v2425 = vsel %vm322, %v2420, 0
    %2427 = vmatprep.subr.mxu0 0.0
    %2428 = vmatpush1.msra.mxu0 0.0
    %2429 = vmatprep.subr.mxu0 0.0
    %2430 = vmatpush1.msra.mxu0 0.0
    %2431 = vmatprep.subr.mxu0 0.0
    %2432 = vmatpush1.msra.mxu0 0.0
    %2433 = vmatprep.subr.mxu0 0.0
    %2434 = vmatpush1.msra.mxu0 0.0
    %2435 = vmatprep.subr.mxu0 0.0
    %2436 = vmatpush1.msra.mxu0 0.0
    %2437 = vmatprep.subr.mxu0 0.0
    %2438 = vmatpush1.msra.mxu0 0.0
    %2439 = vmatprep.subr.mxu0 0.0
    %2440 = vmatpush1.msra.mxu0 0.0
    %2441 = vmatprep.subr.mxu0 0.0
    %2442 = vmatpush1.msra.mxu0 0.0
    %2443 = vmatprep.subr.mxu0 0.0
    %2444 = vmatpush1.msra.mxu0 0.0
    %2445 = vmatprep.subr.mxu0 0.0
    %2446 = vmatpush1.msra.mxu0 0.0
    %2447 = vmatprep.subr.mxu0 0.0
    %2448 = vmatpush1.msra.mxu0 0.0
    %2449 = vmatprep.subr.mxu0 0.0
    %2450 = vmatpush1.msra.mxu0 0.0
    %2451 = vmatprep.subr.mxu0 0.0
    %2452 = vmatpush1.msra.mxu0 0.0
    %2453 = vmatprep.subr.mxu0 0.0
    %2454 = vmatpush1.msra.mxu0 0.0
    %2455 = vmatprep.subr.mxu0 0.0
    %2456 = vmatpush1.msra.mxu0 %v932
    %2457 = vmatprep.subr.mxu0 0.0
    %2458 = vmatpush1.msra.mxu0 %v931
    %2459 = vmatprep.subr.mxu0 0.0
    %2460 = vmatpush2.msra.mxu0 0.0
    %2461 = vmatprep.subr.mxu0 0.0
    %2462 = vmatpush2.msra.mxu0 0.0
    %2463 = vmatprep.subr.mxu0 0.0
    %2464 = vmatpush2.msra.mxu0 0.0
    %2465 = vmatprep.subr.mxu0 0.0
    %2466 = vmatpush2.msra.mxu0 0.0
    %2467 = vmatprep.subr.mxu0 0.0
    %2468 = vmatpush2.msra.mxu0 0.0
    %2469 = vmatprep.subr.mxu0 0.0
    %2470 = vmatpush2.msra.mxu0 0.0
    %2471 = vmatprep.subr.mxu0 0.0
    %2472 = vmatpush2.msra.mxu0 0.0
    %2473 = vmatprep.subr.mxu0 0.0
    %2474 = vmatpush2.msra.mxu0 0.0
    %2475 = vmatprep.subr.mxu0 0.0
    %2476 = vmatpush2.msra.mxu0 0.0
    %2477 = vmatprep.subr.mxu0 0.0
    %2478 = vmatpush2.msra.mxu0 0.0
    %2479 = vmatprep.subr.mxu0 0.0
    %2480 = vmatpush2.msra.mxu0 0.0
    %2481 = vmatprep.subr.mxu0 0.0
    %2482 = vmatpush2.msra.mxu0 0.0
    %2483 = vmatprep.subr.mxu0 0.0
    %2484 = vmatpush2.msra.mxu0 0.0
    %2485 = vmatprep.subr.mxu0 0.0
    %2486 = vmatpush2.msra.mxu0 0.0
    %2487 = vmatprep.subr.mxu0 0.0
    %2488 = vmatpush2.msra.mxu0 0.0
    %2489 = vmatprep.subr.mxu0 0.0
    %2490 = vmatpush2.msra.mxu0 0.0
    %2491 = vmatprep.mubr.f32.mxu0 0.0
    %2492 = vmatmul.mubr.f32.gmra.mxu0 %v2425
    %v2493 = vpop.f32.mrf.mxu0
    %v2494 = vadd.f32 %v2423, %v2493
    %v2495 = vpop.f32.mrf.mxu0
    %2496 = vdwg.mxu0
    %v2497 = vxor.u32 %v2415, 2147483648
    %v2498 = vmul.f32 %v2497, 1.442695
    %v2499 = vpow.pop %v2498
    %v2500 = vadd.f32 %v2499, 1.0
    %v2501 = vrcp.pop %v2500
    %v2502 = vmul.f32 1.0, %v2501
    %v2503 = vtanh.pop %v2415
    %v2504 = vxor.u32 %v2494, 2147483648
    %v2505 = vmul.f32 %v2504, 1.442695
    %v2506 = vpow.pop %v2505
    %v2507 = vadd.f32 %v2506, 1.0
    %v2508 = vrcp.pop %v2507
    %v2509 = vmul.f32 1.0, %v2508
    %v2510 = vtanh.pop %v2494
    %v2511 = vmul.f32 %v2502, %v2319
    %2513 = vrot.lane.b32.xlu0 %v2503, 96
    %v2514 = vpop.permute.xlu0 %2513
    %v2516 = vmul.f32 %v2502, %v2514
    %2518 = vrot.lane.b32.xlu0 %v2516, 16
    %v2519 = vpop.permute.xlu0 %2518
    %v2521 = vadd.f32 %v2511, %v2519
    %v2522 = vmul.f32 %v2509, %v2330
    %2524 = vrot.lane.b32.xlu0 %v2510, 96
    %v2525 = vpop.permute.xlu0 %2524
    %v2527 = vmul.f32 %v2509, %v2525
    %2529 = vrot.lane.b32.xlu0 %v2527, 16
    %v2530 = vpop.permute.xlu0 %2529
    %v2532 = vadd.f32 %v2522, %v2530
    %v2533 = vtanh.pop %v2521
    %2535 = vrot.lane.b32.xlu0 %v2533, 32
    %v2536 = vpop.permute.xlu0 %2535
    %v2538 = vmul.f32 %v2502, %v2536
    %v2539 = vtanh.pop %v2532
    %2541 = vrot.lane.b32.xlu0 %v2539, 32
    %v2542 = vpop.permute.xlu0 %2541
    %v2544 = vmul.f32 %v2509, %v2542
    %2546 = vrot.lane.b32.xlu0 %v2538, 80
    %v2547 = vpop.permute.xlu0 %2546
    %v2548 = vsel %vm322, %v2547, 0
    %2550 = vmatprep.subr.mxu0 0.0
    %2551 = vmatpush1.msra.mxu0 0.0
    %2552 = vmatprep.subr.mxu0 0.0
    %2553 = vmatpush1.msra.mxu0 0.0
    %2554 = vmatprep.subr.mxu0 0.0
    %2555 = vmatpush1.msra.mxu0 0.0
    %2556 = vmatprep.subr.mxu0 0.0
    %2557 = vmatpush1.msra.mxu0 0.0
    %2558 = vmatprep.subr.mxu0 0.0
    %2559 = vmatpush1.msra.mxu0 0.0
    %2560 = vmatprep.subr.mxu0 0.0
    %2561 = vmatpush1.msra.mxu0 0.0
    %2562 = vmatprep.subr.mxu0 0.0
    %2563 = vmatpush1.msra.mxu0 0.0
    %2564 = vmatprep.subr.mxu0 0.0
    %2565 = vmatpush1.msra.mxu0 0.0
    %2566 = vmatprep.subr.mxu0 0.0
    %2567 = vmatpush1.msra.mxu0 0.0
    %2568 = vmatprep.subr.mxu0 0.0
    %2569 = vmatpush1.msra.mxu0 0.0
    %2570 = vmatprep.subr.mxu0 0.0
    %2571 = vmatpush1.msra.mxu0 0.0
    %2572 = vmatprep.subr.mxu0 0.0
    %2573 = vmatpush1.msra.mxu0 0.0
    %2574 = vmatprep.subr.mxu0 0.0
    %2575 = vmatpush1.msra.mxu0 0.0
    %2576 = vmatprep.subr.mxu0 0.0
    %2577 = vmatpush1.msra.mxu0 0.0
    %2578 = vmatprep.subr.mxu0 0.0
    %2579 = vmatpush1.msra.mxu0 %v930
    %2580 = vmatprep.subr.mxu0 0.0
    %2581 = vmatpush1.msra.mxu0 %v929
    %2582 = vmatprep.subr.mxu0 0.0
    %2583 = vmatpush2.msra.mxu0 0.0
    %2584 = vmatprep.subr.mxu0 0.0
    %2585 = vmatpush2.msra.mxu0 0.0
    %2586 = vmatprep.subr.mxu0 0.0
    %2587 = vmatpush2.msra.mxu0 0.0
    %2588 = vmatprep.subr.mxu0 0.0
    %2589 = vmatpush2.msra.mxu0 0.0
    %2590 = vmatprep.subr.mxu0 0.0
    %2591 = vmatpush2.msra.mxu0 0.0
    %2592 = vmatprep.subr.mxu0 0.0
    %2593 = vmatpush2.msra.mxu0 0.0
    %2594 = vmatprep.subr.mxu0 0.0
    %2595 = vmatpush2.msra.mxu0 0.0
    %2596 = vmatprep.subr.mxu0 0.0
    %2597 = vmatpush2.msra.mxu0 0.0
    %2598 = vmatprep.subr.mxu0 0.0
    %2599 = vmatpush2.msra.mxu0 0.0
    %2600 = vmatprep.subr.mxu0 0.0
    %2601 = vmatpush2.msra.mxu0 0.0
    %2602 = vmatprep.subr.mxu0 0.0
    %2603 = vmatpush2.msra.mxu0 0.0
    %2604 = vmatprep.subr.mxu0 0.0
    %2605 = vmatpush2.msra.mxu0 0.0
    %2606 = vmatprep.subr.mxu0 0.0
    %2607 = vmatpush2.msra.mxu0 0.0
    %2608 = vmatprep.subr.mxu0 0.0
    %2609 = vmatpush2.msra.mxu0 0.0
    %2610 = vmatprep.subr.mxu0 0.0
    %2611 = vmatpush2.msra.mxu0 0.0
    %2612 = vmatprep.subr.mxu0 0.0
    %2613 = vmatpush2.msra.mxu0 0.0
    %2614 = vmatprep.mubr.f32.mxu0 0.0
    %2615 = vmatmul.mubr.f32.gmra.mxu0 %v2548
    %v2616 = vpop.f32.mrf.mxu0
    %v2617 = vadd.f32 %v1185, %v2616
    %v2618 = vpop.f32.mrf.mxu0
    %2619 = vdwg.mxu0
    %2621 = vrot.lane.b32.xlu0 %v2544, 80
    %v2622 = vpop.permute.xlu0 %2621
    %2624 = vrot.lane.b32.xlu0 %v1105, 64
    %v2625 = vpop.permute.xlu0 %2624
    %v2627 = vsel %vm322, %v2622, 0
    %2629 = vmatprep.subr.mxu0 0.0
    %2630 = vmatpush1.msra.mxu0 0.0
    %2631 = vmatprep.subr.mxu0 0.0
    %2632 = vmatpush1.msra.mxu0 0.0
    %2633 = vmatprep.subr.mxu0 0.0
    %2634 = vmatpush1.msra.mxu0 0.0
    %2635 = vmatprep.subr.mxu0 0.0
    %2636 = vmatpush1.msra.mxu0 0.0
    %2637 = vmatprep.subr.mxu0 0.0
    %2638 = vmatpush1.msra.mxu0 0.0
    %2639 = vmatprep.subr.mxu0 0.0
    %2640 = vmatpush1.msra.mxu0 0.0
    %2641 = vmatprep.subr.mxu0 0.0
    %2642 = vmatpush1.msra.mxu0 0.0
    %2643 = vmatprep.subr.mxu0 0.0
    %2644 = vmatpush1.msra.mxu0 0.0
    %2645 = vmatprep.subr.mxu0 0.0
    %2646 = vmatpush1.msra.mxu0 0.0
    %2647 = vmatprep.subr.mxu0 0.0
    %2648 = vmatpush1.msra.mxu0 0.0
    %2649 = vmatprep.subr.mxu0 0.0
    %2650 = vmatpush1.msra.mxu0 0.0
    %2651 = vmatprep.subr.mxu0 0.0
    %2652 = vmatpush1.msra.mxu0 0.0
    %2653 = vmatprep.subr.mxu0 0.0
    %2654 = vmatpush1.msra.mxu0 0.0
    %2655 = vmatprep.subr.mxu0 0.0
    %2656 = vmatpush1.msra.mxu0 0.0
    %2657 = vmatprep.subr.mxu0 0.0
    %2658 = vmatpush1.msra.mxu0 %v932
    %2659 = vmatprep.subr.mxu0 0.0
    %2660 = vmatpush1.msra.mxu0 %v931
    %2661 = vmatprep.subr.mxu0 0.0
    %2662 = vmatpush2.msra.mxu0 0.0
    %2663 = vmatprep.subr.mxu0 0.0
    %2664 = vmatpush2.msra.mxu0 0.0
    %2665 = vmatprep.subr.mxu0 0.0
    %2666 = vmatpush2.msra.mxu0 0.0
    %2667 = vmatprep.subr.mxu0 0.0
    %2668 = vmatpush2.msra.mxu0 0.0
    %2669 = vmatprep.subr.mxu0 0.0
    %2670 = vmatpush2.msra.mxu0 0.0
    %2671 = vmatprep.subr.mxu0 0.0
    %2672 = vmatpush2.msra.mxu0 0.0
    %2673 = vmatprep.subr.mxu0 0.0
    %2674 = vmatpush2.msra.mxu0 0.0
    %2675 = vmatprep.subr.mxu0 0.0
    %2676 = vmatpush2.msra.mxu0 0.0
    %2677 = vmatprep.subr.mxu0 0.0
    %2678 = vmatpush2.msra.mxu0 0.0
    %2679 = vmatprep.subr.mxu0 0.0
    %2680 = vmatpush2.msra.mxu0 0.0
    %2681 = vmatprep.subr.mxu0 0.0
    %2682 = vmatpush2.msra.mxu0 0.0
    %2683 = vmatprep.subr.mxu0 0.0
    %2684 = vmatpush2.msra.mxu0 0.0
    %2685 = vmatprep.subr.mxu0 0.0
    %2686 = vmatpush2.msra.mxu0 0.0
    %2687 = vmatprep.subr.mxu0 0.0
    %2688 = vmatpush2.msra.mxu0 0.0
    %2689 = vmatprep.subr.mxu0 0.0
    %2690 = vmatpush2.msra.mxu0 0.0
    %2691 = vmatprep.subr.mxu0 0.0
    %2692 = vmatpush2.msra.mxu0 0.0
    %2693 = vmatprep.mubr.f32.mxu0 0.0
    %2694 = vmatmul.mubr.f32.gmra.mxu0 %v2627
    %v2695 = vpop.f32.mrf.mxu0
    %v2696 = vadd.f32 %v2625, %v2695
    %v2697 = vpop.f32.mrf.mxu0
    %2698 = vdwg.mxu0
    %v2699 = vxor.u32 %v2617, 2147483648
    %v2700 = vmul.f32 %v2699, 1.442695
    %v2701 = vpow.pop %v2700
    %v2702 = vadd.f32 %v2701, 1.0
    %v2703 = vrcp.pop %v2702
    %v2704 = vmul.f32 1.0, %v2703
    %v2705 = vtanh.pop %v2617
    %v2706 = vxor.u32 %v2696, 2147483648
    %v2707 = vmul.f32 %v2706, 1.442695
    %v2708 = vpow.pop %v2707
    %v2709 = vadd.f32 %v2708, 1.0
    %v2710 = vrcp.pop %v2709
    %v2711 = vmul.f32 1.0, %v2710
    %v2712 = vtanh.pop %v2696
    %v2713 = vmul.f32 %v2704, %v2521
    %2715 = vrot.lane.b32.xlu0 %v2705, 96
    %v2716 = vpop.permute.xlu0 %2715
    %v2718 = vmul.f32 %v2704, %v2716
    %2720 = vrot.lane.b32.xlu0 %v2718, 16
    %v2721 = vpop.permute.xlu0 %2720
    %v2723 = vadd.f32 %v2713, %v2721
    %v2724 = vmul.f32 %v2711, %v2532
    %2726 = vrot.lane.b32.xlu0 %v2712, 96
    %v2727 = vpop.permute.xlu0 %2726
    %v2729 = vmul.f32 %v2711, %v2727
    %2731 = vrot.lane.b32.xlu0 %v2729, 16
    %v2732 = vpop.permute.xlu0 %2731
    %v2734 = vadd.f32 %v2724, %v2732
    %v2735 = vtanh.pop %v2723
    %2737 = vrot.lane.b32.xlu0 %v2735, 32
    %v2738 = vpop.permute.xlu0 %2737
    %v2740 = vmul.f32 %v2704, %v2738
    %v2741 = vtanh.pop %v2734
    %2743 = vrot.lane.b32.xlu0 %v2741, 32
    %v2744 = vpop.permute.xlu0 %2743
    %v2746 = vmul.f32 %v2711, %v2744
    %2749 = vrot.lane.b32.xlu0 %v2746, 96
    %v2750 = vpop.permute.xlu0 %2749
    %v2752 = vsel %vm322, %v1314, %v2750
    %2754 = vrot.lane.b32.xlu0 %v2544, 96
    %v2755 = vpop.permute.xlu0 %2754
    %v2757 = vsel %vm322, %v1526, %v2755
    %2759 = vrot.lane.b32.xlu0 %v2342, 96
    %v2760 = vpop.permute.xlu0 %2759
    %v2762 = vsel %vm322, %v1736, %v2760
    %2764 = vrot.lane.b32.xlu0 %v2140, 96
    %v2765 = vpop.permute.xlu0 %2764
    %v2767 = vsel %vm322, %v1941, %v2765
    %2769 = vrot.lane.b32.xlu0 %v1938, 96
    %v2770 = vpop.permute.xlu0 %2769
    %v2772 = vsel %vm322, %v2143, %v2770
    %2774 = vrot.lane.b32.xlu0 %v1728, 96
    %v2775 = vpop.permute.xlu0 %2774
    %v2777 = vsel %vm322, %v2345, %v2775
    %2779 = vrot.lane.b32.xlu0 %v1518, 96
    %v2780 = vpop.permute.xlu0 %2779
    %v2782 = vsel %vm322, %v2547, %v2780
    %2784 = vrot.lane.b32.xlu0 %v2740, 80
    %v2785 = vpop.permute.xlu0 %2784
    %2787 = vrot.lane.b32.xlu0 %v1307, 96
    %v2788 = vpop.permute.xlu0 %2787
    %v2790 = vsel %vm322, %v2785, %v2788
    %v2792 = vrot.slane %v2757, 6
    %v2795 = vrot.slane %v2762, 4
    %v2798 = vrot.slane %v2767, 2
    %v2801 = vrot.slane %v2777, 6
    %v2804 = vrot.slane %v2782, 4
    %v2807 = vrot.slane %v2790, 2
    %v2809 = vsel %vm1104, %v2752, %v2792
    %vm2810 = vcmask 1043456
    %v2811 = vsel %vm2810, %v2809, %v2795
    %vm2812 = vcmask 1045504
    %v2813 = vsel %vm2812, %v2811, %v2798
    %v2814 = vsel %vm1104, %v2772, %v2801
    %v2815 = vsel %vm2810, %v2814, %v2804
    %v2816 = vsel %vm2812, %v2815, %v2807
    %2817 = vst.msk [vmem:[#allocation20] sm:$0xff] %vm230, %v2813
    %2818 = vst.msk [vmem:[#allocation20 + $0x8] sm:$0xff] %vm230, %v2816
    %v2820 = vrot.slane %v2752, 2
    %v2822 = vrot.slane %v2762, 6
    %v2824 = vrot.slane %v2767, 4
    %v2827 = vrot.slane %v2772, 2
    %v2829 = vrot.slane %v2782, 6
    %v2831 = vrot.slane %v2790, 4
    %v2833 = vsel %vm1104, %v2820, %v2757
    %v2834 = vsel %vm2810, %v2833, %v2822
    %v2835 = vsel %vm2812, %v2834, %v2824
    %v2836 = vsel %vm1104, %v2827, %v2777
    %v2837 = vsel %vm2810, %v2836, %v2829
    %v2838 = vsel %vm2812, %v2837, %v2831
    %2839 = vst.msk [vmem:[#allocation21] sm:$0xff] %vm230, %v2835
    %2840 = vst.msk [vmem:[#allocation21 + $0x8] sm:$0xff] %vm230, %v2838
    // Predicated region
    $region118: #{async_infer_forward.1} parent=1 // pred_check
      _
    $region119: #{async_infer_forward.1} parent=1 // pred_check_branch
      %2842 = sbr.rel (0) target = $region121
    $region120: #{async_infer_forward.1} parent=1 // pred_region
      %s2844 = ssub.s32 256, 256
      %2845 = vsyncadd [#allocation4], %s2844
      %s2846 = sshll.u32 [#allocation20], 4
      %s2847 = int_to_ptr.vmem [resolvable:$true] %s2846
      %2852 = dma.vmem_to_hbm [thread:$0]  %s2847, 256, %s18, [#allocation4], 128, 128, 8
    $region121: #{async_infer_forward.1} parent=1 // pred_fallthru
      _
    // Predicated region
    $region122: #{async_infer_forward.1} parent=1 // pred_check
      _
    $region123: #{async_infer_forward.1} parent=1 // pred_check_branch
      %2854 = sbr.rel (0) target = $region125
    $region124: #{async_infer_forward.1} parent=1 // pred_region
      %s2856 = ssub.s32 256, 256
      %2857 = vsyncadd [#allocation22], %s2856
      %s2858 = sshll.u32 [#allocation21], 4
      %s2859 = int_to_ptr.vmem [resolvable:$true] %s2858
      %2864 = dma.vmem_to_hbm [thread:$0]  %s2859, 256, %s19, [#allocation22], 128, 128, 8
    $region125: #{async_infer_forward.1} parent=1 // pred_fallthru
      _
    // Predicated region
    $region126: #{async_infer_forward.1} parent=1 // pred_check
      _
    $region127: #{async_infer_forward.1} parent=1 // pred_check_branch
      %2866 = sbr.rel (0) target = $region129
    $region128: #{async_infer_forward.1} parent=1 // pred_region
      %2867 = dma.done [#allocation4], 256
    $region129: #{async_infer_forward.1} parent=1 // pred_fallthru
      _
    // Predicated region
    $region130: #{async_infer_forward.1} parent=1 // pred_check
      _
    $region131: #{async_infer_forward.1} parent=1 // pred_check_branch
      %2869 = sbr.rel (0) target = $region133
    $region132: #{async_infer_forward.1} parent=1 // pred_region
      %2870 = dma.done [#allocation22], 256
    $region133: #{async_infer_forward.1} parent=1 // pred_fallthru
      _
    %2871 = vsyncpa [#allocation3], 1
    %2872 = vsyncpa [#allocation6], 1
    %2873 = vsyncpa [#allocation9], 1
    %2874 = vsyncpa [#allocation12], 1
    %2875 = vsyncpa [#allocation15], 1
    %2876 = vsyncpa [#allocation18], 1
    %2877 = vsyncpa [#allocation4], 1
    %2878 = vsyncpa [#allocation22], 1

</llo_original>
